<compile_context>
chip_gen: v6e
topology: v6e:2x2x1
jax: 0.10.0
libtpu: 0.0.40
codegen_flags: <defaults>
</compile_context>

<pallas_src>
import jax
import jax.numpy as jnp
import numpy as np
from jax.experimental import pallas as pl
from jax.experimental.pallas import tpu as pltpu

# ----------------------------- model constants ------------------------------ #
H = 32                # per-GRU hidden size
G2 = 2 * H            # 64
G3 = 3 * H            # 96
HF = 2 * H            # 64  : fused hidden  [climate | yield]
G3F = 3 * HF          # 192 : fused layer-0 gate width  [r | z | n]
G4F = 4 * HF          # 256 : fused layer-1 gate width  [r | z | i_n | h_n]
D_CLIM = 9
D_IN_F = D_CLIM + 1   # 10  : fused layer-0 input  [climate(9) | yield(1)]
N_EMB = 60            # 5 embeddings x 12

# rec_slab row offsets (8-row aligned blocks, 256 lanes)
R_WIH0, R_B0X, R_B0HN, R_WHH0, R_W1X, R_W1H, R_B1F = 0, 16, 24, 32, 96, 160, 224
REC_ROWS = 232
# head_slab row offsets (8-row aligned blocks, 32 lanes)
H_WF, H_BF, H_W1HF, H_W1GR, H_WEMB, H_B1, H_W2, H_B2 = 0, 8, 16, 48, 112, 176, 184, 216
HEAD_ROWS = 224


# --------------------------------------------------------------------------- #
# The single fused kernel.                                                      #
# --------------------------------------------------------------------------- #
def _fused_kernel(x_ref, feat_ref, emb_ref, rec_ref, head_ref, out_ref):
    T, B, _ = x_ref.shape

    # ---- carve recurrent weights out of the packed slab (static slices) ----
    wih0 = rec_ref[R_WIH0:R_WIH0 + D_IN_F, :G3F]        # (10, 192)
    b0x = rec_ref[R_B0X:R_B0X + 1, :G3F]                # (1, 192)
    b0hn = rec_ref[R_B0HN:R_B0HN + 1, :HF]              # (1, 64)
    whh0 = rec_ref[R_WHH0:R_WHH0 + HF, :G3F]            # (64, 192)
    w1x = rec_ref[R_W1X:R_W1X + HF, :]                  # (64, 256)
    w1h = rec_ref[R_W1H:R_W1H + HF, :]                  # (64, 256)
    b1f = rec_ref[R_B1F:R_B1F + 1, :]                   # (1, 256)

    # hoisted bias broadcasts (JAX does not CSE broadcast_in_dim)
    b0x_b = jnp.broadcast_to(b0x, (B, G3F))
    b0hn_b = jnp.broadcast_to(b0hn, (B, HF))
    b1f_b = jnp.broadcast_to(b1f, (B, G4F))

    h0 = jnp.zeros((B, HF), jnp.float32)
    h1 = jnp.zeros((B, HF), jnp.float32)

    # ---- fully unrolled fused recurrence (both GRUs, both layers per step) ----
    for t in range(T):
        # layer 0: gi depends only on the input -> off the recurrent critical path
        gi = jnp.dot(x_ref[t], wih0, preferred_element_type=jnp.float32) + b0x_b
        gh = jnp.dot(h0, whh0, preferred_element_type=jnp.float32)
        rz = jax.nn.sigmoid(gi[:, :2 * HF] + gh[:, :2 * HF])        # one 128-lane sigmoid
        r, z = rz[:, :HF], rz[:, HF:]
        n = jnp.tanh(gi[:, 2 * HF:] + r * (gh[:, 2 * HF:] + b0hn_b))
        h0 = (1.0 - z) * n + z * h0

        # layer 1: single 256-lane fused gate block  [r | z | i_n | h_n]
        g = (jnp.dot(h0, w1x, preferred_element_type=jnp.float32)
             + jnp.dot(h1, w1h, preferred_element_type=jnp.float32) + b1f_b)
        rz1 = jax.nn.sigmoid(g[:, :2 * HF])
        r1, z1 = rz1[:, :HF], rz1[:, HF:]
        n1 = jnp.tanh(g[:, 2 * HF:3 * HF] + r1 * g[:, 3 * HF:])
        h1 = (1.0 - z1) * n1 + z1 * h1

    # ---- head: feature encoder + folded embedding map + MLP ----
    wf = head_ref[H_WF:H_WF + 5, :]
    bf = head_ref[H_BF:H_BF + 1, :]
    w1hf = head_ref[H_W1HF:H_W1HF + H, :]
    w1gru = head_ref[H_W1GR:H_W1GR + HF, :]
    wemb = head_ref[H_WEMB:H_WEMB + N_EMB, :]
    b1 = head_ref[H_B1:H_B1 + 1, :]
    w2 = head_ref[H_W2:H_W2 + H, 0:1]
    b2 = head_ref[H_B2:H_B2 + 1, 0:1]

    hf = jnp.maximum(
        jnp.dot(feat_ref[...], wf, preferred_element_type=jnp.float32) + bf, 0.0)
    y = (jnp.dot(hf, w1hf, preferred_element_type=jnp.float32)
         + jnp.dot(h1, w1gru, preferred_element_type=jnp.float32)
         + jnp.dot(emb_ref[...], wemb, preferred_element_type=jnp.float32)
         + b1)
    zact = jnp.maximum(y, 0.0)
    out_ref[...] = jnp.dot(zact, w2, preferred_element_type=jnp.float32) + b2


# --------------------------------------------------------------------------- #
# Host-side one-time parameter preparation (transpose, bias folding, fusion,    #
# block-diagonal GRU fusion, embedding-chain folding, slab packing).            #
# --------------------------------------------------------------------------- #
def _wn_weight(v, g):
    """weight_norm (dim=0 default): W[i,:] = g[i] * V[i,:] / ||V[i,:]||."""
    norm = jnp.sqrt(jnp.sum(v * v, axis=1, keepdims=True))
    return (g[:, None] * v) / norm


def _scatter_gates(w, half, slots, n_slots):
    """Place 32-wide gate blocks of `w` (cols [g0|g1|...]) into a fused layout of
    n_slots blocks of width HF=64, at block `slots[g]`, sub-half `half` (0=climate,
    1=yield)."""
    rows = w.shape[0]
    out = jnp.zeros((rows, n_slots * HF), jnp.float32)
    for g, s in enumerate(slots):
        col = s * HF + half * H
        out = out.at[:, col:col + H].set(w[:, g * H:(g + 1) * H])
    return out


def prepare_kernel_params(params):
    f32 = jnp.float32
    cg0, cg1 = params["climate_gru"]
    yg0, yg1 = params["yield_gru"]

    def l0_blocks(l0, half):
        wih_t = l0["w_ih"].T                                   # (d_in, 96) [r|z|n]
        whh_t = l0["w_hh"].T                                   # (32, 96)
        bih, bhh = l0["b_ih"], l0["b_hh"]                      # (1, 96)
        gi_bias = jnp.concatenate(
            [bih[:, :G2] + bhh[:, :G2], bih[:, G2:]], axis=1)  # r,z biases folded into gi
        return (_scatter_gates(wih_t, half, (0, 1, 2), 3),
                _scatter_gates(whh_t, half, (0, 1, 2), 3),
                _scatter_gates(gi_bias, half, (0, 1, 2), 3),
                bhh[:, G2:])                                    # (1, 32) hidden n-gate bias

    def l1_blocks(l1, half):
        wih_t, whh_t = l1["w_ih"].T, l1["w_hh"].T              # (32, 96)
        bih, bhh = l1["b_ih"], l1["b_hh"]
        wx = _scatter_gates(wih_t, half, (0, 1, 2), 4)          # r, z, i_n
        wh = _scatter_gates(whh_t, half, (0, 1, 3), 4)          # r, z, h_n
        b = (_scatter_gates(jnp.concatenate(
                 [bih[:, :G2] + bhh[:, :G2], bih[:, G2:]], axis=1), half, (0, 1, 2), 4)
             + _scatter_gates(bhh[:, G2:], half, (3,), 4))
        return wx, wh, b

    c_wih0, c_whh0, c_b0x, c_b0hn = l0_blocks(cg0, 0)
    y_wih0, y_whh0, y_b0x, y_b0hn = l0_blocks(yg0, 1)
    c_w1x, c_w1h, c_b1 = l1_blocks(cg1, 0)
    y_w1x, y_w1h, y_b1 = l1_blocks(yg1, 1)

    wih0_f = jnp.concatenate([c_wih0, y_wih0], axis=0)          # (10, 192)
    whh0_f = jnp.concatenate([c_whh0, y_whh0], axis=0)          # (64, 192) block-diag
    b0x_f = c_b0x + y_b0x                                       # (1, 192)
    b0hn_f = jnp.concatenate([c_b0hn, y_b0hn], axis=1)          # (1, 64)
    w1x_f = jnp.concatenate([c_w1x, y_w1x], axis=0)             # (64, 256) block-diag
    w1h_f = jnp.concatenate([c_w1h, y_w1h], axis=0)             # (64, 256) block-diag
    b1f_f = c_b1 + y_b1                                         # (1, 256)

    rec = jnp.zeros((REC_ROWS, G4F), f32)
    rec = rec.at[R_WIH0:R_WIH0 + D_IN_F, :G3F].set(wih0_f)
    rec = rec.at[R_B0X:R_B0X + 1, :G3F].set(b0x_f)
    rec = rec.at[R_B0HN:R_B0HN + 1, :HF].set(b0hn_f)
    rec = rec.at[R_WHH0:R_WHH0 + HF, :G3F].set(whh0_f)
    rec = rec.at[R_W1X:R_W1X + HF, :].set(w1x_f)
    rec = rec.at[R_W1H:R_W1H + HF, :].set(w1h_f)
    rec = rec.at[R_B1F:R_B1F + 1, :].set(b1f_f)

    # ---- head: fold the embedding-interaction chain + its W1 blocks into one map ----
    w1_t = params["w1"].T                                       # (156, 32)
    w1_hf, w1_cl = w1_t[0:32], w1_t[32:64]
    w1_r, w1_p, w1_c = w1_t[64:76], w1_t[76:88], w1_t[88:100]
    w1_ty, w1_v, w1_res = w1_t[100:112], w1_t[112:124], w1_t[124:156]

    wp2r_t, wv2t_t, wt2c_t = params["wp2r"].T, params["wv2t"].T, params["wt2c"].T
    w_t_eff = w1_ty + wt2c_t @ w1_c                             # effective map for te
    w_emb = jnp.concatenate([
        w1_r,                                                   # re
        w1_p + wp2r_t @ w1_r,                                   # pe
        w1_c,                                                   # ce
        w_t_eff,                                                # te
        w1_v + wv2t_t @ w_t_eff,                                # ve
    ], axis=0)                                                  # (60, 32)
    b_fold = (params["bp2r"] @ w1_r + params["bv2t"] @ w_t_eff
              + params["bt2c"] @ w1_c)                          # (1, 32)
    b1_tot = params["b1"] + b_fold

    head = jnp.zeros((HEAD_ROWS, H), f32)
    head = head.at[H_WF:H_WF + 5, :].set(params["wf"].T)
    head = head.at[H_BF:H_BF + 1, :].set(params["bf"])
    head = head.at[H_W1HF:H_W1HF + H, :].set(w1_hf)
    head = head.at[H_W1GR:H_W1GR + HF, :].set(jnp.concatenate([w1_cl, w1_res], axis=0))
    head = head.at[H_WEMB:H_WEMB + N_EMB, :].set(w_emb)
    head = head.at[H_B1:H_B1 + 1, :].set(b1_tot)
    head = head.at[H_W2:H_W2 + H, 0:1].set(params["w2"].T)
    head = head.at[H_B2:H_B2 + 1, 0:1].set(params["b2"])

    return {
        "rec_slab": rec, "head_slab": head,
        "ranch_emb": params["ranch_emb"], "parcel_emb": params["parcel_emb"],
        "class_emb": params["class_emb"], "type_emb": params["type_emb"],
        "variety_emb": params["variety_emb"],
    }


# --------------------------------------------------------------------------- #
# Forward wrapper: embedding gathers + tiny concats + ONE pallas_call.          #
# --------------------------------------------------------------------------- #
def yield_model_forward(prepped, features, encoded_features, climate_data,
                        yield_gru_input):
    """features: (B,5) f32; encoded_features: (B,5) int32 cols
       [ranch, parcel, class, type, variety]; climate_data: (B,T,9) f32;
       yield_gru_input: (B,T,1) f32. Returns (B,1) f32."""
    B, Tc, _ = climate_data.shape
    Ty = yield_gru_input.shape[1]
    assert Tc == Ty, "fused-GRU kernel assumes aligned sequence lengths"
    # TODO(synk): support Tc != Ty by running the tail of the longer sequence un-fused.

    r_emb = prepped["ranch_emb"][encoded_features[:, 0]]
    p_emb = prepped["parcel_emb"][encoded_features[:, 1]]
    c_emb = prepped["class_emb"][encoded_features[:, 2]]
    t_emb = prepped["type_emb"][encoded_features[:, 3]]
    v_emb = prepped["variety_emb"][encoded_features[:, 4]]
    emb = jnp.concatenate([r_emb, p_emb, c_emb, t_emb, v_emb], axis=-1)       # (B, 60)

    # time-major fused GRU input [climate | yield] -> (T, B, 10)
    x_fused = jnp.transpose(
        jnp.concatenate([climate_data, yield_gru_input], axis=-1), (1, 0, 2))

    return pl.pallas_call(
        _fused_kernel,
        out_shape=jax.ShapeDtypeStruct((B, 1), jnp.float32),
        in_specs=[pl.BlockSpec(memory_space=pltpu.MemorySpace.VMEM)] * 5,
        out_specs=pl.BlockSpec(memory_space=pltpu.MemorySpace.VMEM),
    )(x_fused, features, emb, prepped["rec_slab"], prepped["head_slab"])


# --------------------------------------------------------------------------- #
# Parameter init (PyTorch conventions: (out, in) weights, [r,z,n] gate order).  #
# --------------------------------------------------------------------------- #
def init_params(key):
    keys = list(jax.random.split(key, 64))
    it = iter(keys)

    def nrm(shape, scale=0.1):
        return (scale * jax.random.normal(next(it), shape)).astype(jnp.float32)

    def gain(n):  # non-trivial weight_norm g
        return (1.0 + 0.1 * jax.random.normal(next(it), (n,))).astype(jnp.float32)

    def gru_layer(d_in):
        return {"w_ih": nrm((3 * H, d_in)), "w_hh": nrm((3 * H, H)),
                "b_ih": nrm((1, 3 * H)), "b_hh": nrm((1, 3 * H))}

    params = {}
    params["wf"] = _wn_weight(nrm((32, 5)), gain(32))
    params["bf"] = nrm((1, 32))
    params["climate_gru"] = (gru_layer(9), gru_layer(H))
    params["ranch_emb"] = nrm((13, 12))
    params["parcel_emb"] = nrm((44, 12))
    params["class_emb"] = nrm((2, 12))
    params["type_emb"] = nrm((14, 12))
    params["variety_emb"] = nrm((59, 12))
    params["wp2r"] = _wn_weight(nrm((12, 12)), gain(12))
    params["bp2r"] = nrm((1, 12))
    params["wv2t"] = _wn_weight(nrm((12, 12)), gain(12))
    params["bv2t"] = nrm((1, 12))
    params["wt2c"] = _wn_weight(nrm((12, 12)), gain(12))
    params["bt2c"] = nrm((1, 12))
    params["yield_gru"] = (gru_layer(1), gru_layer(H))
    params["w1"] = _wn_weight(nrm((32, 156)), gain(32))
    params["b1"] = nrm((1, 32))
    params["w2"] = _wn_weight(nrm((1, 32)), gain(1))
    params["b2"] = nrm((1, 1))
    return params


# --------------------------------------------------------------------------- #
# Pure-JAX reference (standard GRU formulation, original un-prepped params).    #
# --------------------------------------------------------------------------- #
def _gru_cell(x_t, h, w_ih, w_hh, b_ih, b_hh):
    gi = jnp.dot(x_t, w_ih.T, preferred_element_type=jnp.float32) + b_ih
    gh = jnp.dot(h, w_hh.T, preferred_element_type=jnp.float32) + b_hh
    i_r, i_z, i_n = gi[:, :H], gi[:, H:G2], gi[:, G2:G3]
    h_r, h_z, h_n = gh[:, :H], gh[:, H:G2], gh[:, G2:G3]
    r = jax.nn.sigmoid(i_r + h_r)
    z = jax.nn.sigmoid(i_z + h_z)
    n = jnp.tanh(i_n + r * h_n)
    return (1.0 - z) * n + z * h


def _ref_gru2(x_btd, l0, l1):
    B, T, _ = x_btd.shape
    h0 = jnp.zeros((B, H), jnp.float32)
    h1 = jnp.zeros((B, H), jnp.float32)
    for t in range(T):
        h0 = _gru_cell(x_btd[:, t, :], h0, l0["w_ih"], l0["w_hh"], l0["b_ih"], l0["b_hh"])
        h1 = _gru_cell(h0, h1, l1["w_ih"], l1["w_hh"], l1["b_ih"], l1["b_hh"])
    return h1


def ref_forward(params, features, encoded_features, climate_data, yield_gru_input):
    hf = jax.nn.relu(features @ params["wf"].T + params["bf"])
    climate_out = _ref_gru2(climate_data, *params["climate_gru"])
    result = _ref_gru2(yield_gru_input, *params["yield_gru"])

    r = params["ranch_emb"][encoded_features[:, 0]]
    p = params["parcel_emb"][encoded_features[:, 1]]
    c = params["class_emb"][encoded_features[:, 2]]
    t = params["type_emb"][encoded_features[:, 3]]
    v = params["variety_emb"][encoded_features[:, 4]]
    r = r + (p @ params["wp2r"].T + params["bp2r"])
    t = t + (v @ params["wv2t"].T + params["bv2t"])
    c = c + (t @ params["wt2c"].T + params["bt2c"])

    combined = jnp.concatenate([hf, climate_out, r, p, c, t, v, result], axis=-1)
    z = jax.nn.relu(combined @ params["w1"].T + params["b1"])
    return z @ params["w2"].T + params["b2"]


# ----------------------------------- main ----------------------------------- #
if __name__ == "__main__":
    key = jax.random.PRNGKey(0)
    kp, k1, k2, k3, k4 = jax.random.split(key, 5)

    B, T = 2, 8
    params = init_params(kp)
    prepped = prepare_kernel_params(params)     # one-time host-side weight prep

    features = jax.random.normal(k1, (B, 5), jnp.float32)
    maxes = jnp.array([13, 44, 2, 14, 59], jnp.int32)
    encoded_features = (jax.random.randint(k2, (B, 5), 0, 1_000_000) % maxes).astype(jnp.int32)
    climate_data = jax.random.normal(k3, (B, T, 9), jnp.float32)
    yield_gru_input = jax.random.normal(k4, (B, T, 1), jnp.float32)

    fwd = jax.jit(yield_model_forward)
    out = fwd(prepped, features, encoded_features, climate_data, yield_gru_input)
    out = jax.block_until_ready(out)
    assert out.shape == (B, 1)

    with jax.default_matmul_precision("float32"):
        ref = ref_forward(params, features, encoded_features, climate_data,
                          yield_gru_input)
    np.testing.assert_allclose(np.asarray(out), np.asarray(ref), rtol=2e-3, atol=2e-3)

    print("KERNEL_OK")
</pallas_src>

<mosaic_0001>
module attributes {stable_mosaic.version = 11 : i64} {
  func.func @_fused_kernel(%arg0: memref<8x2x10xf32, #tpu.memory_space<vmem>>, %arg1: memref<2x5xf32, #tpu.memory_space<vmem>>, %arg2: memref<2x60xf32, #tpu.memory_space<vmem>>, %arg3: memref<232x256xf32, #tpu.memory_space<vmem>>, %arg4: memref<224x32xf32, #tpu.memory_space<vmem>>, %arg5: memref<2x1xf32, #tpu.memory_space<vmem>>) attributes {dimension_semantics = [], scalar_prefetch = 0 : i64, scratch_operands = 0 : i64, tpu.core_type = #tpu.core_type<tc>} {
    %c0 = arith.constant 0 : index
    %c0_0 = arith.constant 0 : index
    %0 = vector.load %arg3[%c0, %c0_0] : memref<232x256xf32, #tpu.memory_space<vmem>>, vector<10x192xf32>
    %c16 = arith.constant 16 : index
    %c0_1 = arith.constant 0 : index
    %1 = vector.load %arg3[%c16, %c0_1] : memref<232x256xf32, #tpu.memory_space<vmem>>, vector<1x192xf32>
    %c24 = arith.constant 24 : index
    %c0_2 = arith.constant 0 : index
    %2 = vector.load %arg3[%c24, %c0_2] : memref<232x256xf32, #tpu.memory_space<vmem>>, vector<1x64xf32>
    %c32 = arith.constant 32 : index
    %c0_3 = arith.constant 0 : index
    %3 = vector.load %arg3[%c32, %c0_3] : memref<232x256xf32, #tpu.memory_space<vmem>>, vector<64x192xf32>
    %c96 = arith.constant 96 : index
    %c0_4 = arith.constant 0 : index
    %4 = vector.load %arg3[%c96, %c0_4] : memref<232x256xf32, #tpu.memory_space<vmem>>, vector<64x256xf32>
    %c160 = arith.constant 160 : index
    %c0_5 = arith.constant 0 : index
    %5 = vector.load %arg3[%c160, %c0_5] : memref<232x256xf32, #tpu.memory_space<vmem>>, vector<64x256xf32>
    %c224 = arith.constant 224 : index
    %c0_6 = arith.constant 0 : index
    %6 = vector.load %arg3[%c224, %c0_6] : memref<232x256xf32, #tpu.memory_space<vmem>>, vector<1x256xf32>
    %7 = vector.shape_cast %1 : vector<1x192xf32> to vector<1x192xf32>
    %8 = vector.broadcast %7 : vector<1x192xf32> to vector<2x192xf32>
    %9 = vector.shape_cast %2 : vector<1x64xf32> to vector<1x64xf32>
    %10 = vector.broadcast %9 : vector<1x64xf32> to vector<2x64xf32>
    %11 = vector.shape_cast %6 : vector<1x256xf32> to vector<1x256xf32>
    %12 = vector.broadcast %11 : vector<1x256xf32> to vector<2x256xf32>
    %cst = arith.constant 0.000000e+00 : f32
    %13 = vector.broadcast %cst : f32 to vector<2x64xf32>
    %cst_7 = arith.constant 0.000000e+00 : f32
    %14 = vector.broadcast %cst_7 : f32 to vector<2x64xf32>
    %c0_8 = arith.constant 0 : index
    %c0_9 = arith.constant 0 : index
    %c0_10 = arith.constant 0 : index
    %15 = vector.load %arg0[%c0_8, %c0_9, %c0_10] : memref<8x2x10xf32, #tpu.memory_space<vmem>>, vector<1x2x10xf32>
    %16 = vector.shape_cast %15 : vector<1x2x10xf32> to vector<2x10xf32>
    %cst_11 = arith.constant dense<0.000000e+00> : vector<2x192xf32>
    %17 = tpu.matmul %16, %0, %cst_11 {dimension_numbers = #tpu.dot_dimension_numbers<[1], [0], [0], [1], [0, 0, 1, 1], [], []>} : vector<2x10xf32>, vector<10x192xf32>, vector<2x192xf32> -> vector<2x192xf32>
    %18 = arith.addf %17, %8 : vector<2x192xf32>
    %cst_12 = arith.constant dense<0.000000e+00> : vector<2x192xf32>
    %19 = tpu.matmul %13, %3, %cst_12 {dimension_numbers = #tpu.dot_dimension_numbers<[1], [0], [0], [1], [0, 0, 1, 1], [], []>} : vector<2x64xf32>, vector<64x192xf32>, vector<2x192xf32> -> vector<2x192xf32>
    %20 = vector.extract_strided_slice %18 {offsets = [0, 0], sizes = [2, 128], strides = [1, 1]} : vector<2x192xf32> to vector<2x128xf32>
    %21 = vector.extract_strided_slice %19 {offsets = [0, 0], sizes = [2, 128], strides = [1, 1]} : vector<2x192xf32> to vector<2x128xf32>
    %22 = arith.addf %20, %21 : vector<2x128xf32>
    %23 = arith.negf %22 : vector<2x128xf32>
    %24 = math.exp %23 : vector<2x128xf32>
    %cst_13 = arith.constant 1.000000e+00 : f32
    %25 = vector.broadcast %cst_13 : f32 to vector<2x128xf32>
    %26 = arith.addf %25, %24 : vector<2x128xf32>
    %27 = arith.divf %25, %26 : vector<2x128xf32>
    %28 = vector.extract_strided_slice %27 {offsets = [0, 0], sizes = [2, 64], strides = [1, 1]} : vector<2x128xf32> to vector<2x64xf32>
    %29 = vector.extract_strided_slice %27 {offsets = [0, 64], sizes = [2, 64], strides = [1, 1]} : vector<2x128xf32> to vector<2x64xf32>
    %30 = vector.extract_strided_slice %18 {offsets = [0, 128], sizes = [2, 64], strides = [1, 1]} : vector<2x192xf32> to vector<2x64xf32>
    %31 = vector.extract_strided_slice %19 {offsets = [0, 128], sizes = [2, 64], strides = [1, 1]} : vector<2x192xf32> to vector<2x64xf32>
    %32 = arith.addf %31, %10 : vector<2x64xf32>
    %33 = arith.mulf %28, %32 : vector<2x64xf32>
    %34 = arith.addf %30, %33 : vector<2x64xf32>
    %35 = math.tanh %34 : vector<2x64xf32>
    %cst_14 = arith.constant 1.000000e+00 : f32
    %36 = vector.broadcast %cst_14 : f32 to vector<2x64xf32>
    %37 = arith.subf %36, %29 : vector<2x64xf32>
    %38 = arith.mulf %37, %35 : vector<2x64xf32>
    %39 = arith.mulf %29, %13 : vector<2x64xf32>
    %40 = arith.addf %38, %39 : vector<2x64xf32>
    %cst_15 = arith.constant dense<0.000000e+00> : vector<2x256xf32>
    %41 = tpu.matmul %40, %4, %cst_15 {dimension_numbers = #tpu.dot_dimension_numbers<[1], [0], [0], [1], [0, 0, 1, 1], [], []>} : vector<2x64xf32>, vector<64x256xf32>, vector<2x256xf32> -> vector<2x256xf32>
    %cst_16 = arith.constant dense<0.000000e+00> : vector<2x256xf32>
    %42 = tpu.matmul %14, %5, %cst_16 {dimension_numbers = #tpu.dot_dimension_numbers<[1], [0], [0], [1], [0, 0, 1, 1], [], []>} : vector<2x64xf32>, vector<64x256xf32>, vector<2x256xf32> -> vector<2x256xf32>
    %43 = arith.addf %41, %42 : vector<2x256xf32>
    %44 = arith.addf %43, %12 : vector<2x256xf32>
    %45 = vector.extract_strided_slice %44 {offsets = [0, 0], sizes = [2, 128], strides = [1, 1]} : vector<2x256xf32> to vector<2x128xf32>
    %46 = arith.negf %45 : vector<2x128xf32>
    %47 = math.exp %46 : vector<2x128xf32>
    %cst_17 = arith.constant 1.000000e+00 : f32
    %48 = vector.broadcast %cst_17 : f32 to vector<2x128xf32>
    %49 = arith.addf %48, %47 : vector<2x128xf32>
    %50 = arith.divf %48, %49 : vector<2x128xf32>
    %51 = vector.extract_strided_slice %50 {offsets = [0, 0], sizes = [2, 64], strides = [1, 1]} : vector<2x128xf32> to vector<2x64xf32>
    %52 = vector.extract_strided_slice %50 {offsets = [0, 64], sizes = [2, 64], strides = [1, 1]} : vector<2x128xf32> to vector<2x64xf32>
    %53 = vector.extract_strided_slice %44 {offsets = [0, 128], sizes = [2, 64], strides = [1, 1]} : vector<2x256xf32> to vector<2x64xf32>
    %54 = vector.extract_strided_slice %44 {offsets = [0, 192], sizes = [2, 64], strides = [1, 1]} : vector<2x256xf32> to vector<2x64xf32>
    %55 = arith.mulf %51, %54 : vector<2x64xf32>
    %56 = arith.addf %53, %55 : vector<2x64xf32>
    %57 = math.tanh %56 : vector<2x64xf32>
    %cst_18 = arith.constant 1.000000e+00 : f32
    %58 = vector.broadcast %cst_18 : f32 to vector<2x64xf32>
    %59 = arith.subf %58, %52 : vector<2x64xf32>
    %60 = arith.mulf %59, %57 : vector<2x64xf32>
    %61 = arith.mulf %52, %14 : vector<2x64xf32>
    %62 = arith.addf %60, %61 : vector<2x64xf32>
    %c1 = arith.constant 1 : index
    %c0_19 = arith.constant 0 : index
    %c0_20 = arith.constant 0 : index
    %63 = vector.load %arg0[%c1, %c0_19, %c0_20] : memref<8x2x10xf32, #tpu.memory_space<vmem>>, vector<1x2x10xf32>
    %64 = vector.shape_cast %63 : vector<1x2x10xf32> to vector<2x10xf32>
    %cst_21 = arith.constant dense<0.000000e+00> : vector<2x192xf32>
    %65 = tpu.matmul %64, %0, %cst_21 {dimension_numbers = #tpu.dot_dimension_numbers<[1], [0], [0], [1], [0, 0, 1, 1], [], []>} : vector<2x10xf32>, vector<10x192xf32>, vector<2x192xf32> -> vector<2x192xf32>
    %66 = arith.addf %65, %8 : vector<2x192xf32>
    %cst_22 = arith.constant dense<0.000000e+00> : vector<2x192xf32>
    %67 = tpu.matmul %40, %3, %cst_22 {dimension_numbers = #tpu.dot_dimension_numbers<[1], [0], [0], [1], [0, 0, 1, 1], [], []>} : vector<2x64xf32>, vector<64x192xf32>, vector<2x192xf32> -> vector<2x192xf32>
    %68 = vector.extract_strided_slice %66 {offsets = [0, 0], sizes = [2, 128], strides = [1, 1]} : vector<2x192xf32> to vector<2x128xf32>
    %69 = vector.extract_strided_slice %67 {offsets = [0, 0], sizes = [2, 128], strides = [1, 1]} : vector<2x192xf32> to vector<2x128xf32>
    %70 = arith.addf %68, %69 : vector<2x128xf32>
    %71 = arith.negf %70 : vector<2x128xf32>
    %72 = math.exp %71 : vector<2x128xf32>
    %cst_23 = arith.constant 1.000000e+00 : f32
    %73 = vector.broadcast %cst_23 : f32 to vector<2x128xf32>
    %74 = arith.addf %73, %72 : vector<2x128xf32>
    %75 = arith.divf %73, %74 : vector<2x128xf32>
    %76 = vector.extract_strided_slice %75 {offsets = [0, 0], sizes = [2, 64], strides = [1, 1]} : vector<2x128xf32> to vector<2x64xf32>
    %77 = vector.extract_strided_slice %75 {offsets = [0, 64], sizes = [2, 64], strides = [1, 1]} : vector<2x128xf32> to vector<2x64xf32>
    %78 = vector.extract_strided_slice %66 {offsets = [0, 128], sizes = [2, 64], strides = [1, 1]} : vector<2x192xf32> to vector<2x64xf32>
    %79 = vector.extract_strided_slice %67 {offsets = [0, 128], sizes = [2, 64], strides = [1, 1]} : vector<2x192xf32> to vector<2x64xf32>
    %80 = arith.addf %79, %10 : vector<2x64xf32>
    %81 = arith.mulf %76, %80 : vector<2x64xf32>
    %82 = arith.addf %78, %81 : vector<2x64xf32>
    %83 = math.tanh %82 : vector<2x64xf32>
    %cst_24 = arith.constant 1.000000e+00 : f32
    %84 = vector.broadcast %cst_24 : f32 to vector<2x64xf32>
    %85 = arith.subf %84, %77 : vector<2x64xf32>
    %86 = arith.mulf %85, %83 : vector<2x64xf32>
    %87 = arith.mulf %77, %40 : vector<2x64xf32>
    %88 = arith.addf %86, %87 : vector<2x64xf32>
    %cst_25 = arith.constant dense<0.000000e+00> : vector<2x256xf32>
    %89 = tpu.matmul %88, %4, %cst_25 {dimension_numbers = #tpu.dot_dimension_numbers<[1], [0], [0], [1], [0, 0, 1, 1], [], []>} : vector<2x64xf32>, vector<64x256xf32>, vector<2x256xf32> -> vector<2x256xf32>
    %cst_26 = arith.constant dense<0.000000e+00> : vector<2x256xf32>
    %90 = tpu.matmul %62, %5, %cst_26 {dimension_numbers = #tpu.dot_dimension_numbers<[1], [0], [0], [1], [0, 0, 1, 1], [], []>} : vector<2x64xf32>, vector<64x256xf32>, vector<2x256xf32> -> vector<2x256xf32>
    %91 = arith.addf %89, %90 : vector<2x256xf32>
    %92 = arith.addf %91, %12 : vector<2x256xf32>
    %93 = vector.extract_strided_slice %92 {offsets = [0, 0], sizes = [2, 128], strides = [1, 1]} : vector<2x256xf32> to vector<2x128xf32>
    %94 = arith.negf %93 : vector<2x128xf32>
    %95 = math.exp %94 : vector<2x128xf32>
    %cst_27 = arith.constant 1.000000e+00 : f32
    %96 = vector.broadcast %cst_27 : f32 to vector<2x128xf32>
    %97 = arith.addf %96, %95 : vector<2x128xf32>
    %98 = arith.divf %96, %97 : vector<2x128xf32>
    %99 = vector.extract_strided_slice %98 {offsets = [0, 0], sizes = [2, 64], strides = [1, 1]} : vector<2x128xf32> to vector<2x64xf32>
    %100 = vector.extract_strided_slice %98 {offsets = [0, 64], sizes = [2, 64], strides = [1, 1]} : vector<2x128xf32> to vector<2x64xf32>
    %101 = vector.extract_strided_slice %92 {offsets = [0, 128], sizes = [2, 64], strides = [1, 1]} : vector<2x256xf32> to vector<2x64xf32>
    %102 = vector.extract_strided_slice %92 {offsets = [0, 192], sizes = [2, 64], strides = [1, 1]} : vector<2x256xf32> to vector<2x64xf32>
    %103 = arith.mulf %99, %102 : vector<2x64xf32>
    %104 = arith.addf %101, %103 : vector<2x64xf32>
    %105 = math.tanh %104 : vector<2x64xf32>
    %cst_28 = arith.constant 1.000000e+00 : f32
    %106 = vector.broadcast %cst_28 : f32 to vector<2x64xf32>
    %107 = arith.subf %106, %100 : vector<2x64xf32>
    %108 = arith.mulf %107, %105 : vector<2x64xf32>
    %109 = arith.mulf %100, %62 : vector<2x64xf32>
    %110 = arith.addf %108, %109 : vector<2x64xf32>
    %c2 = arith.constant 2 : index
    %c0_29 = arith.constant 0 : index
    %c0_30 = arith.constant 0 : index
    %111 = vector.load %arg0[%c2, %c0_29, %c0_30] : memref<8x2x10xf32, #tpu.memory_space<vmem>>, vector<1x2x10xf32>
    %112 = vector.shape_cast %111 : vector<1x2x10xf32> to vector<2x10xf32>
    %cst_31 = arith.constant dense<0.000000e+00> : vector<2x192xf32>
    %113 = tpu.matmul %112, %0, %cst_31 {dimension_numbers = #tpu.dot_dimension_numbers<[1], [0], [0], [1], [0, 0, 1, 1], [], []>} : vector<2x10xf32>, vector<10x192xf32>, vector<2x192xf32> -> vector<2x192xf32>
    %114 = arith.addf %113, %8 : vector<2x192xf32>
    %cst_32 = arith.constant dense<0.000000e+00> : vector<2x192xf32>
    %115 = tpu.matmul %88, %3, %cst_32 {dimension_numbers = #tpu.dot_dimension_numbers<[1], [0], [0], [1], [0, 0, 1, 1], [], []>} : vector<2x64xf32>, vector<64x192xf32>, vector<2x192xf32> -> vector<2x192xf32>
    %116 = vector.extract_strided_slice %114 {offsets = [0, 0], sizes = [2, 128], strides = [1, 1]} : vector<2x192xf32> to vector<2x128xf32>
    %117 = vector.extract_strided_slice %115 {offsets = [0, 0], sizes = [2, 128], strides = [1, 1]} : vector<2x192xf32> to vector<2x128xf32>
    %118 = arith.addf %116, %117 : vector<2x128xf32>
    %119 = arith.negf %118 : vector<2x128xf32>
    %120 = math.exp %119 : vector<2x128xf32>
    %cst_33 = arith.constant 1.000000e+00 : f32
    %121 = vector.broadcast %cst_33 : f32 to vector<2x128xf32>
    %122 = arith.addf %121, %120 : vector<2x128xf32>
    %123 = arith.divf %121, %122 : vector<2x128xf32>
    %124 = vector.extract_strided_slice %123 {offsets = [0, 0], sizes = [2, 64], strides = [1, 1]} : vector<2x128xf32> to vector<2x64xf32>
    %125 = vector.extract_strided_slice %123 {offsets = [0, 64], sizes = [2, 64], strides = [1, 1]} : vector<2x128xf32> to vector<2x64xf32>
    %126 = vector.extract_strided_slice %114 {offsets = [0, 128], sizes = [2, 64], strides = [1, 1]} : vector<2x192xf32> to vector<2x64xf32>
    %127 = vector.extract_strided_slice %115 {offsets = [0, 128], sizes = [2, 64], strides = [1, 1]} : vector<2x192xf32> to vector<2x64xf32>
    %128 = arith.addf %127, %10 : vector<2x64xf32>
    %129 = arith.mulf %124, %128 : vector<2x64xf32>
    %130 = arith.addf %126, %129 : vector<2x64xf32>
    %131 = math.tanh %130 : vector<2x64xf32>
    %cst_34 = arith.constant 1.000000e+00 : f32
    %132 = vector.broadcast %cst_34 : f32 to vector<2x64xf32>
    %133 = arith.subf %132, %125 : vector<2x64xf32>
    %134 = arith.mulf %133, %131 : vector<2x64xf32>
    %135 = arith.mulf %125, %88 : vector<2x64xf32>
    %136 = arith.addf %134, %135 : vector<2x64xf32>
    %cst_35 = arith.constant dense<0.000000e+00> : vector<2x256xf32>
    %137 = tpu.matmul %136, %4, %cst_35 {dimension_numbers = #tpu.dot_dimension_numbers<[1], [0], [0], [1], [0, 0, 1, 1], [], []>} : vector<2x64xf32>, vector<64x256xf32>, vector<2x256xf32> -> vector<2x256xf32>
    %cst_36 = arith.constant dense<0.000000e+00> : vector<2x256xf32>
    %138 = tpu.matmul %110, %5, %cst_36 {dimension_numbers = #tpu.dot_dimension_numbers<[1], [0], [0], [1], [0, 0, 1, 1], [], []>} : vector<2x64xf32>, vector<64x256xf32>, vector<2x256xf32> -> vector<2x256xf32>
    %139 = arith.addf %137, %138 : vector<2x256xf32>
    %140 = arith.addf %139, %12 : vector<2x256xf32>
    %141 = vector.extract_strided_slice %140 {offsets = [0, 0], sizes = [2, 128], strides = [1, 1]} : vector<2x256xf32> to vector<2x128xf32>
    %142 = arith.negf %141 : vector<2x128xf32>
    %143 = math.exp %142 : vector<2x128xf32>
    %cst_37 = arith.constant 1.000000e+00 : f32
    %144 = vector.broadcast %cst_37 : f32 to vector<2x128xf32>
    %145 = arith.addf %144, %143 : vector<2x128xf32>
    %146 = arith.divf %144, %145 : vector<2x128xf32>
    %147 = vector.extract_strided_slice %146 {offsets = [0, 0], sizes = [2, 64], strides = [1, 1]} : vector<2x128xf32> to vector<2x64xf32>
    %148 = vector.extract_strided_slice %146 {offsets = [0, 64], sizes = [2, 64], strides = [1, 1]} : vector<2x128xf32> to vector<2x64xf32>
    %149 = vector.extract_strided_slice %140 {offsets = [0, 128], sizes = [2, 64], strides = [1, 1]} : vector<2x256xf32> to vector<2x64xf32>
    %150 = vector.extract_strided_slice %140 {offsets = [0, 192], sizes = [2, 64], strides = [1, 1]} : vector<2x256xf32> to vector<2x64xf32>
    %151 = arith.mulf %147, %150 : vector<2x64xf32>
    %152 = arith.addf %149, %151 : vector<2x64xf32>
    %153 = math.tanh %152 : vector<2x64xf32>
    %cst_38 = arith.constant 1.000000e+00 : f32
    %154 = vector.broadcast %cst_38 : f32 to vector<2x64xf32>
    %155 = arith.subf %154, %148 : vector<2x64xf32>
    %156 = arith.mulf %155, %153 : vector<2x64xf32>
    %157 = arith.mulf %148, %110 : vector<2x64xf32>
    %158 = arith.addf %156, %157 : vector<2x64xf32>
    %c3 = arith.constant 3 : index
    %c0_39 = arith.constant 0 : index
    %c0_40 = arith.constant 0 : index
    %159 = vector.load %arg0[%c3, %c0_39, %c0_40] : memref<8x2x10xf32, #tpu.memory_space<vmem>>, vector<1x2x10xf32>
    %160 = vector.shape_cast %159 : vector<1x2x10xf32> to vector<2x10xf32>
    %cst_41 = arith.constant dense<0.000000e+00> : vector<2x192xf32>
    %161 = tpu.matmul %160, %0, %cst_41 {dimension_numbers = #tpu.dot_dimension_numbers<[1], [0], [0], [1], [0, 0, 1, 1], [], []>} : vector<2x10xf32>, vector<10x192xf32>, vector<2x192xf32> -> vector<2x192xf32>
    %162 = arith.addf %161, %8 : vector<2x192xf32>
    %cst_42 = arith.constant dense<0.000000e+00> : vector<2x192xf32>
    %163 = tpu.matmul %136, %3, %cst_42 {dimension_numbers = #tpu.dot_dimension_numbers<[1], [0], [0], [1], [0, 0, 1, 1], [], []>} : vector<2x64xf32>, vector<64x192xf32>, vector<2x192xf32> -> vector<2x192xf32>
    %164 = vector.extract_strided_slice %162 {offsets = [0, 0], sizes = [2, 128], strides = [1, 1]} : vector<2x192xf32> to vector<2x128xf32>
    %165 = vector.extract_strided_slice %163 {offsets = [0, 0], sizes = [2, 128], strides = [1, 1]} : vector<2x192xf32> to vector<2x128xf32>
    %166 = arith.addf %164, %165 : vector<2x128xf32>
    %167 = arith.negf %166 : vector<2x128xf32>
    %168 = math.exp %167 : vector<2x128xf32>
    %cst_43 = arith.constant 1.000000e+00 : f32
    %169 = vector.broadcast %cst_43 : f32 to vector<2x128xf32>
    %170 = arith.addf %169, %168 : vector<2x128xf32>
    %171 = arith.divf %169, %170 : vector<2x128xf32>
    %172 = vector.extract_strided_slice %171 {offsets = [0, 0], sizes = [2, 64], strides = [1, 1]} : vector<2x128xf32> to vector<2x64xf32>
    %173 = vector.extract_strided_slice %171 {offsets = [0, 64], sizes = [2, 64], strides = [1, 1]} : vector<2x128xf32> to vector<2x64xf32>
    %174 = vector.extract_strided_slice %162 {offsets = [0, 128], sizes = [2, 64], strides = [1, 1]} : vector<2x192xf32> to vector<2x64xf32>
    %175 = vector.extract_strided_slice %163 {offsets = [0, 128], sizes = [2, 64], strides = [1, 1]} : vector<2x192xf32> to vector<2x64xf32>
    %176 = arith.addf %175, %10 : vector<2x64xf32>
    %177 = arith.mulf %172, %176 : vector<2x64xf32>
    %178 = arith.addf %174, %177 : vector<2x64xf32>
    %179 = math.tanh %178 : vector<2x64xf32>
    %cst_44 = arith.constant 1.000000e+00 : f32
    %180 = vector.broadcast %cst_44 : f32 to vector<2x64xf32>
    %181 = arith.subf %180, %173 : vector<2x64xf32>
    %182 = arith.mulf %181, %179 : vector<2x64xf32>
    %183 = arith.mulf %173, %136 : vector<2x64xf32>
    %184 = arith.addf %182, %183 : vector<2x64xf32>
    %cst_45 = arith.constant dense<0.000000e+00> : vector<2x256xf32>
    %185 = tpu.matmul %184, %4, %cst_45 {dimension_numbers = #tpu.dot_dimension_numbers<[1], [0], [0], [1], [0, 0, 1, 1], [], []>} : vector<2x64xf32>, vector<64x256xf32>, vector<2x256xf32> -> vector<2x256xf32>
    %cst_46 = arith.constant dense<0.000000e+00> : vector<2x256xf32>
    %186 = tpu.matmul %158, %5, %cst_46 {dimension_numbers = #tpu.dot_dimension_numbers<[1], [0], [0], [1], [0, 0, 1, 1], [], []>} : vector<2x64xf32>, vector<64x256xf32>, vector<2x256xf32> -> vector<2x256xf32>
    %187 = arith.addf %185, %186 : vector<2x256xf32>
    %188 = arith.addf %187, %12 : vector<2x256xf32>
    %189 = vector.extract_strided_slice %188 {offsets = [0, 0], sizes = [2, 128], strides = [1, 1]} : vector<2x256xf32> to vector<2x128xf32>
    %190 = arith.negf %189 : vector<2x128xf32>
    %191 = math.exp %190 : vector<2x128xf32>
    %cst_47 = arith.constant 1.000000e+00 : f32
    %192 = vector.broadcast %cst_47 : f32 to vector<2x128xf32>
    %193 = arith.addf %192, %191 : vector<2x128xf32>
    %194 = arith.divf %192, %193 : vector<2x128xf32>
    %195 = vector.extract_strided_slice %194 {offsets = [0, 0], sizes = [2, 64], strides = [1, 1]} : vector<2x128xf32> to vector<2x64xf32>
    %196 = vector.extract_strided_slice %194 {offsets = [0, 64], sizes = [2, 64], strides = [1, 1]} : vector<2x128xf32> to vector<2x64xf32>
    %197 = vector.extract_strided_slice %188 {offsets = [0, 128], sizes = [2, 64], strides = [1, 1]} : vector<2x256xf32> to vector<2x64xf32>
    %198 = vector.extract_strided_slice %188 {offsets = [0, 192], sizes = [2, 64], strides = [1, 1]} : vector<2x256xf32> to vector<2x64xf32>
    %199 = arith.mulf %195, %198 : vector<2x64xf32>
    %200 = arith.addf %197, %199 : vector<2x64xf32>
    %201 = math.tanh %200 : vector<2x64xf32>
    %cst_48 = arith.constant 1.000000e+00 : f32
    %202 = vector.broadcast %cst_48 : f32 to vector<2x64xf32>
    %203 = arith.subf %202, %196 : vector<2x64xf32>
    %204 = arith.mulf %203, %201 : vector<2x64xf32>
    %205 = arith.mulf %196, %158 : vector<2x64xf32>
    %206 = arith.addf %204, %205 : vector<2x64xf32>
    %c4 = arith.constant 4 : index
    %c0_49 = arith.constant 0 : index
    %c0_50 = arith.constant 0 : index
    %207 = vector.load %arg0[%c4, %c0_49, %c0_50] : memref<8x2x10xf32, #tpu.memory_space<vmem>>, vector<1x2x10xf32>
    %208 = vector.shape_cast %207 : vector<1x2x10xf32> to vector<2x10xf32>
    %cst_51 = arith.constant dense<0.000000e+00> : vector<2x192xf32>
    %209 = tpu.matmul %208, %0, %cst_51 {dimension_numbers = #tpu.dot_dimension_numbers<[1], [0], [0], [1], [0, 0, 1, 1], [], []>} : vector<2x10xf32>, vector<10x192xf32>, vector<2x192xf32> -> vector<2x192xf32>
    %210 = arith.addf %209, %8 : vector<2x192xf32>
    %cst_52 = arith.constant dense<0.000000e+00> : vector<2x192xf32>
    %211 = tpu.matmul %184, %3, %cst_52 {dimension_numbers = #tpu.dot_dimension_numbers<[1], [0], [0], [1], [0, 0, 1, 1], [], []>} : vector<2x64xf32>, vector<64x192xf32>, vector<2x192xf32> -> vector<2x192xf32>
    %212 = vector.extract_strided_slice %210 {offsets = [0, 0], sizes = [2, 128], strides = [1, 1]} : vector<2x192xf32> to vector<2x128xf32>
    %213 = vector.extract_strided_slice %211 {offsets = [0, 0], sizes = [2, 128], strides = [1, 1]} : vector<2x192xf32> to vector<2x128xf32>
    %214 = arith.addf %212, %213 : vector<2x128xf32>
    %215 = arith.negf %214 : vector<2x128xf32>
    %216 = math.exp %215 : vector<2x128xf32>
    %cst_53 = arith.constant 1.000000e+00 : f32
    %217 = vector.broadcast %cst_53 : f32 to vector<2x128xf32>
    %218 = arith.addf %217, %216 : vector<2x128xf32>
    %219 = arith.divf %217, %218 : vector<2x128xf32>
    %220 = vector.extract_strided_slice %219 {offsets = [0, 0], sizes = [2, 64], strides = [1, 1]} : vector<2x128xf32> to vector<2x64xf32>
    %221 = vector.extract_strided_slice %219 {offsets = [0, 64], sizes = [2, 64], strides = [1, 1]} : vector<2x128xf32> to vector<2x64xf32>
    %222 = vector.extract_strided_slice %210 {offsets = [0, 128], sizes = [2, 64], strides = [1, 1]} : vector<2x192xf32> to vector<2x64xf32>
    %223 = vector.extract_strided_slice %211 {offsets = [0, 128], sizes = [2, 64], strides = [1, 1]} : vector<2x192xf32> to vector<2x64xf32>
    %224 = arith.addf %223, %10 : vector<2x64xf32>
    %225 = arith.mulf %220, %224 : vector<2x64xf32>
    %226 = arith.addf %222, %225 : vector<2x64xf32>
    %227 = math.tanh %226 : vector<2x64xf32>
    %cst_54 = arith.constant 1.000000e+00 : f32
    %228 = vector.broadcast %cst_54 : f32 to vector<2x64xf32>
    %229 = arith.subf %228, %221 : vector<2x64xf32>
    %230 = arith.mulf %229, %227 : vector<2x64xf32>
    %231 = arith.mulf %221, %184 : vector<2x64xf32>
    %232 = arith.addf %230, %231 : vector<2x64xf32>
    %cst_55 = arith.constant dense<0.000000e+00> : vector<2x256xf32>
    %233 = tpu.matmul %232, %4, %cst_55 {dimension_numbers = #tpu.dot_dimension_numbers<[1], [0], [0], [1], [0, 0, 1, 1], [], []>} : vector<2x64xf32>, vector<64x256xf32>, vector<2x256xf32> -> vector<2x256xf32>
    %cst_56 = arith.constant dense<0.000000e+00> : vector<2x256xf32>
    %234 = tpu.matmul %206, %5, %cst_56 {dimension_numbers = #tpu.dot_dimension_numbers<[1], [0], [0], [1], [0, 0, 1, 1], [], []>} : vector<2x64xf32>, vector<64x256xf32>, vector<2x256xf32> -> vector<2x256xf32>
    %235 = arith.addf %233, %234 : vector<2x256xf32>
    %236 = arith.addf %235, %12 : vector<2x256xf32>
    %237 = vector.extract_strided_slice %236 {offsets = [0, 0], sizes = [2, 128], strides = [1, 1]} : vector<2x256xf32> to vector<2x128xf32>
    %238 = arith.negf %237 : vector<2x128xf32>
    %239 = math.exp %238 : vector<2x128xf32>
    %cst_57 = arith.constant 1.000000e+00 : f32
    %240 = vector.broadcast %cst_57 : f32 to vector<2x128xf32>
    %241 = arith.addf %240, %239 : vector<2x128xf32>
    %242 = arith.divf %240, %241 : vector<2x128xf32>
    %243 = vector.extract_strided_slice %242 {offsets = [0, 0], sizes = [2, 64], strides = [1, 1]} : vector<2x128xf32> to vector<2x64xf32>
    %244 = vector.extract_strided_slice %242 {offsets = [0, 64], sizes = [2, 64], strides = [1, 1]} : vector<2x128xf32> to vector<2x64xf32>
    %245 = vector.extract_strided_slice %236 {offsets = [0, 128], sizes = [2, 64], strides = [1, 1]} : vector<2x256xf32> to vector<2x64xf32>
    %246 = vector.extract_strided_slice %236 {offsets = [0, 192], sizes = [2, 64], strides = [1, 1]} : vector<2x256xf32> to vector<2x64xf32>
    %247 = arith.mulf %243, %246 : vector<2x64xf32>
    %248 = arith.addf %245, %247 : vector<2x64xf32>
    %249 = math.tanh %248 : vector<2x64xf32>
    %cst_58 = arith.constant 1.000000e+00 : f32
    %250 = vector.broadcast %cst_58 : f32 to vector<2x64xf32>
    %251 = arith.subf %250, %244 : vector<2x64xf32>
    %252 = arith.mulf %251, %249 : vector<2x64xf32>
    %253 = arith.mulf %244, %206 : vector<2x64xf32>
    %254 = arith.addf %252, %253 : vector<2x64xf32>
    %c5 = arith.constant 5 : index
    %c0_59 = arith.constant 0 : index
    %c0_60 = arith.constant 0 : index
    %255 = vector.load %arg0[%c5, %c0_59, %c0_60] : memref<8x2x10xf32, #tpu.memory_space<vmem>>, vector<1x2x10xf32>
    %256 = vector.shape_cast %255 : vector<1x2x10xf32> to vector<2x10xf32>
    %cst_61 = arith.constant dense<0.000000e+00> : vector<2x192xf32>
    %257 = tpu.matmul %256, %0, %cst_61 {dimension_numbers = #tpu.dot_dimension_numbers<[1], [0], [0], [1], [0, 0, 1, 1], [], []>} : vector<2x10xf32>, vector<10x192xf32>, vector<2x192xf32> -> vector<2x192xf32>
    %258 = arith.addf %257, %8 : vector<2x192xf32>
    %cst_62 = arith.constant dense<0.000000e+00> : vector<2x192xf32>
    %259 = tpu.matmul %232, %3, %cst_62 {dimension_numbers = #tpu.dot_dimension_numbers<[1], [0], [0], [1], [0, 0, 1, 1], [], []>} : vector<2x64xf32>, vector<64x192xf32>, vector<2x192xf32> -> vector<2x192xf32>
    %260 = vector.extract_strided_slice %258 {offsets = [0, 0], sizes = [2, 128], strides = [1, 1]} : vector<2x192xf32> to vector<2x128xf32>
    %261 = vector.extract_strided_slice %259 {offsets = [0, 0], sizes = [2, 128], strides = [1, 1]} : vector<2x192xf32> to vector<2x128xf32>
    %262 = arith.addf %260, %261 : vector<2x128xf32>
    %263 = arith.negf %262 : vector<2x128xf32>
    %264 = math.exp %263 : vector<2x128xf32>
    %cst_63 = arith.constant 1.000000e+00 : f32
    %265 = vector.broadcast %cst_63 : f32 to vector<2x128xf32>
    %266 = arith.addf %265, %264 : vector<2x128xf32>
    %267 = arith.divf %265, %266 : vector<2x128xf32>
    %268 = vector.extract_strided_slice %267 {offsets = [0, 0], sizes = [2, 64], strides = [1, 1]} : vector<2x128xf32> to vector<2x64xf32>
    %269 = vector.extract_strided_slice %267 {offsets = [0, 64], sizes = [2, 64], strides = [1, 1]} : vector<2x128xf32> to vector<2x64xf32>
    %270 = vector.extract_strided_slice %258 {offsets = [0, 128], sizes = [2, 64], strides = [1, 1]} : vector<2x192xf32> to vector<2x64xf32>
    %271 = vector.extract_strided_slice %259 {offsets = [0, 128], sizes = [2, 64], strides = [1, 1]} : vector<2x192xf32> to vector<2x64xf32>
    %272 = arith.addf %271, %10 : vector<2x64xf32>
    %273 = arith.mulf %268, %272 : vector<2x64xf32>
    %274 = arith.addf %270, %273 : vector<2x64xf32>
    %275 = math.tanh %274 : vector<2x64xf32>
    %cst_64 = arith.constant 1.000000e+00 : f32
    %276 = vector.broadcast %cst_64 : f32 to vector<2x64xf32>
    %277 = arith.subf %276, %269 : vector<2x64xf32>
    %278 = arith.mulf %277, %275 : vector<2x64xf32>
    %279 = arith.mulf %269, %232 : vector<2x64xf32>
    %280 = arith.addf %278, %279 : vector<2x64xf32>
    %cst_65 = arith.constant dense<0.000000e+00> : vector<2x256xf32>
    %281 = tpu.matmul %280, %4, %cst_65 {dimension_numbers = #tpu.dot_dimension_numbers<[1], [0], [0], [1], [0, 0, 1, 1], [], []>} : vector<2x64xf32>, vector<64x256xf32>, vector<2x256xf32> -> vector<2x256xf32>
    %cst_66 = arith.constant dense<0.000000e+00> : vector<2x256xf32>
    %282 = tpu.matmul %254, %5, %cst_66 {dimension_numbers = #tpu.dot_dimension_numbers<[1], [0], [0], [1], [0, 0, 1, 1], [], []>} : vector<2x64xf32>, vector<64x256xf32>, vector<2x256xf32> -> vector<2x256xf32>
    %283 = arith.addf %281, %282 : vector<2x256xf32>
    %284 = arith.addf %283, %12 : vector<2x256xf32>
    %285 = vector.extract_strided_slice %284 {offsets = [0, 0], sizes = [2, 128], strides = [1, 1]} : vector<2x256xf32> to vector<2x128xf32>
    %286 = arith.negf %285 : vector<2x128xf32>
    %287 = math.exp %286 : vector<2x128xf32>
    %cst_67 = arith.constant 1.000000e+00 : f32
    %288 = vector.broadcast %cst_67 : f32 to vector<2x128xf32>
    %289 = arith.addf %288, %287 : vector<2x128xf32>
    %290 = arith.divf %288, %289 : vector<2x128xf32>
    %291 = vector.extract_strided_slice %290 {offsets = [0, 0], sizes = [2, 64], strides = [1, 1]} : vector<2x128xf32> to vector<2x64xf32>
    %292 = vector.extract_strided_slice %290 {offsets = [0, 64], sizes = [2, 64], strides = [1, 1]} : vector<2x128xf32> to vector<2x64xf32>
    %293 = vector.extract_strided_slice %284 {offsets = [0, 128], sizes = [2, 64], strides = [1, 1]} : vector<2x256xf32> to vector<2x64xf32>
    %294 = vector.extract_strided_slice %284 {offsets = [0, 192], sizes = [2, 64], strides = [1, 1]} : vector<2x256xf32> to vector<2x64xf32>
    %295 = arith.mulf %291, %294 : vector<2x64xf32>
    %296 = arith.addf %293, %295 : vector<2x64xf32>
    %297 = math.tanh %296 : vector<2x64xf32>
    %cst_68 = arith.constant 1.000000e+00 : f32
    %298 = vector.broadcast %cst_68 : f32 to vector<2x64xf32>
    %299 = arith.subf %298, %292 : vector<2x64xf32>
    %300 = arith.mulf %299, %297 : vector<2x64xf32>
    %301 = arith.mulf %292, %254 : vector<2x64xf32>
    %302 = arith.addf %300, %301 : vector<2x64xf32>
    %c6 = arith.constant 6 : index
    %c0_69 = arith.constant 0 : index
    %c0_70 = arith.constant 0 : index
    %303 = vector.load %arg0[%c6, %c0_69, %c0_70] : memref<8x2x10xf32, #tpu.memory_space<vmem>>, vector<1x2x10xf32>
    %304 = vector.shape_cast %303 : vector<1x2x10xf32> to vector<2x10xf32>
    %cst_71 = arith.constant dense<0.000000e+00> : vector<2x192xf32>
    %305 = tpu.matmul %304, %0, %cst_71 {dimension_numbers = #tpu.dot_dimension_numbers<[1], [0], [0], [1], [0, 0, 1, 1], [], []>} : vector<2x10xf32>, vector<10x192xf32>, vector<2x192xf32> -> vector<2x192xf32>
    %306 = arith.addf %305, %8 : vector<2x192xf32>
    %cst_72 = arith.constant dense<0.000000e+00> : vector<2x192xf32>
    %307 = tpu.matmul %280, %3, %cst_72 {dimension_numbers = #tpu.dot_dimension_numbers<[1], [0], [0], [1], [0, 0, 1, 1], [], []>} : vector<2x64xf32>, vector<64x192xf32>, vector<2x192xf32> -> vector<2x192xf32>
    %308 = vector.extract_strided_slice %306 {offsets = [0, 0], sizes = [2, 128], strides = [1, 1]} : vector<2x192xf32> to vector<2x128xf32>
    %309 = vector.extract_strided_slice %307 {offsets = [0, 0], sizes = [2, 128], strides = [1, 1]} : vector<2x192xf32> to vector<2x128xf32>
    %310 = arith.addf %308, %309 : vector<2x128xf32>
    %311 = arith.negf %310 : vector<2x128xf32>
    %312 = math.exp %311 : vector<2x128xf32>
    %cst_73 = arith.constant 1.000000e+00 : f32
    %313 = vector.broadcast %cst_73 : f32 to vector<2x128xf32>
    %314 = arith.addf %313, %312 : vector<2x128xf32>
    %315 = arith.divf %313, %314 : vector<2x128xf32>
    %316 = vector.extract_strided_slice %315 {offsets = [0, 0], sizes = [2, 64], strides = [1, 1]} : vector<2x128xf32> to vector<2x64xf32>
    %317 = vector.extract_strided_slice %315 {offsets = [0, 64], sizes = [2, 64], strides = [1, 1]} : vector<2x128xf32> to vector<2x64xf32>
    %318 = vector.extract_strided_slice %306 {offsets = [0, 128], sizes = [2, 64], strides = [1, 1]} : vector<2x192xf32> to vector<2x64xf32>
    %319 = vector.extract_strided_slice %307 {offsets = [0, 128], sizes = [2, 64], strides = [1, 1]} : vector<2x192xf32> to vector<2x64xf32>
    %320 = arith.addf %319, %10 : vector<2x64xf32>
    %321 = arith.mulf %316, %320 : vector<2x64xf32>
    %322 = arith.addf %318, %321 : vector<2x64xf32>
    %323 = math.tanh %322 : vector<2x64xf32>
    %cst_74 = arith.constant 1.000000e+00 : f32
    %324 = vector.broadcast %cst_74 : f32 to vector<2x64xf32>
    %325 = arith.subf %324, %317 : vector<2x64xf32>
    %326 = arith.mulf %325, %323 : vector<2x64xf32>
    %327 = arith.mulf %317, %280 : vector<2x64xf32>
    %328 = arith.addf %326, %327 : vector<2x64xf32>
    %cst_75 = arith.constant dense<0.000000e+00> : vector<2x256xf32>
    %329 = tpu.matmul %328, %4, %cst_75 {dimension_numbers = #tpu.dot_dimension_numbers<[1], [0], [0], [1], [0, 0, 1, 1], [], []>} : vector<2x64xf32>, vector<64x256xf32>, vector<2x256xf32> -> vector<2x256xf32>
    %cst_76 = arith.constant dense<0.000000e+00> : vector<2x256xf32>
    %330 = tpu.matmul %302, %5, %cst_76 {dimension_numbers = #tpu.dot_dimension_numbers<[1], [0], [0], [1], [0, 0, 1, 1], [], []>} : vector<2x64xf32>, vector<64x256xf32>, vector<2x256xf32> -> vector<2x256xf32>
    %331 = arith.addf %329, %330 : vector<2x256xf32>
    %332 = arith.addf %331, %12 : vector<2x256xf32>
    %333 = vector.extract_strided_slice %332 {offsets = [0, 0], sizes = [2, 128], strides = [1, 1]} : vector<2x256xf32> to vector<2x128xf32>
    %334 = arith.negf %333 : vector<2x128xf32>
    %335 = math.exp %334 : vector<2x128xf32>
    %cst_77 = arith.constant 1.000000e+00 : f32
    %336 = vector.broadcast %cst_77 : f32 to vector<2x128xf32>
    %337 = arith.addf %336, %335 : vector<2x128xf32>
    %338 = arith.divf %336, %337 : vector<2x128xf32>
    %339 = vector.extract_strided_slice %338 {offsets = [0, 0], sizes = [2, 64], strides = [1, 1]} : vector<2x128xf32> to vector<2x64xf32>
    %340 = vector.extract_strided_slice %338 {offsets = [0, 64], sizes = [2, 64], strides = [1, 1]} : vector<2x128xf32> to vector<2x64xf32>
    %341 = vector.extract_strided_slice %332 {offsets = [0, 128], sizes = [2, 64], strides = [1, 1]} : vector<2x256xf32> to vector<2x64xf32>
    %342 = vector.extract_strided_slice %332 {offsets = [0, 192], sizes = [2, 64], strides = [1, 1]} : vector<2x256xf32> to vector<2x64xf32>
    %343 = arith.mulf %339, %342 : vector<2x64xf32>
    %344 = arith.addf %341, %343 : vector<2x64xf32>
    %345 = math.tanh %344 : vector<2x64xf32>
    %cst_78 = arith.constant 1.000000e+00 : f32
    %346 = vector.broadcast %cst_78 : f32 to vector<2x64xf32>
    %347 = arith.subf %346, %340 : vector<2x64xf32>
    %348 = arith.mulf %347, %345 : vector<2x64xf32>
    %349 = arith.mulf %340, %302 : vector<2x64xf32>
    %350 = arith.addf %348, %349 : vector<2x64xf32>
    %c7 = arith.constant 7 : index
    %c0_79 = arith.constant 0 : index
    %c0_80 = arith.constant 0 : index
    %351 = vector.load %arg0[%c7, %c0_79, %c0_80] : memref<8x2x10xf32, #tpu.memory_space<vmem>>, vector<1x2x10xf32>
    %352 = vector.shape_cast %351 : vector<1x2x10xf32> to vector<2x10xf32>
    %cst_81 = arith.constant dense<0.000000e+00> : vector<2x192xf32>
    %353 = tpu.matmul %352, %0, %cst_81 {dimension_numbers = #tpu.dot_dimension_numbers<[1], [0], [0], [1], [0, 0, 1, 1], [], []>} : vector<2x10xf32>, vector<10x192xf32>, vector<2x192xf32> -> vector<2x192xf32>
    %354 = arith.addf %353, %8 : vector<2x192xf32>
    %cst_82 = arith.constant dense<0.000000e+00> : vector<2x192xf32>
    %355 = tpu.matmul %328, %3, %cst_82 {dimension_numbers = #tpu.dot_dimension_numbers<[1], [0], [0], [1], [0, 0, 1, 1], [], []>} : vector<2x64xf32>, vector<64x192xf32>, vector<2x192xf32> -> vector<2x192xf32>
    %356 = vector.extract_strided_slice %354 {offsets = [0, 0], sizes = [2, 128], strides = [1, 1]} : vector<2x192xf32> to vector<2x128xf32>
    %357 = vector.extract_strided_slice %355 {offsets = [0, 0], sizes = [2, 128], strides = [1, 1]} : vector<2x192xf32> to vector<2x128xf32>
    %358 = arith.addf %356, %357 : vector<2x128xf32>
    %359 = arith.negf %358 : vector<2x128xf32>
    %360 = math.exp %359 : vector<2x128xf32>
    %cst_83 = arith.constant 1.000000e+00 : f32
    %361 = vector.broadcast %cst_83 : f32 to vector<2x128xf32>
    %362 = arith.addf %361, %360 : vector<2x128xf32>
    %363 = arith.divf %361, %362 : vector<2x128xf32>
    %364 = vector.extract_strided_slice %363 {offsets = [0, 0], sizes = [2, 64], strides = [1, 1]} : vector<2x128xf32> to vector<2x64xf32>
    %365 = vector.extract_strided_slice %363 {offsets = [0, 64], sizes = [2, 64], strides = [1, 1]} : vector<2x128xf32> to vector<2x64xf32>
    %366 = vector.extract_strided_slice %354 {offsets = [0, 128], sizes = [2, 64], strides = [1, 1]} : vector<2x192xf32> to vector<2x64xf32>
    %367 = vector.extract_strided_slice %355 {offsets = [0, 128], sizes = [2, 64], strides = [1, 1]} : vector<2x192xf32> to vector<2x64xf32>
    %368 = arith.addf %367, %10 : vector<2x64xf32>
    %369 = arith.mulf %364, %368 : vector<2x64xf32>
    %370 = arith.addf %366, %369 : vector<2x64xf32>
    %371 = math.tanh %370 : vector<2x64xf32>
    %cst_84 = arith.constant 1.000000e+00 : f32
    %372 = vector.broadcast %cst_84 : f32 to vector<2x64xf32>
    %373 = arith.subf %372, %365 : vector<2x64xf32>
    %374 = arith.mulf %373, %371 : vector<2x64xf32>
    %375 = arith.mulf %365, %328 : vector<2x64xf32>
    %376 = arith.addf %374, %375 : vector<2x64xf32>
    %cst_85 = arith.constant dense<0.000000e+00> : vector<2x256xf32>
    %377 = tpu.matmul %376, %4, %cst_85 {dimension_numbers = #tpu.dot_dimension_numbers<[1], [0], [0], [1], [0, 0, 1, 1], [], []>} : vector<2x64xf32>, vector<64x256xf32>, vector<2x256xf32> -> vector<2x256xf32>
    %cst_86 = arith.constant dense<0.000000e+00> : vector<2x256xf32>
    %378 = tpu.matmul %350, %5, %cst_86 {dimension_numbers = #tpu.dot_dimension_numbers<[1], [0], [0], [1], [0, 0, 1, 1], [], []>} : vector<2x64xf32>, vector<64x256xf32>, vector<2x256xf32> -> vector<2x256xf32>
    %379 = arith.addf %377, %378 : vector<2x256xf32>
    %380 = arith.addf %379, %12 : vector<2x256xf32>
    %381 = vector.extract_strided_slice %380 {offsets = [0, 0], sizes = [2, 128], strides = [1, 1]} : vector<2x256xf32> to vector<2x128xf32>
    %382 = arith.negf %381 : vector<2x128xf32>
    %383 = math.exp %382 : vector<2x128xf32>
    %cst_87 = arith.constant 1.000000e+00 : f32
    %384 = vector.broadcast %cst_87 : f32 to vector<2x128xf32>
    %385 = arith.addf %384, %383 : vector<2x128xf32>
    %386 = arith.divf %384, %385 : vector<2x128xf32>
    %387 = vector.extract_strided_slice %386 {offsets = [0, 0], sizes = [2, 64], strides = [1, 1]} : vector<2x128xf32> to vector<2x64xf32>
    %388 = vector.extract_strided_slice %386 {offsets = [0, 64], sizes = [2, 64], strides = [1, 1]} : vector<2x128xf32> to vector<2x64xf32>
    %389 = vector.extract_strided_slice %380 {offsets = [0, 128], sizes = [2, 64], strides = [1, 1]} : vector<2x256xf32> to vector<2x64xf32>
    %390 = vector.extract_strided_slice %380 {offsets = [0, 192], sizes = [2, 64], strides = [1, 1]} : vector<2x256xf32> to vector<2x64xf32>
    %391 = arith.mulf %387, %390 : vector<2x64xf32>
    %392 = arith.addf %389, %391 : vector<2x64xf32>
    %393 = math.tanh %392 : vector<2x64xf32>
    %cst_88 = arith.constant 1.000000e+00 : f32
    %394 = vector.broadcast %cst_88 : f32 to vector<2x64xf32>
    %395 = arith.subf %394, %388 : vector<2x64xf32>
    %396 = arith.mulf %395, %393 : vector<2x64xf32>
    %397 = arith.mulf %388, %350 : vector<2x64xf32>
    %398 = arith.addf %396, %397 : vector<2x64xf32>
    %c0_89 = arith.constant 0 : index
    %c0_90 = arith.constant 0 : index
    %399 = vector.load %arg4[%c0_89, %c0_90] : memref<224x32xf32, #tpu.memory_space<vmem>>, vector<5x32xf32>
    %c8 = arith.constant 8 : index
    %c0_91 = arith.constant 0 : index
    %400 = vector.load %arg4[%c8, %c0_91] : memref<224x32xf32, #tpu.memory_space<vmem>>, vector<1x32xf32>
    %c16_92 = arith.constant 16 : index
    %c0_93 = arith.constant 0 : index
    %401 = vector.load %arg4[%c16_92, %c0_93] : memref<224x32xf32, #tpu.memory_space<vmem>>, vector<32x32xf32>
    %c48 = arith.constant 48 : index
    %c0_94 = arith.constant 0 : index
    %402 = vector.load %arg4[%c48, %c0_94] : memref<224x32xf32, #tpu.memory_space<vmem>>, vector<64x32xf32>
    %c112 = arith.constant 112 : index
    %c0_95 = arith.constant 0 : index
    %403 = vector.load %arg4[%c112, %c0_95] : memref<224x32xf32, #tpu.memory_space<vmem>>, vector<60x32xf32>
    %c176 = arith.constant 176 : index
    %c0_96 = arith.constant 0 : index
    %404 = vector.load %arg4[%c176, %c0_96] : memref<224x32xf32, #tpu.memory_space<vmem>>, vector<1x32xf32>
    %c184 = arith.constant 184 : index
    %c0_97 = arith.constant 0 : index
    %405 = vector.load %arg4[%c184, %c0_97] : memref<224x32xf32, #tpu.memory_space<vmem>>, vector<32x1xf32>
    %c216 = arith.constant 216 : index
    %c0_98 = arith.constant 0 : index
    %406 = vector.load %arg4[%c216, %c0_98] : memref<224x32xf32, #tpu.memory_space<vmem>>, vector<1x1xf32>
    %c0_99 = arith.constant 0 : index
    %c0_100 = arith.constant 0 : index
    %407 = vector.load %arg1[%c0_99, %c0_100] : memref<2x5xf32, #tpu.memory_space<vmem>>, vector<2x5xf32>
    %cst_101 = arith.constant dense<0.000000e+00> : vector<2x32xf32>
    %408 = tpu.matmul %407, %399, %cst_101 {dimension_numbers = #tpu.dot_dimension_numbers<[1], [0], [0], [1], [0, 0, 1, 1], [], []>} : vector<2x5xf32>, vector<5x32xf32>, vector<2x32xf32> -> vector<2x32xf32>
    %409 = vector.broadcast %400 : vector<1x32xf32> to vector<2x32xf32>
    %410 = arith.addf %408, %409 : vector<2x32xf32>
    %cst_102 = arith.constant 0.000000e+00 : f32
    %411 = vector.broadcast %cst_102 : f32 to vector<2x32xf32>
    %412 = arith.maximumf %410, %411 : vector<2x32xf32>
    %cst_103 = arith.constant dense<0.000000e+00> : vector<2x32xf32>
    %413 = tpu.matmul %412, %401, %cst_103 {dimension_numbers = #tpu.dot_dimension_numbers<[1], [0], [0], [1], [0, 0, 1, 1], [], []>} : vector<2x32xf32>, vector<32x32xf32>, vector<2x32xf32> -> vector<2x32xf32>
    %cst_104 = arith.constant dense<0.000000e+00> : vector<2x32xf32>
    %414 = tpu.matmul %398, %402, %cst_104 {dimension_numbers = #tpu.dot_dimension_numbers<[1], [0], [0], [1], [0, 0, 1, 1], [], []>} : vector<2x64xf32>, vector<64x32xf32>, vector<2x32xf32> -> vector<2x32xf32>
    %415 = arith.addf %413, %414 : vector<2x32xf32>
    %c0_105 = arith.constant 0 : index
    %c0_106 = arith.constant 0 : index
    %416 = vector.load %arg2[%c0_105, %c0_106] : memref<2x60xf32, #tpu.memory_space<vmem>>, vector<2x60xf32>
    %cst_107 = arith.constant dense<0.000000e+00> : vector<2x32xf32>
    %417 = tpu.matmul %416, %403, %cst_107 {dimension_numbers = #tpu.dot_dimension_numbers<[1], [0], [0], [1], [0, 0, 1, 1], [], []>} : vector<2x60xf32>, vector<60x32xf32>, vector<2x32xf32> -> vector<2x32xf32>
    %418 = arith.addf %415, %417 : vector<2x32xf32>
    %419 = vector.broadcast %404 : vector<1x32xf32> to vector<2x32xf32>
    %420 = arith.addf %418, %419 : vector<2x32xf32>
    %cst_108 = arith.constant 0.000000e+00 : f32
    %421 = vector.broadcast %cst_108 : f32 to vector<2x32xf32>
    %422 = arith.maximumf %420, %421 : vector<2x32xf32>
    %cst_109 = arith.constant dense<0.000000e+00> : vector<2x1xf32>
    %423 = tpu.matmul %422, %405, %cst_109 {dimension_numbers = #tpu.dot_dimension_numbers<[1], [0], [0], [1], [0, 0, 1, 1], [], []>} : vector<2x32xf32>, vector<32x1xf32>, vector<2x1xf32> -> vector<2x1xf32>
    %424 = vector.broadcast %406 : vector<1x1xf32> to vector<2x1xf32>
    %425 = arith.addf %423, %424 : vector<2x1xf32>
    %c0_110 = arith.constant 0 : index
    %c0_111 = arith.constant 0 : index
    %426 = vector.load %arg5[%c0_110, %c0_111] : memref<2x1xf32, #tpu.memory_space<vmem>>, vector<2x1xf32>
    tpu.vector_store %arg5[%c0_110, %c0_111], %425 {strides = array<i32>} : memref<2x1xf32, #tpu.memory_space<vmem>>, vector<2x1xf32>,
    return
  }
}

</mosaic_0001>

<llo_original>
// kernel: yield_model_forward.1
$region0: #{yield_model_forward.1}
  #allocation0 [shape = 'u32[]', space=smem, size = 0x4, offset = 0x4, fixed_abs, tag = 'smem constant byte address 0x4 - core index']
  #allocation1 [shape = 'u32[144,128]{1,0:T(1,128)}', space=vmem, size = 0x12000, scoped, tag = 'internal scratch']
  %s0 = inlined_call_operand.vmem [shape: f32[8,2,10], index: 0, kind: input, shape index: {}]
  %s1 = inlined_call_operand.vmem [shape: f32[2,5], index: 1, kind: input, shape index: {}]
  %s2 = inlined_call_operand.vmem [shape: f32[2,60], index: 2, kind: input, shape index: {}]
  %s3 = inlined_call_operand.vmem [shape: f32[232,256], index: 3, kind: input, shape index: {}]
  %s4 = inlined_call_operand.vmem [shape: f32[224,32], index: 4, kind: input, shape index: {}]
  %s5 = inlined_call_operand.vmem [shape: f32[2,1], index: 5, kind: output, shape index: {}]
  %s6 = sld [smem:[#allocation0]]
  $region30: #{yield_model_forward.1} parent=0
    _
  %s8 = ssub.s32 1, %s6
  %s9 = scalar_select 0, %s8, %s6
  // Predicated region
  $region2: #{yield_model_forward.1} parent=0 // pred_check
    _
  $region3: #{yield_model_forward.1} parent=0 // pred_check_branch
    %11 = sbr.rel (0) target = $region5
  $region4: #{yield_model_forward.1} parent=0 // pred_region
    _
  $region5: #{yield_model_forward.1} parent=0 // pred_fallthru
    _
  // Predicated region
  $region6: #{yield_model_forward.1} parent=0 // pred_check
    _
  $region7: #{yield_model_forward.1} parent=0 // pred_check_branch
    %13 = sbr.rel (0) target = $region9
  $region8: #{yield_model_forward.1} parent=0 // pred_region
    _
  $region9: #{yield_model_forward.1} parent=0 // pred_fallthru
    _
  // Predicated region
  $region10: #{yield_model_forward.1} parent=0 // pred_check
    _
  $region11: #{yield_model_forward.1} parent=0 // pred_check_branch
    %15 = sbr.rel (0) target = $region13
  $region12: #{yield_model_forward.1} parent=0 // pred_region
    _
  $region13: #{yield_model_forward.1} parent=0 // pred_fallthru
    _
  // Predicated region
  $region14: #{yield_model_forward.1} parent=0 // pred_check
    _
  $region15: #{yield_model_forward.1} parent=0 // pred_check_branch
    %17 = sbr.rel (0) target = $region17
  $region16: #{yield_model_forward.1} parent=0 // pred_region
    _
  $region17: #{yield_model_forward.1} parent=0 // pred_fallthru
    _
  // Predicated region
  $region18: #{yield_model_forward.1} parent=0 // pred_check
    _
  $region19: #{yield_model_forward.1} parent=0 // pred_check_branch
    %19 = sbr.rel (0) target = $region21
  $region20: #{yield_model_forward.1} parent=0 // pred_region
    _
  $region21: #{yield_model_forward.1} parent=0 // pred_fallthru
    _
  %v20 = vld [vmem:[%s3] sm:$0xff]
  %v21 = vld [vmem:[%s3 + $0x8] sm:$0xff]
  %v22 = vld [vmem:[%s3 + $0x10] sm:$0x3]
  %v23 = vld [vmem:[%s3 + $0x18] sm:$0x3]
  %s24 = scalar_lea.vmem %s3, 32
  %v25 = vld [vmem:[%s24] ss:$8 sm:$0x3]
  %v26 = vld [vmem:[%s3 + $0x30] ss:$0 sm:$0xff]
  %v27 = vld [vmem:[%s3 + $0x40] sm:$0xff]
  %v28 = vld [vmem:[%s3 + $0x48] sm:$0xff]
  %v29 = vld [vmem:[%s3 + $0x50] sm:$0xff]
  %v30 = vld [vmem:[%s3 + $0x58] sm:$0xff]
  %v31 = vld [vmem:[%s3 + $0x60] sm:$0xff]
  %v32 = vld [vmem:[%s3 + $0x68] sm:$0xff]
  %v33 = vld [vmem:[%s3 + $0x70] sm:$0xff]
  %v34 = vld [vmem:[%s3 + $0x78] sm:$0xff]
  %v35 = vld [vmem:[%s3 + $0x80] sm:$0xff]
  %v36 = vld [vmem:[%s3 + $0x88] sm:$0xff]
  %v37 = vld [vmem:[%s3 + $0x90] sm:$0xff]
  %v38 = vld [vmem:[%s3 + $0x98] sm:$0xff]
  %v39 = vld [vmem:[%s3 + $0xa0] sm:$0xff]
  %v40 = vld [vmem:[%s3 + $0xa8] sm:$0xff]
  %v41 = vld [vmem:[%s3 + $0xb0] sm:$0xff]
  %v42 = vld [vmem:[%s3 + $0xb8] sm:$0xff]
  %v43 = vld [vmem:[%s3 + $0xc0] sm:$0xff]
  %v44 = vld [vmem:[%s3 + $0xc8] sm:$0xff]
  %v45 = vld [vmem:[%s3 + $0xd0] sm:$0xff]
  %v46 = vld [vmem:[%s3 + $0xd8] sm:$0xff]
  %v47 = vld [vmem:[%s3 + $0xe0] sm:$0xff]
  %v48 = vld [vmem:[%s3 + $0xe8] sm:$0xff]
  %v49 = vld [vmem:[%s3 + $0xf0] sm:$0xff]
  %v50 = vld [vmem:[%s3 + $0xf8] sm:$0xff]
  %v51 = vld [vmem:[%s3 + $0x100] sm:$0xff]
  %v52 = vld [vmem:[%s3 + $0x108] sm:$0xff]
  %v53 = vld [vmem:[%s3 + $0x110] sm:$0xff]
  %v54 = vld [vmem:[%s3 + $0x118] sm:$0xff]
  %v55 = vld [vmem:[%s3 + $0x120] sm:$0xff]
  %v56 = vld [vmem:[%s3 + $0x128] sm:$0xff]
  %v57 = vld [vmem:[%s3 + $0x130] sm:$0xff]
  %v58 = vld [vmem:[%s3 + $0x138] sm:$0xff]
  %v59 = vld [vmem:[%s3 + $0x140] sm:$0xff]
  %v60 = vld [vmem:[%s3 + $0x148] sm:$0xff]
  %v61 = vld [vmem:[%s3 + $0x150] sm:$0xff]
  %v62 = vld [vmem:[%s3 + $0x158] sm:$0xff]
  %v63 = vld [vmem:[%s3 + $0x160] sm:$0xff]
  %v64 = vld [vmem:[%s3 + $0x168] sm:$0xff]
  %v65 = vld [vmem:[%s3 + $0x170] sm:$0xff]
  %v66 = vld [vmem:[%s3 + $0x178] sm:$0xff]
  %v67 = vld [vmem:[%s3 + $0x180] sm:$0xff]
  %v68 = vld [vmem:[%s3 + $0x188] sm:$0xff]
  %v69 = vld [vmem:[%s3 + $0x190] sm:$0xff]
  %v70 = vld [vmem:[%s3 + $0x198] sm:$0xff]
  %v71 = vld [vmem:[%s3 + $0x1a0] sm:$0xff]
  %v72 = vld [vmem:[%s3 + $0x1a8] sm:$0xff]
  %v73 = vld [vmem:[%s3 + $0x1b0] sm:$0xff]
  %v74 = vld [vmem:[%s3 + $0x1b8] sm:$0xff]
  %s75 = scalar_lea.vmem %s3, 448
  %v76 = vld [vmem:[%s75] ss:$8 sm:$0x3]
  %v78 = vlaneseq
  %v79 = vshrl.u32 %v78, 7
  %v80 = vsub.s32 0, %v79
  %v81 = vrot.slane %v25, %v80
  %v82 = vlaneseq
  %v83 = vshrl.u32 %v82, 7
  %v84 = vsub.s32 1, %v83
  %v85 = vrot.slane %v25, %v84
  %v89 = vlaneseq
  %v90 = vshrl.u32 %v89, 7
  %v91 = vsub.s32 0, %v90
  %v92 = vrot.slane %v76, %v91
  %v93 = vlaneseq
  %v94 = vshrl.u32 %v93, 7
  %v95 = vsub.s32 1, %v94
  %v96 = vrot.slane %v76, %v95
  %v99 = vld [vmem:[%s0] sm:$0x3]
  %vm100 = vcmask 80896
  %v102 = vsel %vm100, %v99, 0
  %vm104 = vcmask 1041408
  %v106 = vsel %vm104, %v22, 0
  %v109 = vsel %vm104, %v23, 0
  %111 = vmatprep.subr.mxu0 0.0
  %112 = vmatpush1.msra.mxu0 0.0
  %113 = vmatprep.subr.mxu0 0.0
  %114 = vmatpush1.msra.mxu0 0.0
  %115 = vmatprep.subr.mxu0 0.0
  %116 = vmatpush1.msra.mxu0 0.0
  %117 = vmatprep.subr.mxu0 0.0
  %118 = vmatpush1.msra.mxu0 0.0
  %119 = vmatprep.subr.mxu0 0.0
  %120 = vmatpush1.msra.mxu0 0.0
  %121 = vmatprep.subr.mxu0 0.0
  %122 = vmatpush1.msra.mxu0 0.0
  %123 = vmatprep.subr.mxu0 0.0
  %124 = vmatpush1.msra.mxu0 0.0
  %125 = vmatprep.subr.mxu0 0.0
  %126 = vmatpush1.msra.mxu0 0.0
  %127 = vmatprep.subr.mxu0 0.0
  %128 = vmatpush1.msra.mxu0 0.0
  %129 = vmatprep.subr.mxu0 0.0
  %130 = vmatpush1.msra.mxu0 0.0
  %131 = vmatprep.subr.mxu0 0.0
  %132 = vmatpush1.msra.mxu0 0.0
  %133 = vmatprep.subr.mxu0 0.0
  %134 = vmatpush1.msra.mxu0 0.0
  %135 = vmatprep.subr.mxu0 0.0
  %136 = vmatpush1.msra.mxu0 0.0
  %137 = vmatprep.subr.mxu0 0.0
  %138 = vmatpush1.msra.mxu0 0.0
  %139 = vmatprep.subr.mxu0 %v109
  %140 = vmatpush1.msra.mxu0 %v106
  %141 = vmatprep.subr.mxu0 %v21
  %142 = vmatpush1.msra.mxu0 %v20
  %143 = vmatprep.subr.mxu0 0.0
  %144 = vmatpush2.msra.mxu0 0.0
  %145 = vmatprep.subr.mxu0 0.0
  %146 = vmatpush2.msra.mxu0 0.0
  %147 = vmatprep.subr.mxu0 0.0
  %148 = vmatpush2.msra.mxu0 0.0
  %149 = vmatprep.subr.mxu0 0.0
  %150 = vmatpush2.msra.mxu0 0.0
  %151 = vmatprep.subr.mxu0 0.0
  %152 = vmatpush2.msra.mxu0 0.0
  %153 = vmatprep.subr.mxu0 0.0
  %154 = vmatpush2.msra.mxu0 0.0
  %155 = vmatprep.subr.mxu0 0.0
  %156 = vmatpush2.msra.mxu0 0.0
  %157 = vmatprep.subr.mxu0 0.0
  %158 = vmatpush2.msra.mxu0 0.0
  %159 = vmatprep.subr.mxu0 0.0
  %160 = vmatpush2.msra.mxu0 0.0
  %161 = vmatprep.subr.mxu0 0.0
  %162 = vmatpush2.msra.mxu0 0.0
  %163 = vmatprep.subr.mxu0 0.0
  %164 = vmatpush2.msra.mxu0 0.0
  %165 = vmatprep.subr.mxu0 0.0
  %166 = vmatpush2.msra.mxu0 0.0
  %167 = vmatprep.subr.mxu0 0.0
  %168 = vmatpush2.msra.mxu0 0.0
  %169 = vmatprep.subr.mxu0 0.0
  %170 = vmatpush2.msra.mxu0 0.0
  %171 = vmatprep.subr.mxu0 0.0
  %172 = vmatpush2.msra.mxu0 0.0
  %173 = vmatprep.subr.mxu0 0.0
  %174 = vmatpush2.msra.mxu0 0.0
  %175 = vmatprep.mubr.f32.mxu0 0.0
  %176 = vmatmul.mubr.f32.gmra.mxu0 %v102
  %v177 = vpop.f32.mrf.mxu0
  %v178 = vadd.f32 %v81, %v177
  %v179 = vpop.f32.mrf.mxu0
  %v180 = vadd.f32 %v85, %v179
  %181 = vdwg.mxu0
  %vm182 = vcmask 523264
  %v184 = vsel %vm182, 0.0, 0
  %186 = vmatprep.subr.mxu0 0.0
  %187 = vmatpush1.msra.mxu0 0.0
  %188 = vmatprep.subr.mxu0 0.0
  %189 = vmatpush1.msra.mxu0 0.0
  %190 = vmatprep.subr.mxu0 0.0
  %191 = vmatpush1.msra.mxu0 0.0
  %192 = vmatprep.subr.mxu0 0.0
  %193 = vmatpush1.msra.mxu0 0.0
  %194 = vmatprep.subr.mxu0 0.0
  %195 = vmatpush1.msra.mxu0 0.0
  %196 = vmatprep.subr.mxu0 0.0
  %197 = vmatpush1.msra.mxu0 0.0
  %198 = vmatprep.subr.mxu0 0.0
  %199 = vmatpush1.msra.mxu0 0.0
  %200 = vmatprep.subr.mxu0 0.0
  %201 = vmatpush1.msra.mxu0 0.0
  %202 = vmatprep.subr.mxu0 %v42
  %203 = vmatpush1.msra.mxu0 %v41
  %204 = vmatprep.subr.mxu0 %v40
  %205 = vmatpush1.msra.mxu0 %v39
  %206 = vmatprep.subr.mxu0 %v38
  %207 = vmatpush1.msra.mxu0 %v37
  %208 = vmatprep.subr.mxu0 %v36
  %209 = vmatpush1.msra.mxu0 %v35
  %210 = vmatprep.subr.mxu0 %v34
  %211 = vmatpush1.msra.mxu0 %v33
  %212 = vmatprep.subr.mxu0 %v32
  %213 = vmatpush1.msra.mxu0 %v31
  %214 = vmatprep.subr.mxu0 %v30
  %215 = vmatpush1.msra.mxu0 %v29
  %216 = vmatprep.subr.mxu0 %v28
  %217 = vmatpush1.msra.mxu0 %v27
  %218 = vmatprep.subr.mxu0 0.0
  %219 = vmatpush2.msra.mxu0 0.0
  %220 = vmatprep.subr.mxu0 0.0
  %221 = vmatpush2.msra.mxu0 0.0
  %222 = vmatprep.subr.mxu0 0.0
  %223 = vmatpush2.msra.mxu0 0.0
  %224 = vmatprep.subr.mxu0 0.0
  %225 = vmatpush2.msra.mxu0 0.0
  %226 = vmatprep.subr.mxu0 0.0
  %227 = vmatpush2.msra.mxu0 0.0
  %228 = vmatprep.subr.mxu0 0.0
  %229 = vmatpush2.msra.mxu0 0.0
  %230 = vmatprep.subr.mxu0 0.0
  %231 = vmatpush2.msra.mxu0 0.0
  %232 = vmatprep.subr.mxu0 0.0
  %233 = vmatpush2.msra.mxu0 0.0
  %234 = vmatprep.subr.mxu0 0.0
  %235 = vmatpush2.msra.mxu0 0.0
  %236 = vmatprep.subr.mxu0 0.0
  %237 = vmatpush2.msra.mxu0 0.0
  %238 = vmatprep.subr.mxu0 0.0
  %239 = vmatpush2.msra.mxu0 0.0
  %240 = vmatprep.subr.mxu0 0.0
  %241 = vmatpush2.msra.mxu0 0.0
  %242 = vmatprep.subr.mxu0 0.0
  %243 = vmatpush2.msra.mxu0 0.0
  %244 = vmatprep.subr.mxu0 0.0
  %245 = vmatpush2.msra.mxu0 0.0
  %246 = vmatprep.subr.mxu0 0.0
  %247 = vmatpush2.msra.mxu0 0.0
  %248 = vmatprep.subr.mxu0 0.0
  %249 = vmatpush2.msra.mxu0 0.0
  %250 = vmatprep.mubr.f32.mxu0 0.0
  %251 = vmatmul.mubr.f32.gmra.mxu0 %v184
  %v252 = vpop.f32.mrf.mxu0
  %v253 = vadd.f32 0.0, %v252
  %v254 = vpop.f32.mrf.mxu0
  %v255 = vadd.f32 0.0, %v254
  %256 = vdwg.mxu0
  %v257 = vadd.f32 %v178, %v253
  %v258 = vxor.u32 %v257, 2147483648
  %v259 = vmul.f32 %v258, 1.442695
  %v260 = vpow.pop %v259
  %v261 = vadd.f32 %v260, 1.0
  %v262 = vrcp.pop %v261
  %v263 = vmul.f32 1.0, %v262
  %v264 = vadd.f32 %v255, %v26
  %v265 = vmul.f32 %v263, %v264
  %v266 = vadd.f32 %v180, %v265
  %v267 = vtanh.pop %v266
  %v268 = vsub.f32 1.0, %v263
  %270 = vrot.lane.b32.xlu0 %v267, 64
  %v271 = vpop.permute.xlu0 %270
  %v273 = vmul.f32 %v268, %v271
  %v274 = vmul.f32 %v263, 0.0
  %v275 = vadd.f32 %v273, %v274
  %276 = vmatprep.subr.mxu0 0.0
  %277 = vmatpush1.msra.mxu0 0.0
  %278 = vmatprep.subr.mxu0 0.0
  %279 = vmatpush1.msra.mxu0 0.0
  %280 = vmatprep.subr.mxu0 0.0
  %281 = vmatpush1.msra.mxu0 0.0
  %282 = vmatprep.subr.mxu0 0.0
  %283 = vmatpush1.msra.mxu0 0.0
  %284 = vmatprep.subr.mxu0 0.0
  %285 = vmatpush1.msra.mxu0 0.0
  %286 = vmatprep.subr.mxu0 0.0
  %287 = vmatpush1.msra.mxu0 0.0
  %288 = vmatprep.subr.mxu0 0.0
  %289 = vmatpush1.msra.mxu0 0.0
  %290 = vmatprep.subr.mxu0 0.0
  %291 = vmatpush1.msra.mxu0 0.0
  %292 = vmatprep.subr.mxu0 %v74
  %293 = vmatpush1.msra.mxu0 %v73
  %294 = vmatprep.subr.mxu0 %v72
  %295 = vmatpush1.msra.mxu0 %v71
  %296 = vmatprep.subr.mxu0 %v70
  %297 = vmatpush1.msra.mxu0 %v69
  %298 = vmatprep.subr.mxu0 %v68
  %299 = vmatpush1.msra.mxu0 %v67
  %300 = vmatprep.subr.mxu0 %v66
  %301 = vmatpush1.msra.mxu0 %v65
  %302 = vmatprep.subr.mxu0 %v64
  %303 = vmatpush1.msra.mxu0 %v63
  %304 = vmatprep.subr.mxu0 %v62
  %305 = vmatpush1.msra.mxu0 %v61
  %306 = vmatprep.subr.mxu0 %v60
  %307 = vmatpush1.msra.mxu0 %v59
  %308 = vmatprep.subr.mxu0 0.0
  %309 = vmatpush2.msra.mxu0 0.0
  %310 = vmatprep.subr.mxu0 0.0
  %311 = vmatpush2.msra.mxu0 0.0
  %312 = vmatprep.subr.mxu0 0.0
  %313 = vmatpush2.msra.mxu0 0.0
  %314 = vmatprep.subr.mxu0 0.0
  %315 = vmatpush2.msra.mxu0 0.0
  %316 = vmatprep.subr.mxu0 0.0
  %317 = vmatpush2.msra.mxu0 0.0
  %318 = vmatprep.subr.mxu0 0.0
  %319 = vmatpush2.msra.mxu0 0.0
  %320 = vmatprep.subr.mxu0 0.0
  %321 = vmatpush2.msra.mxu0 0.0
  %322 = vmatprep.subr.mxu0 0.0
  %323 = vmatpush2.msra.mxu0 0.0
  %324 = vmatprep.subr.mxu0 0.0
  %325 = vmatpush2.msra.mxu0 0.0
  %326 = vmatprep.subr.mxu0 0.0
  %327 = vmatpush2.msra.mxu0 0.0
  %328 = vmatprep.subr.mxu0 0.0
  %329 = vmatpush2.msra.mxu0 0.0
  %330 = vmatprep.subr.mxu0 0.0
  %331 = vmatpush2.msra.mxu0 0.0
  %332 = vmatprep.subr.mxu0 0.0
  %333 = vmatpush2.msra.mxu0 0.0
  %334 = vmatprep.subr.mxu0 0.0
  %335 = vmatpush2.msra.mxu0 0.0
  %336 = vmatprep.subr.mxu0 0.0
  %337 = vmatpush2.msra.mxu0 0.0
  %338 = vmatprep.subr.mxu0 0.0
  %339 = vmatpush2.msra.mxu0 0.0
  %340 = vmatprep.mubr.f32.mxu0 0.0
  %341 = vmatmul.mubr.f32.gmra.mxu0 %v184
  %v342 = vpop.f32.mrf.mxu0
  %v343 = vadd.f32 0.0, %v342
  %v344 = vpop.f32.mrf.mxu0
  %v345 = vadd.f32 0.0, %v344
  %346 = vdwg.mxu0
  %348 = vrot.lane.b32.xlu0 %v275, 64
  %v349 = vpop.permute.xlu0 %348
  %v350 = vsel %vm182, %v349, 0
  %352 = vmatprep.subr.mxu0 0.0
  %353 = vmatpush1.msra.mxu0 0.0
  %354 = vmatprep.subr.mxu0 0.0
  %355 = vmatpush1.msra.mxu0 0.0
  %356 = vmatprep.subr.mxu0 0.0
  %357 = vmatpush1.msra.mxu0 0.0
  %358 = vmatprep.subr.mxu0 0.0
  %359 = vmatpush1.msra.mxu0 0.0
  %360 = vmatprep.subr.mxu0 0.0
  %361 = vmatpush1.msra.mxu0 0.0
  %362 = vmatprep.subr.mxu0 0.0
  %363 = vmatpush1.msra.mxu0 0.0
  %364 = vmatprep.subr.mxu0 0.0
  %365 = vmatpush1.msra.mxu0 0.0
  %366 = vmatprep.subr.mxu0 0.0
  %367 = vmatpush1.msra.mxu0 0.0
  %368 = vmatprep.subr.mxu0 %v58
  %369 = vmatpush1.msra.mxu0 %v57
  %370 = vmatprep.subr.mxu0 %v56
  %371 = vmatpush1.msra.mxu0 %v55
  %372 = vmatprep.subr.mxu0 %v54
  %373 = vmatpush1.msra.mxu0 %v53
  %374 = vmatprep.subr.mxu0 %v52
  %375 = vmatpush1.msra.mxu0 %v51
  %376 = vmatprep.subr.mxu0 %v50
  %377 = vmatpush1.msra.mxu0 %v49
  %378 = vmatprep.subr.mxu0 %v48
  %379 = vmatpush1.msra.mxu0 %v47
  %380 = vmatprep.subr.mxu0 %v46
  %381 = vmatpush1.msra.mxu0 %v45
  %382 = vmatprep.subr.mxu0 %v44
  %383 = vmatpush1.msra.mxu0 %v43
  %384 = vmatprep.subr.mxu0 0.0
  %385 = vmatpush2.msra.mxu0 0.0
  %386 = vmatprep.subr.mxu0 0.0
  %387 = vmatpush2.msra.mxu0 0.0
  %388 = vmatprep.subr.mxu0 0.0
  %389 = vmatpush2.msra.mxu0 0.0
  %390 = vmatprep.subr.mxu0 0.0
  %391 = vmatpush2.msra.mxu0 0.0
  %392 = vmatprep.subr.mxu0 0.0
  %393 = vmatpush2.msra.mxu0 0.0
  %394 = vmatprep.subr.mxu0 0.0
  %395 = vmatpush2.msra.mxu0 0.0
  %396 = vmatprep.subr.mxu0 0.0
  %397 = vmatpush2.msra.mxu0 0.0
  %398 = vmatprep.subr.mxu0 0.0
  %399 = vmatpush2.msra.mxu0 0.0
  %400 = vmatprep.subr.mxu0 0.0
  %401 = vmatpush2.msra.mxu0 0.0
  %402 = vmatprep.subr.mxu0 0.0
  %403 = vmatpush2.msra.mxu0 0.0
  %404 = vmatprep.subr.mxu0 0.0
  %405 = vmatpush2.msra.mxu0 0.0
  %406 = vmatprep.subr.mxu0 0.0
  %407 = vmatpush2.msra.mxu0 0.0
  %408 = vmatprep.subr.mxu0 0.0
  %409 = vmatpush2.msra.mxu0 0.0
  %410 = vmatprep.subr.mxu0 0.0
  %411 = vmatpush2.msra.mxu0 0.0
  %412 = vmatprep.subr.mxu0 0.0
  %413 = vmatpush2.msra.mxu0 0.0
  %414 = vmatprep.subr.mxu0 0.0
  %415 = vmatpush2.msra.mxu0 0.0
  %416 = vmatprep.mubr.f32.mxu0 0.0
  %417 = vmatmul.mubr.f32.gmra.mxu0 %v350
  %v418 = vpop.f32.mrf.mxu0
  %v419 = vadd.f32 %v343, %v418
  %v420 = vpop.f32.mrf.mxu0
  %v421 = vadd.f32 %v345, %v420
  %422 = vdwg.mxu0
  %v423 = vadd.f32 %v419, %v92
  %v424 = vadd.f32 %v421, %v96
  %v425 = vxor.u32 %v423, 2147483648
  %v426 = vmul.f32 %v425, 1.442695
  %v427 = vpow.pop %v426
  %v428 = vadd.f32 %v427, 1.0
  %v429 = vrcp.pop %v428
  %v430 = vmul.f32 1.0, %v429
  %432 = vrot.lane.b32.xlu0 %v424, 64
  %v433 = vpop.permute.xlu0 %432
  %v435 = vmul.f32 %v430, %v433
  %v436 = vadd.f32 %v424, %v435
  %v437 = vtanh.pop %v436
  %v438 = vsub.f32 1.0, %v430
  %440 = vrot.lane.b32.xlu0 %v437, 64
  %v441 = vpop.permute.xlu0 %440
  %v443 = vmul.f32 %v438, %v441
  %v444 = vmul.f32 %v430, 0.0
  %v445 = vadd.f32 %v443, %v444
  %s446 = scalar_lea.vmem %s0, 2
  %v447 = vld [vmem:[%s446] sm:$0x3]
  %v449 = vsel %vm100, %v447, 0
  %451 = vmatprep.subr.mxu0 0.0
  %452 = vmatpush1.msra.mxu0 0.0
  %453 = vmatprep.subr.mxu0 0.0
  %454 = vmatpush1.msra.mxu0 0.0
  %455 = vmatprep.subr.mxu0 0.0
  %456 = vmatpush1.msra.mxu0 0.0
  %457 = vmatprep.subr.mxu0 0.0
  %458 = vmatpush1.msra.mxu0 0.0
  %459 = vmatprep.subr.mxu0 0.0
  %460 = vmatpush1.msra.mxu0 0.0
  %461 = vmatprep.subr.mxu0 0.0
  %462 = vmatpush1.msra.mxu0 0.0
  %463 = vmatprep.subr.mxu0 0.0
  %464 = vmatpush1.msra.mxu0 0.0
  %465 = vmatprep.subr.mxu0 0.0
  %466 = vmatpush1.msra.mxu0 0.0
  %467 = vmatprep.subr.mxu0 0.0
  %468 = vmatpush1.msra.mxu0 0.0
  %469 = vmatprep.subr.mxu0 0.0
  %470 = vmatpush1.msra.mxu0 0.0
  %471 = vmatprep.subr.mxu0 0.0
  %472 = vmatpush1.msra.mxu0 0.0
  %473 = vmatprep.subr.mxu0 0.0
  %474 = vmatpush1.msra.mxu0 0.0
  %475 = vmatprep.subr.mxu0 0.0
  %476 = vmatpush1.msra.mxu0 0.0
  %477 = vmatprep.subr.mxu0 0.0
  %478 = vmatpush1.msra.mxu0 0.0
  %479 = vmatprep.subr.mxu0 %v109
  %480 = vmatpush1.msra.mxu0 %v106
  %481 = vmatprep.subr.mxu0 %v21
  %482 = vmatpush1.msra.mxu0 %v20
  %483 = vmatprep.subr.mxu0 0.0
  %484 = vmatpush2.msra.mxu0 0.0
  %485 = vmatprep.subr.mxu0 0.0
  %486 = vmatpush2.msra.mxu0 0.0
  %487 = vmatprep.subr.mxu0 0.0
  %488 = vmatpush2.msra.mxu0 0.0
  %489 = vmatprep.subr.mxu0 0.0
  %490 = vmatpush2.msra.mxu0 0.0
  %491 = vmatprep.subr.mxu0 0.0
  %492 = vmatpush2.msra.mxu0 0.0
  %493 = vmatprep.subr.mxu0 0.0
  %494 = vmatpush2.msra.mxu0 0.0
  %495 = vmatprep.subr.mxu0 0.0
  %496 = vmatpush2.msra.mxu0 0.0
  %497 = vmatprep.subr.mxu0 0.0
  %498 = vmatpush2.msra.mxu0 0.0
  %499 = vmatprep.subr.mxu0 0.0
  %500 = vmatpush2.msra.mxu0 0.0
  %501 = vmatprep.subr.mxu0 0.0
  %502 = vmatpush2.msra.mxu0 0.0
  %503 = vmatprep.subr.mxu0 0.0
  %504 = vmatpush2.msra.mxu0 0.0
  %505 = vmatprep.subr.mxu0 0.0
  %506 = vmatpush2.msra.mxu0 0.0
  %507 = vmatprep.subr.mxu0 0.0
  %508 = vmatpush2.msra.mxu0 0.0
  %509 = vmatprep.subr.mxu0 0.0
  %510 = vmatpush2.msra.mxu0 0.0
  %511 = vmatprep.subr.mxu0 0.0
  %512 = vmatpush2.msra.mxu0 0.0
  %513 = vmatprep.subr.mxu0 0.0
  %514 = vmatpush2.msra.mxu0 0.0
  %515 = vmatprep.mubr.f32.mxu0 0.0
  %516 = vmatmul.mubr.f32.gmra.mxu0 %v449
  %v517 = vpop.f32.mrf.mxu0
  %v518 = vadd.f32 %v81, %v517
  %v519 = vpop.f32.mrf.mxu0
  %v520 = vadd.f32 %v85, %v519
  %521 = vdwg.mxu0
  %522 = vmatprep.subr.mxu0 0.0
  %523 = vmatpush1.msra.mxu0 0.0
  %524 = vmatprep.subr.mxu0 0.0
  %525 = vmatpush1.msra.mxu0 0.0
  %526 = vmatprep.subr.mxu0 0.0
  %527 = vmatpush1.msra.mxu0 0.0
  %528 = vmatprep.subr.mxu0 0.0
  %529 = vmatpush1.msra.mxu0 0.0
  %530 = vmatprep.subr.mxu0 0.0
  %531 = vmatpush1.msra.mxu0 0.0
  %532 = vmatprep.subr.mxu0 0.0
  %533 = vmatpush1.msra.mxu0 0.0
  %534 = vmatprep.subr.mxu0 0.0
  %535 = vmatpush1.msra.mxu0 0.0
  %536 = vmatprep.subr.mxu0 0.0
  %537 = vmatpush1.msra.mxu0 0.0
  %538 = vmatprep.subr.mxu0 %v42
  %539 = vmatpush1.msra.mxu0 %v41
  %540 = vmatprep.subr.mxu0 %v40
  %541 = vmatpush1.msra.mxu0 %v39
  %542 = vmatprep.subr.mxu0 %v38
  %543 = vmatpush1.msra.mxu0 %v37
  %544 = vmatprep.subr.mxu0 %v36
  %545 = vmatpush1.msra.mxu0 %v35
  %546 = vmatprep.subr.mxu0 %v34
  %547 = vmatpush1.msra.mxu0 %v33
  %548 = vmatprep.subr.mxu0 %v32
  %549 = vmatpush1.msra.mxu0 %v31
  %550 = vmatprep.subr.mxu0 %v30
  %551 = vmatpush1.msra.mxu0 %v29
  %552 = vmatprep.subr.mxu0 %v28
  %553 = vmatpush1.msra.mxu0 %v27
  %554 = vmatprep.subr.mxu0 0.0
  %555 = vmatpush2.msra.mxu0 0.0
  %556 = vmatprep.subr.mxu0 0.0
  %557 = vmatpush2.msra.mxu0 0.0
  %558 = vmatprep.subr.mxu0 0.0
  %559 = vmatpush2.msra.mxu0 0.0
  %560 = vmatprep.subr.mxu0 0.0
  %561 = vmatpush2.msra.mxu0 0.0
  %562 = vmatprep.subr.mxu0 0.0
  %563 = vmatpush2.msra.mxu0 0.0
  %564 = vmatprep.subr.mxu0 0.0
  %565 = vmatpush2.msra.mxu0 0.0
  %566 = vmatprep.subr.mxu0 0.0
  %567 = vmatpush2.msra.mxu0 0.0
  %568 = vmatprep.subr.mxu0 0.0
  %569 = vmatpush2.msra.mxu0 0.0
  %570 = vmatprep.subr.mxu0 0.0
  %571 = vmatpush2.msra.mxu0 0.0
  %572 = vmatprep.subr.mxu0 0.0
  %573 = vmatpush2.msra.mxu0 0.0
  %574 = vmatprep.subr.mxu0 0.0
  %575 = vmatpush2.msra.mxu0 0.0
  %576 = vmatprep.subr.mxu0 0.0
  %577 = vmatpush2.msra.mxu0 0.0
  %578 = vmatprep.subr.mxu0 0.0
  %579 = vmatpush2.msra.mxu0 0.0
  %580 = vmatprep.subr.mxu0 0.0
  %581 = vmatpush2.msra.mxu0 0.0
  %582 = vmatprep.subr.mxu0 0.0
  %583 = vmatpush2.msra.mxu0 0.0
  %584 = vmatprep.subr.mxu0 0.0
  %585 = vmatpush2.msra.mxu0 0.0
  %586 = vmatprep.mubr.f32.mxu0 0.0
  %587 = vmatmul.mubr.f32.gmra.mxu0 %v350
  %v588 = vpop.f32.mrf.mxu0
  %v589 = vadd.f32 0.0, %v588
  %v590 = vpop.f32.mrf.mxu0
  %v591 = vadd.f32 0.0, %v590
  %592 = vdwg.mxu0
  %v593 = vadd.f32 %v518, %v589
  %v594 = vxor.u32 %v593, 2147483648
  %v595 = vmul.f32 %v594, 1.442695
  %v596 = vpow.pop %v595
  %v597 = vadd.f32 %v596, 1.0
  %v598 = vrcp.pop %v597
  %v599 = vmul.f32 1.0, %v598
  %v600 = vadd.f32 %v591, %v26
  %v601 = vmul.f32 %v599, %v600
  %v602 = vadd.f32 %v520, %v601
  %v603 = vtanh.pop %v602
  %v604 = vsub.f32 1.0, %v599
  %606 = vrot.lane.b32.xlu0 %v603, 64
  %v607 = vpop.permute.xlu0 %606
  %v609 = vmul.f32 %v604, %v607
  %v610 = vmul.f32 %v599, %v275
  %v611 = vadd.f32 %v609, %v610
  %613 = vrot.lane.b32.xlu0 %v445, 64
  %v614 = vpop.permute.xlu0 %613
  %v615 = vsel %vm182, %v614, 0
  %617 = vmatprep.subr.mxu0 0.0
  %618 = vmatpush1.msra.mxu0 0.0
  %619 = vmatprep.subr.mxu0 0.0
  %620 = vmatpush1.msra.mxu0 0.0
  %621 = vmatprep.subr.mxu0 0.0
  %622 = vmatpush1.msra.mxu0 0.0
  %623 = vmatprep.subr.mxu0 0.0
  %624 = vmatpush1.msra.mxu0 0.0
  %625 = vmatprep.subr.mxu0 0.0
  %626 = vmatpush1.msra.mxu0 0.0
  %627 = vmatprep.subr.mxu0 0.0
  %628 = vmatpush1.msra.mxu0 0.0
  %629 = vmatprep.subr.mxu0 0.0
  %630 = vmatpush1.msra.mxu0 0.0
  %631 = vmatprep.subr.mxu0 0.0
  %632 = vmatpush1.msra.mxu0 0.0
  %633 = vmatprep.subr.mxu0 %v74
  %634 = vmatpush1.msra.mxu0 %v73
  %635 = vmatprep.subr.mxu0 %v72
  %636 = vmatpush1.msra.mxu0 %v71
  %637 = vmatprep.subr.mxu0 %v70
  %638 = vmatpush1.msra.mxu0 %v69
  %639 = vmatprep.subr.mxu0 %v68
  %640 = vmatpush1.msra.mxu0 %v67
  %641 = vmatprep.subr.mxu0 %v66
  %642 = vmatpush1.msra.mxu0 %v65
  %643 = vmatprep.subr.mxu0 %v64
  %644 = vmatpush1.msra.mxu0 %v63
  %645 = vmatprep.subr.mxu0 %v62
  %646 = vmatpush1.msra.mxu0 %v61
  %647 = vmatprep.subr.mxu0 %v60
  %648 = vmatpush1.msra.mxu0 %v59
  %649 = vmatprep.subr.mxu0 0.0
  %650 = vmatpush2.msra.mxu0 0.0
  %651 = vmatprep.subr.mxu0 0.0
  %652 = vmatpush2.msra.mxu0 0.0
  %653 = vmatprep.subr.mxu0 0.0
  %654 = vmatpush2.msra.mxu0 0.0
  %655 = vmatprep.subr.mxu0 0.0
  %656 = vmatpush2.msra.mxu0 0.0
  %657 = vmatprep.subr.mxu0 0.0
  %658 = vmatpush2.msra.mxu0 0.0
  %659 = vmatprep.subr.mxu0 0.0
  %660 = vmatpush2.msra.mxu0 0.0
  %661 = vmatprep.subr.mxu0 0.0
  %662 = vmatpush2.msra.mxu0 0.0
  %663 = vmatprep.subr.mxu0 0.0
  %664 = vmatpush2.msra.mxu0 0.0
  %665 = vmatprep.subr.mxu0 0.0
  %666 = vmatpush2.msra.mxu0 0.0
  %667 = vmatprep.subr.mxu0 0.0
  %668 = vmatpush2.msra.mxu0 0.0
  %669 = vmatprep.subr.mxu0 0.0
  %670 = vmatpush2.msra.mxu0 0.0
  %671 = vmatprep.subr.mxu0 0.0
  %672 = vmatpush2.msra.mxu0 0.0
  %673 = vmatprep.subr.mxu0 0.0
  %674 = vmatpush2.msra.mxu0 0.0
  %675 = vmatprep.subr.mxu0 0.0
  %676 = vmatpush2.msra.mxu0 0.0
  %677 = vmatprep.subr.mxu0 0.0
  %678 = vmatpush2.msra.mxu0 0.0
  %679 = vmatprep.subr.mxu0 0.0
  %680 = vmatpush2.msra.mxu0 0.0
  %681 = vmatprep.mubr.f32.mxu0 0.0
  %682 = vmatmul.mubr.f32.gmra.mxu0 %v615
  %v683 = vpop.f32.mrf.mxu0
  %v684 = vadd.f32 0.0, %v683
  %v685 = vpop.f32.mrf.mxu0
  %v686 = vadd.f32 0.0, %v685
  %687 = vdwg.mxu0
  %689 = vrot.lane.b32.xlu0 %v611, 64
  %v690 = vpop.permute.xlu0 %689
  %v691 = vsel %vm182, %v690, 0
  %693 = vmatprep.subr.mxu0 0.0
  %694 = vmatpush1.msra.mxu0 0.0
  %695 = vmatprep.subr.mxu0 0.0
  %696 = vmatpush1.msra.mxu0 0.0
  %697 = vmatprep.subr.mxu0 0.0
  %698 = vmatpush1.msra.mxu0 0.0
  %699 = vmatprep.subr.mxu0 0.0
  %700 = vmatpush1.msra.mxu0 0.0
  %701 = vmatprep.subr.mxu0 0.0
  %702 = vmatpush1.msra.mxu0 0.0
  %703 = vmatprep.subr.mxu0 0.0
  %704 = vmatpush1.msra.mxu0 0.0
  %705 = vmatprep.subr.mxu0 0.0
  %706 = vmatpush1.msra.mxu0 0.0
  %707 = vmatprep.subr.mxu0 0.0
  %708 = vmatpush1.msra.mxu0 0.0
  %709 = vmatprep.subr.mxu0 %v58
  %710 = vmatpush1.msra.mxu0 %v57
  %711 = vmatprep.subr.mxu0 %v56
  %712 = vmatpush1.msra.mxu0 %v55
  %713 = vmatprep.subr.mxu0 %v54
  %714 = vmatpush1.msra.mxu0 %v53
  %715 = vmatprep.subr.mxu0 %v52
  %716 = vmatpush1.msra.mxu0 %v51
  %717 = vmatprep.subr.mxu0 %v50
  %718 = vmatpush1.msra.mxu0 %v49
  %719 = vmatprep.subr.mxu0 %v48
  %720 = vmatpush1.msra.mxu0 %v47
  %721 = vmatprep.subr.mxu0 %v46
  %722 = vmatpush1.msra.mxu0 %v45
  %723 = vmatprep.subr.mxu0 %v44
  %724 = vmatpush1.msra.mxu0 %v43
  %725 = vmatprep.subr.mxu0 0.0
  %726 = vmatpush2.msra.mxu0 0.0
  %727 = vmatprep.subr.mxu0 0.0
  %728 = vmatpush2.msra.mxu0 0.0
  %729 = vmatprep.subr.mxu0 0.0
  %730 = vmatpush2.msra.mxu0 0.0
  %731 = vmatprep.subr.mxu0 0.0
  %732 = vmatpush2.msra.mxu0 0.0
  %733 = vmatprep.subr.mxu0 0.0
  %734 = vmatpush2.msra.mxu0 0.0
  %735 = vmatprep.subr.mxu0 0.0
  %736 = vmatpush2.msra.mxu0 0.0
  %737 = vmatprep.subr.mxu0 0.0
  %738 = vmatpush2.msra.mxu0 0.0
  %739 = vmatprep.subr.mxu0 0.0
  %740 = vmatpush2.msra.mxu0 0.0
  %741 = vmatprep.subr.mxu0 0.0
  %742 = vmatpush2.msra.mxu0 0.0
  %743 = vmatprep.subr.mxu0 0.0
  %744 = vmatpush2.msra.mxu0 0.0
  %745 = vmatprep.subr.mxu0 0.0
  %746 = vmatpush2.msra.mxu0 0.0
  %747 = vmatprep.subr.mxu0 0.0
  %748 = vmatpush2.msra.mxu0 0.0
  %749 = vmatprep.subr.mxu0 0.0
  %750 = vmatpush2.msra.mxu0 0.0
  %751 = vmatprep.subr.mxu0 0.0
  %752 = vmatpush2.msra.mxu0 0.0
  %753 = vmatprep.subr.mxu0 0.0
  %754 = vmatpush2.msra.mxu0 0.0
  %755 = vmatprep.subr.mxu0 0.0
  %756 = vmatpush2.msra.mxu0 0.0
  %757 = vmatprep.mubr.f32.mxu0 0.0
  %758 = vmatmul.mubr.f32.gmra.mxu0 %v691
  %v759 = vpop.f32.mrf.mxu0
  %v760 = vadd.f32 %v684, %v759
  %v761 = vpop.f32.mrf.mxu0
  %v762 = vadd.f32 %v686, %v761
  %763 = vdwg.mxu0
  %v764 = vadd.f32 %v760, %v92
  %v765 = vadd.f32 %v762, %v96
  %v766 = vxor.u32 %v764, 2147483648
  %v767 = vmul.f32 %v766, 1.442695
  %v768 = vpow.pop %v767
  %v769 = vadd.f32 %v768, 1.0
  %v770 = vrcp.pop %v769
  %v771 = vmul.f32 1.0, %v770
  %773 = vrot.lane.b32.xlu0 %v765, 64
  %v774 = vpop.permute.xlu0 %773
  %v776 = vmul.f32 %v771, %v774
  %v777 = vadd.f32 %v765, %v776
  %v778 = vtanh.pop %v777
  %v779 = vsub.f32 1.0, %v771
  %781 = vrot.lane.b32.xlu0 %v778, 64
  %v782 = vpop.permute.xlu0 %781
  %v784 = vmul.f32 %v779, %v782
  %v785 = vmul.f32 %v771, %v445
  %v786 = vadd.f32 %v784, %v785
  %s787 = scalar_lea.vmem %s0, 4
  %v788 = vld [vmem:[%s787] sm:$0x3]
  %v790 = vsel %vm100, %v788, 0
  %792 = vmatprep.subr.mxu0 0.0
  %793 = vmatpush1.msra.mxu0 0.0
  %794 = vmatprep.subr.mxu0 0.0
  %795 = vmatpush1.msra.mxu0 0.0
  %796 = vmatprep.subr.mxu0 0.0
  %797 = vmatpush1.msra.mxu0 0.0
  %798 = vmatprep.subr.mxu0 0.0
  %799 = vmatpush1.msra.mxu0 0.0
  %800 = vmatprep.subr.mxu0 0.0
  %801 = vmatpush1.msra.mxu0 0.0
  %802 = vmatprep.subr.mxu0 0.0
  %803 = vmatpush1.msra.mxu0 0.0
  %804 = vmatprep.subr.mxu0 0.0
  %805 = vmatpush1.msra.mxu0 0.0
  %806 = vmatprep.subr.mxu0 0.0
  %807 = vmatpush1.msra.mxu0 0.0
  %808 = vmatprep.subr.mxu0 0.0
  %809 = vmatpush1.msra.mxu0 0.0
  %810 = vmatprep.subr.mxu0 0.0
  %811 = vmatpush1.msra.mxu0 0.0
  %812 = vmatprep.subr.mxu0 0.0
  %813 = vmatpush1.msra.mxu0 0.0
  %814 = vmatprep.subr.mxu0 0.0
  %815 = vmatpush1.msra.mxu0 0.0
  %816 = vmatprep.subr.mxu0 0.0
  %817 = vmatpush1.msra.mxu0 0.0
  %818 = vmatprep.subr.mxu0 0.0
  %819 = vmatpush1.msra.mxu0 0.0
  %820 = vmatprep.subr.mxu0 %v109
  %821 = vmatpush1.msra.mxu0 %v106
  %822 = vmatprep.subr.mxu0 %v21
  %823 = vmatpush1.msra.mxu0 %v20
  %824 = vmatprep.subr.mxu0 0.0
  %825 = vmatpush2.msra.mxu0 0.0
  %826 = vmatprep.subr.mxu0 0.0
  %827 = vmatpush2.msra.mxu0 0.0
  %828 = vmatprep.subr.mxu0 0.0
  %829 = vmatpush2.msra.mxu0 0.0
  %830 = vmatprep.subr.mxu0 0.0
  %831 = vmatpush2.msra.mxu0 0.0
  %832 = vmatprep.subr.mxu0 0.0
  %833 = vmatpush2.msra.mxu0 0.0
  %834 = vmatprep.subr.mxu0 0.0
  %835 = vmatpush2.msra.mxu0 0.0
  %836 = vmatprep.subr.mxu0 0.0
  %837 = vmatpush2.msra.mxu0 0.0
  %838 = vmatprep.subr.mxu0 0.0
  %839 = vmatpush2.msra.mxu0 0.0
  %840 = vmatprep.subr.mxu0 0.0
  %841 = vmatpush2.msra.mxu0 0.0
  %842 = vmatprep.subr.mxu0 0.0
  %843 = vmatpush2.msra.mxu0 0.0
  %844 = vmatprep.subr.mxu0 0.0
  %845 = vmatpush2.msra.mxu0 0.0
  %846 = vmatprep.subr.mxu0 0.0
  %847 = vmatpush2.msra.mxu0 0.0
  %848 = vmatprep.subr.mxu0 0.0
  %849 = vmatpush2.msra.mxu0 0.0
  %850 = vmatprep.subr.mxu0 0.0
  %851 = vmatpush2.msra.mxu0 0.0
  %852 = vmatprep.subr.mxu0 0.0
  %853 = vmatpush2.msra.mxu0 0.0
  %854 = vmatprep.subr.mxu0 0.0
  %855 = vmatpush2.msra.mxu0 0.0
  %856 = vmatprep.mubr.f32.mxu0 0.0
  %857 = vmatmul.mubr.f32.gmra.mxu0 %v790
  %v858 = vpop.f32.mrf.mxu0
  %v859 = vadd.f32 %v81, %v858
  %v860 = vpop.f32.mrf.mxu0
  %v861 = vadd.f32 %v85, %v860
  %862 = vdwg.mxu0
  %863 = vmatprep.subr.mxu0 0.0
  %864 = vmatpush1.msra.mxu0 0.0
  %865 = vmatprep.subr.mxu0 0.0
  %866 = vmatpush1.msra.mxu0 0.0
  %867 = vmatprep.subr.mxu0 0.0
  %868 = vmatpush1.msra.mxu0 0.0
  %869 = vmatprep.subr.mxu0 0.0
  %870 = vmatpush1.msra.mxu0 0.0
  %871 = vmatprep.subr.mxu0 0.0
  %872 = vmatpush1.msra.mxu0 0.0
  %873 = vmatprep.subr.mxu0 0.0
  %874 = vmatpush1.msra.mxu0 0.0
  %875 = vmatprep.subr.mxu0 0.0
  %876 = vmatpush1.msra.mxu0 0.0
  %877 = vmatprep.subr.mxu0 0.0
  %878 = vmatpush1.msra.mxu0 0.0
  %879 = vmatprep.subr.mxu0 %v42
  %880 = vmatpush1.msra.mxu0 %v41
  %881 = vmatprep.subr.mxu0 %v40
  %882 = vmatpush1.msra.mxu0 %v39
  %883 = vmatprep.subr.mxu0 %v38
  %884 = vmatpush1.msra.mxu0 %v37
  %885 = vmatprep.subr.mxu0 %v36
  %886 = vmatpush1.msra.mxu0 %v35
  %887 = vmatprep.subr.mxu0 %v34
  %888 = vmatpush1.msra.mxu0 %v33
  %889 = vmatprep.subr.mxu0 %v32
  %890 = vmatpush1.msra.mxu0 %v31
  %891 = vmatprep.subr.mxu0 %v30
  %892 = vmatpush1.msra.mxu0 %v29
  %893 = vmatprep.subr.mxu0 %v28
  %894 = vmatpush1.msra.mxu0 %v27
  %895 = vmatprep.subr.mxu0 0.0
  %896 = vmatpush2.msra.mxu0 0.0
  %897 = vmatprep.subr.mxu0 0.0
  %898 = vmatpush2.msra.mxu0 0.0
  %899 = vmatprep.subr.mxu0 0.0
  %900 = vmatpush2.msra.mxu0 0.0
  %901 = vmatprep.subr.mxu0 0.0
  %902 = vmatpush2.msra.mxu0 0.0
  %903 = vmatprep.subr.mxu0 0.0
  %904 = vmatpush2.msra.mxu0 0.0
  %905 = vmatprep.subr.mxu0 0.0
  %906 = vmatpush2.msra.mxu0 0.0
  %907 = vmatprep.subr.mxu0 0.0
  %908 = vmatpush2.msra.mxu0 0.0
  %909 = vmatprep.subr.mxu0 0.0
  %910 = vmatpush2.msra.mxu0 0.0
  %911 = vmatprep.subr.mxu0 0.0
  %912 = vmatpush2.msra.mxu0 0.0
  %913 = vmatprep.subr.mxu0 0.0
  %914 = vmatpush2.msra.mxu0 0.0
  %915 = vmatprep.subr.mxu0 0.0
  %916 = vmatpush2.msra.mxu0 0.0
  %917 = vmatprep.subr.mxu0 0.0
  %918 = vmatpush2.msra.mxu0 0.0
  %919 = vmatprep.subr.mxu0 0.0
  %920 = vmatpush2.msra.mxu0 0.0
  %921 = vmatprep.subr.mxu0 0.0
  %922 = vmatpush2.msra.mxu0 0.0
  %923 = vmatprep.subr.mxu0 0.0
  %924 = vmatpush2.msra.mxu0 0.0
  %925 = vmatprep.subr.mxu0 0.0
  %926 = vmatpush2.msra.mxu0 0.0
  %927 = vmatprep.mubr.f32.mxu0 0.0
  %928 = vmatmul.mubr.f32.gmra.mxu0 %v691
  %v929 = vpop.f32.mrf.mxu0
  %v930 = vadd.f32 0.0, %v929
  %v931 = vpop.f32.mrf.mxu0
  %v932 = vadd.f32 0.0, %v931
  %933 = vdwg.mxu0
  %v934 = vadd.f32 %v859, %v930
  %v935 = vxor.u32 %v934, 2147483648
  %v936 = vmul.f32 %v935, 1.442695
  %v937 = vpow.pop %v936
  %v938 = vadd.f32 %v937, 1.0
  %v939 = vrcp.pop %v938
  %v940 = vmul.f32 1.0, %v939
  %v941 = vadd.f32 %v932, %v26
  %v942 = vmul.f32 %v940, %v941
  %v943 = vadd.f32 %v861, %v942
  %v944 = vtanh.pop %v943
  %v945 = vsub.f32 1.0, %v940
  %947 = vrot.lane.b32.xlu0 %v944, 64
  %v948 = vpop.permute.xlu0 %947
  %v950 = vmul.f32 %v945, %v948
  %v951 = vmul.f32 %v940, %v611
  %v952 = vadd.f32 %v950, %v951
  %954 = vrot.lane.b32.xlu0 %v786, 64
  %v955 = vpop.permute.xlu0 %954
  %v956 = vsel %vm182, %v955, 0
  %958 = vmatprep.subr.mxu0 0.0
  %959 = vmatpush1.msra.mxu0 0.0
  %960 = vmatprep.subr.mxu0 0.0
  %961 = vmatpush1.msra.mxu0 0.0
  %962 = vmatprep.subr.mxu0 0.0
  %963 = vmatpush1.msra.mxu0 0.0
  %964 = vmatprep.subr.mxu0 0.0
  %965 = vmatpush1.msra.mxu0 0.0
  %966 = vmatprep.subr.mxu0 0.0
  %967 = vmatpush1.msra.mxu0 0.0
  %968 = vmatprep.subr.mxu0 0.0
  %969 = vmatpush1.msra.mxu0 0.0
  %970 = vmatprep.subr.mxu0 0.0
  %971 = vmatpush1.msra.mxu0 0.0
  %972 = vmatprep.subr.mxu0 0.0
  %973 = vmatpush1.msra.mxu0 0.0
  %974 = vmatprep.subr.mxu0 %v74
  %975 = vmatpush1.msra.mxu0 %v73
  %976 = vmatprep.subr.mxu0 %v72
  %977 = vmatpush1.msra.mxu0 %v71
  %978 = vmatprep.subr.mxu0 %v70
  %979 = vmatpush1.msra.mxu0 %v69
  %980 = vmatprep.subr.mxu0 %v68
  %981 = vmatpush1.msra.mxu0 %v67
  %982 = vmatprep.subr.mxu0 %v66
  %983 = vmatpush1.msra.mxu0 %v65
  %984 = vmatprep.subr.mxu0 %v64
  %985 = vmatpush1.msra.mxu0 %v63
  %986 = vmatprep.subr.mxu0 %v62
  %987 = vmatpush1.msra.mxu0 %v61
  %988 = vmatprep.subr.mxu0 %v60
  %989 = vmatpush1.msra.mxu0 %v59
  %990 = vmatprep.subr.mxu0 0.0
  %991 = vmatpush2.msra.mxu0 0.0
  %992 = vmatprep.subr.mxu0 0.0
  %993 = vmatpush2.msra.mxu0 0.0
  %994 = vmatprep.subr.mxu0 0.0
  %995 = vmatpush2.msra.mxu0 0.0
  %996 = vmatprep.subr.mxu0 0.0
  %997 = vmatpush2.msra.mxu0 0.0
  %998 = vmatprep.subr.mxu0 0.0
  %999 = vmatpush2.msra.mxu0 0.0
  %1000 = vmatprep.subr.mxu0 0.0
  %1001 = vmatpush2.msra.mxu0 0.0
  %1002 = vmatprep.subr.mxu0 0.0
  %1003 = vmatpush2.msra.mxu0 0.0
  %1004 = vmatprep.subr.mxu0 0.0
  %1005 = vmatpush2.msra.mxu0 0.0
  %1006 = vmatprep.subr.mxu0 0.0
  %1007 = vmatpush2.msra.mxu0 0.0
  %1008 = vmatprep.subr.mxu0 0.0
  %1009 = vmatpush2.msra.mxu0 0.0
  %1010 = vmatprep.subr.mxu0 0.0
  %1011 = vmatpush2.msra.mxu0 0.0
  %1012 = vmatprep.subr.mxu0 0.0
  %1013 = vmatpush2.msra.mxu0 0.0
  %1014 = vmatprep.subr.mxu0 0.0
  %1015 = vmatpush2.msra.mxu0 0.0
  %1016 = vmatprep.subr.mxu0 0.0
  %1017 = vmatpush2.msra.mxu0 0.0
  %1018 = vmatprep.subr.mxu0 0.0
  %1019 = vmatpush2.msra.mxu0 0.0
  %1020 = vmatprep.subr.mxu0 0.0
  %1021 = vmatpush2.msra.mxu0 0.0
  %1022 = vmatprep.mubr.f32.mxu0 0.0
  %1023 = vmatmul.mubr.f32.gmra.mxu0 %v956
  %v1024 = vpop.f32.mrf.mxu0
  %v1025 = vadd.f32 0.0, %v1024
  %v1026 = vpop.f32.mrf.mxu0
  %v1027 = vadd.f32 0.0, %v1026
  %1028 = vdwg.mxu0
  %1030 = vrot.lane.b32.xlu0 %v952, 64
  %v1031 = vpop.permute.xlu0 %1030
  %v1032 = vsel %vm182, %v1031, 0
  %1034 = vmatprep.subr.mxu0 0.0
  %1035 = vmatpush1.msra.mxu0 0.0
  %1036 = vmatprep.subr.mxu0 0.0
  %1037 = vmatpush1.msra.mxu0 0.0
  %1038 = vmatprep.subr.mxu0 0.0
  %1039 = vmatpush1.msra.mxu0 0.0
  %1040 = vmatprep.subr.mxu0 0.0
  %1041 = vmatpush1.msra.mxu0 0.0
  %1042 = vmatprep.subr.mxu0 0.0
  %1043 = vmatpush1.msra.mxu0 0.0
  %1044 = vmatprep.subr.mxu0 0.0
  %1045 = vmatpush1.msra.mxu0 0.0
  %1046 = vmatprep.subr.mxu0 0.0
  %1047 = vmatpush1.msra.mxu0 0.0
  %1048 = vmatprep.subr.mxu0 0.0
  %1049 = vmatpush1.msra.mxu0 0.0
  %1050 = vmatprep.subr.mxu0 %v58
  %1051 = vmatpush1.msra.mxu0 %v57
  %1052 = vmatprep.subr.mxu0 %v56
  %1053 = vmatpush1.msra.mxu0 %v55
  %1054 = vmatprep.subr.mxu0 %v54
  %1055 = vmatpush1.msra.mxu0 %v53
  %1056 = vmatprep.subr.mxu0 %v52
  %1057 = vmatpush1.msra.mxu0 %v51
  %1058 = vmatprep.subr.mxu0 %v50
  %1059 = vmatpush1.msra.mxu0 %v49
  %1060 = vmatprep.subr.mxu0 %v48
  %1061 = vmatpush1.msra.mxu0 %v47
  %1062 = vmatprep.subr.mxu0 %v46
  %1063 = vmatpush1.msra.mxu0 %v45
  %1064 = vmatprep.subr.mxu0 %v44
  %1065 = vmatpush1.msra.mxu0 %v43
  %1066 = vmatprep.subr.mxu0 0.0
  %1067 = vmatpush2.msra.mxu0 0.0
  %1068 = vmatprep.subr.mxu0 0.0
  %1069 = vmatpush2.msra.mxu0 0.0
  %1070 = vmatprep.subr.mxu0 0.0
  %1071 = vmatpush2.msra.mxu0 0.0
  %1072 = vmatprep.subr.mxu0 0.0
  %1073 = vmatpush2.msra.mxu0 0.0
  %1074 = vmatprep.subr.mxu0 0.0
  %1075 = vmatpush2.msra.mxu0 0.0
  %1076 = vmatprep.subr.mxu0 0.0
  %1077 = vmatpush2.msra.mxu0 0.0
  %1078 = vmatprep.subr.mxu0 0.0
  %1079 = vmatpush2.msra.mxu0 0.0
  %1080 = vmatprep.subr.mxu0 0.0
  %1081 = vmatpush2.msra.mxu0 0.0
  %1082 = vmatprep.subr.mxu0 0.0
  %1083 = vmatpush2.msra.mxu0 0.0
  %1084 = vmatprep.subr.mxu0 0.0
  %1085 = vmatpush2.msra.mxu0 0.0
  %1086 = vmatprep.subr.mxu0 0.0
  %1087 = vmatpush2.msra.mxu0 0.0
  %1088 = vmatprep.subr.mxu0 0.0
  %1089 = vmatpush2.msra.mxu0 0.0
  %1090 = vmatprep.subr.mxu0 0.0
  %1091 = vmatpush2.msra.mxu0 0.0
  %1092 = vmatprep.subr.mxu0 0.0
  %1093 = vmatpush2.msra.mxu0 0.0
  %1094 = vmatprep.subr.mxu0 0.0
  %1095 = vmatpush2.msra.mxu0 0.0
  %1096 = vmatprep.subr.mxu0 0.0
  %1097 = vmatpush2.msra.mxu0 0.0
  %1098 = vmatprep.mubr.f32.mxu0 0.0
  %1099 = vmatmul.mubr.f32.gmra.mxu0 %v1032
  %v1100 = vpop.f32.mrf.mxu0
  %v1101 = vadd.f32 %v1025, %v1100
  %v1102 = vpop.f32.mrf.mxu0
  %v1103 = vadd.f32 %v1027, %v1102
  %1104 = vdwg.mxu0
  %v1105 = vadd.f32 %v1101, %v92
  %v1106 = vadd.f32 %v1103, %v96
  %v1107 = vxor.u32 %v1105, 2147483648
  %v1108 = vmul.f32 %v1107, 1.442695
  %v1109 = vpow.pop %v1108
  %v1110 = vadd.f32 %v1109, 1.0
  %v1111 = vrcp.pop %v1110
  %v1112 = vmul.f32 1.0, %v1111
  %1114 = vrot.lane.b32.xlu0 %v1106, 64
  %v1115 = vpop.permute.xlu0 %1114
  %v1117 = vmul.f32 %v1112, %v1115
  %v1118 = vadd.f32 %v1106, %v1117
  %v1119 = vtanh.pop %v1118
  %v1120 = vsub.f32 1.0, %v1112
  %1122 = vrot.lane.b32.xlu0 %v1119, 64
  %v1123 = vpop.permute.xlu0 %1122
  %v1125 = vmul.f32 %v1120, %v1123
  %v1126 = vmul.f32 %v1112, %v786
  %v1127 = vadd.f32 %v1125, %v1126
  %s1128 = scalar_lea.vmem %s0, 6
  %v1129 = vld [vmem:[%s1128] sm:$0x3]
  %v1131 = vsel %vm100, %v1129, 0
  %1133 = vmatprep.subr.mxu0 0.0
  %1134 = vmatpush1.msra.mxu0 0.0
  %1135 = vmatprep.subr.mxu0 0.0
  %1136 = vmatpush1.msra.mxu0 0.0
  %1137 = vmatprep.subr.mxu0 0.0
  %1138 = vmatpush1.msra.mxu0 0.0
  %1139 = vmatprep.subr.mxu0 0.0
  %1140 = vmatpush1.msra.mxu0 0.0
  %1141 = vmatprep.subr.mxu0 0.0
  %1142 = vmatpush1.msra.mxu0 0.0
  %1143 = vmatprep.subr.mxu0 0.0
  %1144 = vmatpush1.msra.mxu0 0.0
  %1145 = vmatprep.subr.mxu0 0.0
  %1146 = vmatpush1.msra.mxu0 0.0
  %1147 = vmatprep.subr.mxu0 0.0
  %1148 = vmatpush1.msra.mxu0 0.0
  %1149 = vmatprep.subr.mxu0 0.0
  %1150 = vmatpush1.msra.mxu0 0.0
  %1151 = vmatprep.subr.mxu0 0.0
  %1152 = vmatpush1.msra.mxu0 0.0
  %1153 = vmatprep.subr.mxu0 0.0
  %1154 = vmatpush1.msra.mxu0 0.0
  %1155 = vmatprep.subr.mxu0 0.0
  %1156 = vmatpush1.msra.mxu0 0.0
  %1157 = vmatprep.subr.mxu0 0.0
  %1158 = vmatpush1.msra.mxu0 0.0
  %1159 = vmatprep.subr.mxu0 0.0
  %1160 = vmatpush1.msra.mxu0 0.0
  %1161 = vmatprep.subr.mxu0 %v109
  %1162 = vmatpush1.msra.mxu0 %v106
  %1163 = vmatprep.subr.mxu0 %v21
  %1164 = vmatpush1.msra.mxu0 %v20
  %1165 = vmatprep.subr.mxu0 0.0
  %1166 = vmatpush2.msra.mxu0 0.0
  %1167 = vmatprep.subr.mxu0 0.0
  %1168 = vmatpush2.msra.mxu0 0.0
  %1169 = vmatprep.subr.mxu0 0.0
  %1170 = vmatpush2.msra.mxu0 0.0
  %1171 = vmatprep.subr.mxu0 0.0
  %1172 = vmatpush2.msra.mxu0 0.0
  %1173 = vmatprep.subr.mxu0 0.0
  %1174 = vmatpush2.msra.mxu0 0.0
  %1175 = vmatprep.subr.mxu0 0.0
  %1176 = vmatpush2.msra.mxu0 0.0
  %1177 = vmatprep.subr.mxu0 0.0
  %1178 = vmatpush2.msra.mxu0 0.0
  %1179 = vmatprep.subr.mxu0 0.0
  %1180 = vmatpush2.msra.mxu0 0.0
  %1181 = vmatprep.subr.mxu0 0.0
  %1182 = vmatpush2.msra.mxu0 0.0
  %1183 = vmatprep.subr.mxu0 0.0
  %1184 = vmatpush2.msra.mxu0 0.0
  %1185 = vmatprep.subr.mxu0 0.0
  %1186 = vmatpush2.msra.mxu0 0.0
  %1187 = vmatprep.subr.mxu0 0.0
  %1188 = vmatpush2.msra.mxu0 0.0
  %1189 = vmatprep.subr.mxu0 0.0
  %1190 = vmatpush2.msra.mxu0 0.0
  %1191 = vmatprep.subr.mxu0 0.0
  %1192 = vmatpush2.msra.mxu0 0.0
  %1193 = vmatprep.subr.mxu0 0.0
  %1194 = vmatpush2.msra.mxu0 0.0
  %1195 = vmatprep.subr.mxu0 0.0
  %1196 = vmatpush2.msra.mxu0 0.0
  %1197 = vmatprep.mubr.f32.mxu0 0.0
  %1198 = vmatmul.mubr.f32.gmra.mxu0 %v1131
  %v1199 = vpop.f32.mrf.mxu0
  %v1200 = vadd.f32 %v81, %v1199
  %v1201 = vpop.f32.mrf.mxu0
  %v1202 = vadd.f32 %v85, %v1201
  %1203 = vdwg.mxu0
  %1204 = vmatprep.subr.mxu0 0.0
  %1205 = vmatpush1.msra.mxu0 0.0
  %1206 = vmatprep.subr.mxu0 0.0
  %1207 = vmatpush1.msra.mxu0 0.0
  %1208 = vmatprep.subr.mxu0 0.0
  %1209 = vmatpush1.msra.mxu0 0.0
  %1210 = vmatprep.subr.mxu0 0.0
  %1211 = vmatpush1.msra.mxu0 0.0
  %1212 = vmatprep.subr.mxu0 0.0
  %1213 = vmatpush1.msra.mxu0 0.0
  %1214 = vmatprep.subr.mxu0 0.0
  %1215 = vmatpush1.msra.mxu0 0.0
  %1216 = vmatprep.subr.mxu0 0.0
  %1217 = vmatpush1.msra.mxu0 0.0
  %1218 = vmatprep.subr.mxu0 0.0
  %1219 = vmatpush1.msra.mxu0 0.0
  %1220 = vmatprep.subr.mxu0 %v42
  %1221 = vmatpush1.msra.mxu0 %v41
  %1222 = vmatprep.subr.mxu0 %v40
  %1223 = vmatpush1.msra.mxu0 %v39
  %1224 = vmatprep.subr.mxu0 %v38
  %1225 = vmatpush1.msra.mxu0 %v37
  %1226 = vmatprep.subr.mxu0 %v36
  %1227 = vmatpush1.msra.mxu0 %v35
  %1228 = vmatprep.subr.mxu0 %v34
  %1229 = vmatpush1.msra.mxu0 %v33
  %1230 = vmatprep.subr.mxu0 %v32
  %1231 = vmatpush1.msra.mxu0 %v31
  %1232 = vmatprep.subr.mxu0 %v30
  %1233 = vmatpush1.msra.mxu0 %v29
  %1234 = vmatprep.subr.mxu0 %v28
  %1235 = vmatpush1.msra.mxu0 %v27
  %1236 = vmatprep.subr.mxu0 0.0
  %1237 = vmatpush2.msra.mxu0 0.0
  %1238 = vmatprep.subr.mxu0 0.0
  %1239 = vmatpush2.msra.mxu0 0.0
  %1240 = vmatprep.subr.mxu0 0.0
  %1241 = vmatpush2.msra.mxu0 0.0
  %1242 = vmatprep.subr.mxu0 0.0
  %1243 = vmatpush2.msra.mxu0 0.0
  %1244 = vmatprep.subr.mxu0 0.0
  %1245 = vmatpush2.msra.mxu0 0.0
  %1246 = vmatprep.subr.mxu0 0.0
  %1247 = vmatpush2.msra.mxu0 0.0
  %1248 = vmatprep.subr.mxu0 0.0
  %1249 = vmatpush2.msra.mxu0 0.0
  %1250 = vmatprep.subr.mxu0 0.0
  %1251 = vmatpush2.msra.mxu0 0.0
  %1252 = vmatprep.subr.mxu0 0.0
  %1253 = vmatpush2.msra.mxu0 0.0
  %1254 = vmatprep.subr.mxu0 0.0
  %1255 = vmatpush2.msra.mxu0 0.0
  %1256 = vmatprep.subr.mxu0 0.0
  %1257 = vmatpush2.msra.mxu0 0.0
  %1258 = vmatprep.subr.mxu0 0.0
  %1259 = vmatpush2.msra.mxu0 0.0
  %1260 = vmatprep.subr.mxu0 0.0
  %1261 = vmatpush2.msra.mxu0 0.0
  %1262 = vmatprep.subr.mxu0 0.0
  %1263 = vmatpush2.msra.mxu0 0.0
  %1264 = vmatprep.subr.mxu0 0.0
  %1265 = vmatpush2.msra.mxu0 0.0
  %1266 = vmatprep.subr.mxu0 0.0
  %1267 = vmatpush2.msra.mxu0 0.0
  %1268 = vmatprep.mubr.f32.mxu0 0.0
  %1269 = vmatmul.mubr.f32.gmra.mxu0 %v1032
  %v1270 = vpop.f32.mrf.mxu0
  %v1271 = vadd.f32 0.0, %v1270
  %v1272 = vpop.f32.mrf.mxu0
  %v1273 = vadd.f32 0.0, %v1272
  %1274 = vdwg.mxu0
  %v1275 = vadd.f32 %v1200, %v1271
  %v1276 = vxor.u32 %v1275, 2147483648
  %v1277 = vmul.f32 %v1276, 1.442695
  %v1278 = vpow.pop %v1277
  %v1279 = vadd.f32 %v1278, 1.0
  %v1280 = vrcp.pop %v1279
  %v1281 = vmul.f32 1.0, %v1280
  %v1282 = vadd.f32 %v1273, %v26
  %v1283 = vmul.f32 %v1281, %v1282
  %v1284 = vadd.f32 %v1202, %v1283
  %v1285 = vtanh.pop %v1284
  %v1286 = vsub.f32 1.0, %v1281
  %1288 = vrot.lane.b32.xlu0 %v1285, 64
  %v1289 = vpop.permute.xlu0 %1288
  %v1291 = vmul.f32 %v1286, %v1289
  %v1292 = vmul.f32 %v1281, %v952
  %v1293 = vadd.f32 %v1291, %v1292
  %1295 = vrot.lane.b32.xlu0 %v1127, 64
  %v1296 = vpop.permute.xlu0 %1295
  %v1297 = vsel %vm182, %v1296, 0
  %1299 = vmatprep.subr.mxu0 0.0
  %1300 = vmatpush1.msra.mxu0 0.0
  %1301 = vmatprep.subr.mxu0 0.0
  %1302 = vmatpush1.msra.mxu0 0.0
  %1303 = vmatprep.subr.mxu0 0.0
  %1304 = vmatpush1.msra.mxu0 0.0
  %1305 = vmatprep.subr.mxu0 0.0
  %1306 = vmatpush1.msra.mxu0 0.0
  %1307 = vmatprep.subr.mxu0 0.0
  %1308 = vmatpush1.msra.mxu0 0.0
  %1309 = vmatprep.subr.mxu0 0.0
  %1310 = vmatpush1.msra.mxu0 0.0
  %1311 = vmatprep.subr.mxu0 0.0
  %1312 = vmatpush1.msra.mxu0 0.0
  %1313 = vmatprep.subr.mxu0 0.0
  %1314 = vmatpush1.msra.mxu0 0.0
  %1315 = vmatprep.subr.mxu0 %v74
  %1316 = vmatpush1.msra.mxu0 %v73
  %1317 = vmatprep.subr.mxu0 %v72
  %1318 = vmatpush1.msra.mxu0 %v71
  %1319 = vmatprep.subr.mxu0 %v70
  %1320 = vmatpush1.msra.mxu0 %v69
  %1321 = vmatprep.subr.mxu0 %v68
  %1322 = vmatpush1.msra.mxu0 %v67
  %1323 = vmatprep.subr.mxu0 %v66
  %1324 = vmatpush1.msra.mxu0 %v65
  %1325 = vmatprep.subr.mxu0 %v64
  %1326 = vmatpush1.msra.mxu0 %v63
  %1327 = vmatprep.subr.mxu0 %v62
  %1328 = vmatpush1.msra.mxu0 %v61
  %1329 = vmatprep.subr.mxu0 %v60
  %1330 = vmatpush1.msra.mxu0 %v59
  %1331 = vmatprep.subr.mxu0 0.0
  %1332 = vmatpush2.msra.mxu0 0.0
  %1333 = vmatprep.subr.mxu0 0.0
  %1334 = vmatpush2.msra.mxu0 0.0
  %1335 = vmatprep.subr.mxu0 0.0
  %1336 = vmatpush2.msra.mxu0 0.0
  %1337 = vmatprep.subr.mxu0 0.0
  %1338 = vmatpush2.msra.mxu0 0.0
  %1339 = vmatprep.subr.mxu0 0.0
  %1340 = vmatpush2.msra.mxu0 0.0
  %1341 = vmatprep.subr.mxu0 0.0
  %1342 = vmatpush2.msra.mxu0 0.0
  %1343 = vmatprep.subr.mxu0 0.0
  %1344 = vmatpush2.msra.mxu0 0.0
  %1345 = vmatprep.subr.mxu0 0.0
  %1346 = vmatpush2.msra.mxu0 0.0
  %1347 = vmatprep.subr.mxu0 0.0
  %1348 = vmatpush2.msra.mxu0 0.0
  %1349 = vmatprep.subr.mxu0 0.0
  %1350 = vmatpush2.msra.mxu0 0.0
  %1351 = vmatprep.subr.mxu0 0.0
  %1352 = vmatpush2.msra.mxu0 0.0
  %1353 = vmatprep.subr.mxu0 0.0
  %1354 = vmatpush2.msra.mxu0 0.0
  %1355 = vmatprep.subr.mxu0 0.0
  %1356 = vmatpush2.msra.mxu0 0.0
  %1357 = vmatprep.subr.mxu0 0.0
  %1358 = vmatpush2.msra.mxu0 0.0
  %1359 = vmatprep.subr.mxu0 0.0
  %1360 = vmatpush2.msra.mxu0 0.0
  %1361 = vmatprep.subr.mxu0 0.0
  %1362 = vmatpush2.msra.mxu0 0.0
  %1363 = vmatprep.mubr.f32.mxu0 0.0
  %1364 = vmatmul.mubr.f32.gmra.mxu0 %v1297
  %v1365 = vpop.f32.mrf.mxu0
  %v1366 = vadd.f32 0.0, %v1365
  %v1367 = vpop.f32.mrf.mxu0
  %v1368 = vadd.f32 0.0, %v1367
  %1369 = vdwg.mxu0
  %1371 = vrot.lane.b32.xlu0 %v1293, 64
  %v1372 = vpop.permute.xlu0 %1371
  %v1373 = vsel %vm182, %v1372, 0
  %1375 = vmatprep.subr.mxu0 0.0
  %1376 = vmatpush1.msra.mxu0 0.0
  %1377 = vmatprep.subr.mxu0 0.0
  %1378 = vmatpush1.msra.mxu0 0.0
  %1379 = vmatprep.subr.mxu0 0.0
  %1380 = vmatpush1.msra.mxu0 0.0
  %1381 = vmatprep.subr.mxu0 0.0
  %1382 = vmatpush1.msra.mxu0 0.0
  %1383 = vmatprep.subr.mxu0 0.0
  %1384 = vmatpush1.msra.mxu0 0.0
  %1385 = vmatprep.subr.mxu0 0.0
  %1386 = vmatpush1.msra.mxu0 0.0
  %1387 = vmatprep.subr.mxu0 0.0
  %1388 = vmatpush1.msra.mxu0 0.0
  %1389 = vmatprep.subr.mxu0 0.0
  %1390 = vmatpush1.msra.mxu0 0.0
  %1391 = vmatprep.subr.mxu0 %v58
  %1392 = vmatpush1.msra.mxu0 %v57
  %1393 = vmatprep.subr.mxu0 %v56
  %1394 = vmatpush1.msra.mxu0 %v55
  %1395 = vmatprep.subr.mxu0 %v54
  %1396 = vmatpush1.msra.mxu0 %v53
  %1397 = vmatprep.subr.mxu0 %v52
  %1398 = vmatpush1.msra.mxu0 %v51
  %1399 = vmatprep.subr.mxu0 %v50
  %1400 = vmatpush1.msra.mxu0 %v49
  %1401 = vmatprep.subr.mxu0 %v48
  %1402 = vmatpush1.msra.mxu0 %v47
  %1403 = vmatprep.subr.mxu0 %v46
  %1404 = vmatpush1.msra.mxu0 %v45
  %1405 = vmatprep.subr.mxu0 %v44
  %1406 = vmatpush1.msra.mxu0 %v43
  %1407 = vmatprep.subr.mxu0 0.0
  %1408 = vmatpush2.msra.mxu0 0.0
  %1409 = vmatprep.subr.mxu0 0.0
  %1410 = vmatpush2.msra.mxu0 0.0
  %1411 = vmatprep.subr.mxu0 0.0
  %1412 = vmatpush2.msra.mxu0 0.0
  %1413 = vmatprep.subr.mxu0 0.0
  %1414 = vmatpush2.msra.mxu0 0.0
  %1415 = vmatprep.subr.mxu0 0.0
  %1416 = vmatpush2.msra.mxu0 0.0
  %1417 = vmatprep.subr.mxu0 0.0
  %1418 = vmatpush2.msra.mxu0 0.0
  %1419 = vmatprep.subr.mxu0 0.0
  %1420 = vmatpush2.msra.mxu0 0.0
  %1421 = vmatprep.subr.mxu0 0.0
  %1422 = vmatpush2.msra.mxu0 0.0
  %1423 = vmatprep.subr.mxu0 0.0
  %1424 = vmatpush2.msra.mxu0 0.0
  %1425 = vmatprep.subr.mxu0 0.0
  %1426 = vmatpush2.msra.mxu0 0.0
  %1427 = vmatprep.subr.mxu0 0.0
  %1428 = vmatpush2.msra.mxu0 0.0
  %1429 = vmatprep.subr.mxu0 0.0
  %1430 = vmatpush2.msra.mxu0 0.0
  %1431 = vmatprep.subr.mxu0 0.0
  %1432 = vmatpush2.msra.mxu0 0.0
  %1433 = vmatprep.subr.mxu0 0.0
  %1434 = vmatpush2.msra.mxu0 0.0
  %1435 = vmatprep.subr.mxu0 0.0
  %1436 = vmatpush2.msra.mxu0 0.0
  %1437 = vmatprep.subr.mxu0 0.0
  %1438 = vmatpush2.msra.mxu0 0.0
  %1439 = vmatprep.mubr.f32.mxu0 0.0
  %1440 = vmatmul.mubr.f32.gmra.mxu0 %v1373
  %v1441 = vpop.f32.mrf.mxu0
  %v1442 = vadd.f32 %v1366, %v1441
  %v1443 = vpop.f32.mrf.mxu0
  %v1444 = vadd.f32 %v1368, %v1443
  %1445 = vdwg.mxu0
  %v1446 = vadd.f32 %v1442, %v92
  %v1447 = vadd.f32 %v1444, %v96
  %v1448 = vxor.u32 %v1446, 2147483648
  %v1449 = vmul.f32 %v1448, 1.442695
  %v1450 = vpow.pop %v1449
  %v1451 = vadd.f32 %v1450, 1.0
  %v1452 = vrcp.pop %v1451
  %v1453 = vmul.f32 1.0, %v1452
  %1455 = vrot.lane.b32.xlu0 %v1447, 64
  %v1456 = vpop.permute.xlu0 %1455
  %v1458 = vmul.f32 %v1453, %v1456
  %v1459 = vadd.f32 %v1447, %v1458
  %v1460 = vtanh.pop %v1459
  %v1461 = vsub.f32 1.0, %v1453
  %1463 = vrot.lane.b32.xlu0 %v1460, 64
  %v1464 = vpop.permute.xlu0 %1463
  %v1466 = vmul.f32 %v1461, %v1464
  %v1467 = vmul.f32 %v1453, %v1127
  %v1468 = vadd.f32 %v1466, %v1467
  %s1469 = scalar_lea.vmem %s0, 8
  %v1470 = vld [vmem:[%s1469] sm:$0x3]
  %v1472 = vsel %vm100, %v1470, 0
  %1474 = vmatprep.subr.mxu0 0.0
  %1475 = vmatpush1.msra.mxu0 0.0
  %1476 = vmatprep.subr.mxu0 0.0
  %1477 = vmatpush1.msra.mxu0 0.0
  %1478 = vmatprep.subr.mxu0 0.0
  %1479 = vmatpush1.msra.mxu0 0.0
  %1480 = vmatprep.subr.mxu0 0.0
  %1481 = vmatpush1.msra.mxu0 0.0
  %1482 = vmatprep.subr.mxu0 0.0
  %1483 = vmatpush1.msra.mxu0 0.0
  %1484 = vmatprep.subr.mxu0 0.0
  %1485 = vmatpush1.msra.mxu0 0.0
  %1486 = vmatprep.subr.mxu0 0.0
  %1487 = vmatpush1.msra.mxu0 0.0
  %1488 = vmatprep.subr.mxu0 0.0
  %1489 = vmatpush1.msra.mxu0 0.0
  %1490 = vmatprep.subr.mxu0 0.0
  %1491 = vmatpush1.msra.mxu0 0.0
  %1492 = vmatprep.subr.mxu0 0.0
  %1493 = vmatpush1.msra.mxu0 0.0
  %1494 = vmatprep.subr.mxu0 0.0
  %1495 = vmatpush1.msra.mxu0 0.0
  %1496 = vmatprep.subr.mxu0 0.0
  %1497 = vmatpush1.msra.mxu0 0.0
  %1498 = vmatprep.subr.mxu0 0.0
  %1499 = vmatpush1.msra.mxu0 0.0
  %1500 = vmatprep.subr.mxu0 0.0
  %1501 = vmatpush1.msra.mxu0 0.0
  %1502 = vmatprep.subr.mxu0 %v109
  %1503 = vmatpush1.msra.mxu0 %v106
  %1504 = vmatprep.subr.mxu0 %v21
  %1505 = vmatpush1.msra.mxu0 %v20
  %1506 = vmatprep.subr.mxu0 0.0
  %1507 = vmatpush2.msra.mxu0 0.0
  %1508 = vmatprep.subr.mxu0 0.0
  %1509 = vmatpush2.msra.mxu0 0.0
  %1510 = vmatprep.subr.mxu0 0.0
  %1511 = vmatpush2.msra.mxu0 0.0
  %1512 = vmatprep.subr.mxu0 0.0
  %1513 = vmatpush2.msra.mxu0 0.0
  %1514 = vmatprep.subr.mxu0 0.0
  %1515 = vmatpush2.msra.mxu0 0.0
  %1516 = vmatprep.subr.mxu0 0.0
  %1517 = vmatpush2.msra.mxu0 0.0
  %1518 = vmatprep.subr.mxu0 0.0
  %1519 = vmatpush2.msra.mxu0 0.0
  %1520 = vmatprep.subr.mxu0 0.0
  %1521 = vmatpush2.msra.mxu0 0.0
  %1522 = vmatprep.subr.mxu0 0.0
  %1523 = vmatpush2.msra.mxu0 0.0
  %1524 = vmatprep.subr.mxu0 0.0
  %1525 = vmatpush2.msra.mxu0 0.0
  %1526 = vmatprep.subr.mxu0 0.0
  %1527 = vmatpush2.msra.mxu0 0.0
  %1528 = vmatprep.subr.mxu0 0.0
  %1529 = vmatpush2.msra.mxu0 0.0
  %1530 = vmatprep.subr.mxu0 0.0
  %1531 = vmatpush2.msra.mxu0 0.0
  %1532 = vmatprep.subr.mxu0 0.0
  %1533 = vmatpush2.msra.mxu0 0.0
  %1534 = vmatprep.subr.mxu0 0.0
  %1535 = vmatpush2.msra.mxu0 0.0
  %1536 = vmatprep.subr.mxu0 0.0
  %1537 = vmatpush2.msra.mxu0 0.0
  %1538 = vmatprep.mubr.f32.mxu0 0.0
  %1539 = vmatmul.mubr.f32.gmra.mxu0 %v1472
  %v1540 = vpop.f32.mrf.mxu0
  %v1541 = vadd.f32 %v81, %v1540
  %v1542 = vpop.f32.mrf.mxu0
  %v1543 = vadd.f32 %v85, %v1542
  %1544 = vdwg.mxu0
  %1545 = vmatprep.subr.mxu0 0.0
  %1546 = vmatpush1.msra.mxu0 0.0
  %1547 = vmatprep.subr.mxu0 0.0
  %1548 = vmatpush1.msra.mxu0 0.0
  %1549 = vmatprep.subr.mxu0 0.0
  %1550 = vmatpush1.msra.mxu0 0.0
  %1551 = vmatprep.subr.mxu0 0.0
  %1552 = vmatpush1.msra.mxu0 0.0
  %1553 = vmatprep.subr.mxu0 0.0
  %1554 = vmatpush1.msra.mxu0 0.0
  %1555 = vmatprep.subr.mxu0 0.0
  %1556 = vmatpush1.msra.mxu0 0.0
  %1557 = vmatprep.subr.mxu0 0.0
  %1558 = vmatpush1.msra.mxu0 0.0
  %1559 = vmatprep.subr.mxu0 0.0
  %1560 = vmatpush1.msra.mxu0 0.0
  %1561 = vmatprep.subr.mxu0 %v42
  %1562 = vmatpush1.msra.mxu0 %v41
  %1563 = vmatprep.subr.mxu0 %v40
  %1564 = vmatpush1.msra.mxu0 %v39
  %1565 = vmatprep.subr.mxu0 %v38
  %1566 = vmatpush1.msra.mxu0 %v37
  %1567 = vmatprep.subr.mxu0 %v36
  %1568 = vmatpush1.msra.mxu0 %v35
  %1569 = vmatprep.subr.mxu0 %v34
  %1570 = vmatpush1.msra.mxu0 %v33
  %1571 = vmatprep.subr.mxu0 %v32
  %1572 = vmatpush1.msra.mxu0 %v31
  %1573 = vmatprep.subr.mxu0 %v30
  %1574 = vmatpush1.msra.mxu0 %v29
  %1575 = vmatprep.subr.mxu0 %v28
  %1576 = vmatpush1.msra.mxu0 %v27
  %1577 = vmatprep.subr.mxu0 0.0
  %1578 = vmatpush2.msra.mxu0 0.0
  %1579 = vmatprep.subr.mxu0 0.0
  %1580 = vmatpush2.msra.mxu0 0.0
  %1581 = vmatprep.subr.mxu0 0.0
  %1582 = vmatpush2.msra.mxu0 0.0
  %1583 = vmatprep.subr.mxu0 0.0
  %1584 = vmatpush2.msra.mxu0 0.0
  %1585 = vmatprep.subr.mxu0 0.0
  %1586 = vmatpush2.msra.mxu0 0.0
  %1587 = vmatprep.subr.mxu0 0.0
  %1588 = vmatpush2.msra.mxu0 0.0
  %1589 = vmatprep.subr.mxu0 0.0
  %1590 = vmatpush2.msra.mxu0 0.0
  %1591 = vmatprep.subr.mxu0 0.0
  %1592 = vmatpush2.msra.mxu0 0.0
  %1593 = vmatprep.subr.mxu0 0.0
  %1594 = vmatpush2.msra.mxu0 0.0
  %1595 = vmatprep.subr.mxu0 0.0
  %1596 = vmatpush2.msra.mxu0 0.0
  %1597 = vmatprep.subr.mxu0 0.0
  %1598 = vmatpush2.msra.mxu0 0.0
  %1599 = vmatprep.subr.mxu0 0.0
  %1600 = vmatpush2.msra.mxu0 0.0
  %1601 = vmatprep.subr.mxu0 0.0
  %1602 = vmatpush2.msra.mxu0 0.0
  %1603 = vmatprep.subr.mxu0 0.0
  %1604 = vmatpush2.msra.mxu0 0.0
  %1605 = vmatprep.subr.mxu0 0.0
  %1606 = vmatpush2.msra.mxu0 0.0
  %1607 = vmatprep.subr.mxu0 0.0
  %1608 = vmatpush2.msra.mxu0 0.0
  %1609 = vmatprep.mubr.f32.mxu0 0.0
  %1610 = vmatmul.mubr.f32.gmra.mxu0 %v1373
  %v1611 = vpop.f32.mrf.mxu0
  %v1612 = vadd.f32 0.0, %v1611
  %v1613 = vpop.f32.mrf.mxu0
  %v1614 = vadd.f32 0.0, %v1613
  %1615 = vdwg.mxu0
  %v1616 = vadd.f32 %v1541, %v1612
  %v1617 = vxor.u32 %v1616, 2147483648
  %v1618 = vmul.f32 %v1617, 1.442695
  %v1619 = vpow.pop %v1618
  %v1620 = vadd.f32 %v1619, 1.0
  %v1621 = vrcp.pop %v1620
  %v1622 = vmul.f32 1.0, %v1621
  %v1623 = vadd.f32 %v1614, %v26
  %v1624 = vmul.f32 %v1622, %v1623
  %v1625 = vadd.f32 %v1543, %v1624
  %v1626 = vtanh.pop %v1625
  %v1627 = vsub.f32 1.0, %v1622
  %1629 = vrot.lane.b32.xlu0 %v1626, 64
  %v1630 = vpop.permute.xlu0 %1629
  %v1632 = vmul.f32 %v1627, %v1630
  %v1633 = vmul.f32 %v1622, %v1293
  %v1634 = vadd.f32 %v1632, %v1633
  %1636 = vrot.lane.b32.xlu0 %v1468, 64
  %v1637 = vpop.permute.xlu0 %1636
  %v1638 = vsel %vm182, %v1637, 0
  %1640 = vmatprep.subr.mxu0 0.0
  %1641 = vmatpush1.msra.mxu0 0.0
  %1642 = vmatprep.subr.mxu0 0.0
  %1643 = vmatpush1.msra.mxu0 0.0
  %1644 = vmatprep.subr.mxu0 0.0
  %1645 = vmatpush1.msra.mxu0 0.0
  %1646 = vmatprep.subr.mxu0 0.0
  %1647 = vmatpush1.msra.mxu0 0.0
  %1648 = vmatprep.subr.mxu0 0.0
  %1649 = vmatpush1.msra.mxu0 0.0
  %1650 = vmatprep.subr.mxu0 0.0
  %1651 = vmatpush1.msra.mxu0 0.0
  %1652 = vmatprep.subr.mxu0 0.0
  %1653 = vmatpush1.msra.mxu0 0.0
  %1654 = vmatprep.subr.mxu0 0.0
  %1655 = vmatpush1.msra.mxu0 0.0
  %1656 = vmatprep.subr.mxu0 %v74
  %1657 = vmatpush1.msra.mxu0 %v73
  %1658 = vmatprep.subr.mxu0 %v72
  %1659 = vmatpush1.msra.mxu0 %v71
  %1660 = vmatprep.subr.mxu0 %v70
  %1661 = vmatpush1.msra.mxu0 %v69
  %1662 = vmatprep.subr.mxu0 %v68
  %1663 = vmatpush1.msra.mxu0 %v67
  %1664 = vmatprep.subr.mxu0 %v66
  %1665 = vmatpush1.msra.mxu0 %v65
  %1666 = vmatprep.subr.mxu0 %v64
  %1667 = vmatpush1.msra.mxu0 %v63
  %1668 = vmatprep.subr.mxu0 %v62
  %1669 = vmatpush1.msra.mxu0 %v61
  %1670 = vmatprep.subr.mxu0 %v60
  %1671 = vmatpush1.msra.mxu0 %v59
  %1672 = vmatprep.subr.mxu0 0.0
  %1673 = vmatpush2.msra.mxu0 0.0
  %1674 = vmatprep.subr.mxu0 0.0
  %1675 = vmatpush2.msra.mxu0 0.0
  %1676 = vmatprep.subr.mxu0 0.0
  %1677 = vmatpush2.msra.mxu0 0.0
  %1678 = vmatprep.subr.mxu0 0.0
  %1679 = vmatpush2.msra.mxu0 0.0
  %1680 = vmatprep.subr.mxu0 0.0
  %1681 = vmatpush2.msra.mxu0 0.0
  %1682 = vmatprep.subr.mxu0 0.0
  %1683 = vmatpush2.msra.mxu0 0.0
  %1684 = vmatprep.subr.mxu0 0.0
  %1685 = vmatpush2.msra.mxu0 0.0
  %1686 = vmatprep.subr.mxu0 0.0
  %1687 = vmatpush2.msra.mxu0 0.0
  %1688 = vmatprep.subr.mxu0 0.0
  %1689 = vmatpush2.msra.mxu0 0.0
  %1690 = vmatprep.subr.mxu0 0.0
  %1691 = vmatpush2.msra.mxu0 0.0
  %1692 = vmatprep.subr.mxu0 0.0
  %1693 = vmatpush2.msra.mxu0 0.0
  %1694 = vmatprep.subr.mxu0 0.0
  %1695 = vmatpush2.msra.mxu0 0.0
  %1696 = vmatprep.subr.mxu0 0.0
  %1697 = vmatpush2.msra.mxu0 0.0
  %1698 = vmatprep.subr.mxu0 0.0
  %1699 = vmatpush2.msra.mxu0 0.0
  %1700 = vmatprep.subr.mxu0 0.0
  %1701 = vmatpush2.msra.mxu0 0.0
  %1702 = vmatprep.subr.mxu0 0.0
  %1703 = vmatpush2.msra.mxu0 0.0
  %1704 = vmatprep.mubr.f32.mxu0 0.0
  %1705 = vmatmul.mubr.f32.gmra.mxu0 %v1638
  %v1706 = vpop.f32.mrf.mxu0
  %v1707 = vadd.f32 0.0, %v1706
  %v1708 = vpop.f32.mrf.mxu0
  %v1709 = vadd.f32 0.0, %v1708
  %1710 = vdwg.mxu0
  %1712 = vrot.lane.b32.xlu0 %v1634, 64
  %v1713 = vpop.permute.xlu0 %1712
  %v1714 = vsel %vm182, %v1713, 0
  %1716 = vmatprep.subr.mxu0 0.0
  %1717 = vmatpush1.msra.mxu0 0.0
  %1718 = vmatprep.subr.mxu0 0.0
  %1719 = vmatpush1.msra.mxu0 0.0
  %1720 = vmatprep.subr.mxu0 0.0
  %1721 = vmatpush1.msra.mxu0 0.0
  %1722 = vmatprep.subr.mxu0 0.0
  %1723 = vmatpush1.msra.mxu0 0.0
  %1724 = vmatprep.subr.mxu0 0.0
  %1725 = vmatpush1.msra.mxu0 0.0
  %1726 = vmatprep.subr.mxu0 0.0
  %1727 = vmatpush1.msra.mxu0 0.0
  %1728 = vmatprep.subr.mxu0 0.0
  %1729 = vmatpush1.msra.mxu0 0.0
  %1730 = vmatprep.subr.mxu0 0.0
  %1731 = vmatpush1.msra.mxu0 0.0
  %1732 = vmatprep.subr.mxu0 %v58
  %1733 = vmatpush1.msra.mxu0 %v57
  %1734 = vmatprep.subr.mxu0 %v56
  %1735 = vmatpush1.msra.mxu0 %v55
  %1736 = vmatprep.subr.mxu0 %v54
  %1737 = vmatpush1.msra.mxu0 %v53
  %1738 = vmatprep.subr.mxu0 %v52
  %1739 = vmatpush1.msra.mxu0 %v51
  %1740 = vmatprep.subr.mxu0 %v50
  %1741 = vmatpush1.msra.mxu0 %v49
  %1742 = vmatprep.subr.mxu0 %v48
  %1743 = vmatpush1.msra.mxu0 %v47
  %1744 = vmatprep.subr.mxu0 %v46
  %1745 = vmatpush1.msra.mxu0 %v45
  %1746 = vmatprep.subr.mxu0 %v44
  %1747 = vmatpush1.msra.mxu0 %v43
  %1748 = vmatprep.subr.mxu0 0.0
  %1749 = vmatpush2.msra.mxu0 0.0
  %1750 = vmatprep.subr.mxu0 0.0
  %1751 = vmatpush2.msra.mxu0 0.0
  %1752 = vmatprep.subr.mxu0 0.0
  %1753 = vmatpush2.msra.mxu0 0.0
  %1754 = vmatprep.subr.mxu0 0.0
  %1755 = vmatpush2.msra.mxu0 0.0
  %1756 = vmatprep.subr.mxu0 0.0
  %1757 = vmatpush2.msra.mxu0 0.0
  %1758 = vmatprep.subr.mxu0 0.0
  %1759 = vmatpush2.msra.mxu0 0.0
  %1760 = vmatprep.subr.mxu0 0.0
  %1761 = vmatpush2.msra.mxu0 0.0
  %1762 = vmatprep.subr.mxu0 0.0
  %1763 = vmatpush2.msra.mxu0 0.0
  %1764 = vmatprep.subr.mxu0 0.0
  %1765 = vmatpush2.msra.mxu0 0.0
  %1766 = vmatprep.subr.mxu0 0.0
  %1767 = vmatpush2.msra.mxu0 0.0
  %1768 = vmatprep.subr.mxu0 0.0
  %1769 = vmatpush2.msra.mxu0 0.0
  %1770 = vmatprep.subr.mxu0 0.0
  %1771 = vmatpush2.msra.mxu0 0.0
  %1772 = vmatprep.subr.mxu0 0.0
  %1773 = vmatpush2.msra.mxu0 0.0
  %1774 = vmatprep.subr.mxu0 0.0
  %1775 = vmatpush2.msra.mxu0 0.0
  %1776 = vmatprep.subr.mxu0 0.0
  %1777 = vmatpush2.msra.mxu0 0.0
  %1778 = vmatprep.subr.mxu0 0.0
  %1779 = vmatpush2.msra.mxu0 0.0
  %1780 = vmatprep.mubr.f32.mxu0 0.0
  %1781 = vmatmul.mubr.f32.gmra.mxu0 %v1714
  %v1782 = vpop.f32.mrf.mxu0
  %v1783 = vadd.f32 %v1707, %v1782
  %v1784 = vpop.f32.mrf.mxu0
  %v1785 = vadd.f32 %v1709, %v1784
  %1786 = vdwg.mxu0
  %v1787 = vadd.f32 %v1783, %v92
  %v1788 = vadd.f32 %v1785, %v96
  %v1789 = vxor.u32 %v1787, 2147483648
  %v1790 = vmul.f32 %v1789, 1.442695
  %v1791 = vpow.pop %v1790
  %v1792 = vadd.f32 %v1791, 1.0
  %v1793 = vrcp.pop %v1792
  %v1794 = vmul.f32 1.0, %v1793
  %1796 = vrot.lane.b32.xlu0 %v1788, 64
  %v1797 = vpop.permute.xlu0 %1796
  %v1799 = vmul.f32 %v1794, %v1797
  %v1800 = vadd.f32 %v1788, %v1799
  %v1801 = vtanh.pop %v1800
  %v1802 = vsub.f32 1.0, %v1794
  %1804 = vrot.lane.b32.xlu0 %v1801, 64
  %v1805 = vpop.permute.xlu0 %1804
  %v1807 = vmul.f32 %v1802, %v1805
  %v1808 = vmul.f32 %v1794, %v1468
  %v1809 = vadd.f32 %v1807, %v1808
  %s1810 = scalar_lea.vmem %s0, 10
  %v1811 = vld [vmem:[%s1810] sm:$0x3]
  %v1813 = vsel %vm100, %v1811, 0
  %1815 = vmatprep.subr.mxu0 0.0
  %1816 = vmatpush1.msra.mxu0 0.0
  %1817 = vmatprep.subr.mxu0 0.0
  %1818 = vmatpush1.msra.mxu0 0.0
  %1819 = vmatprep.subr.mxu0 0.0
  %1820 = vmatpush1.msra.mxu0 0.0
  %1821 = vmatprep.subr.mxu0 0.0
  %1822 = vmatpush1.msra.mxu0 0.0
  %1823 = vmatprep.subr.mxu0 0.0
  %1824 = vmatpush1.msra.mxu0 0.0
  %1825 = vmatprep.subr.mxu0 0.0
  %1826 = vmatpush1.msra.mxu0 0.0
  %1827 = vmatprep.subr.mxu0 0.0
  %1828 = vmatpush1.msra.mxu0 0.0
  %1829 = vmatprep.subr.mxu0 0.0
  %1830 = vmatpush1.msra.mxu0 0.0
  %1831 = vmatprep.subr.mxu0 0.0
  %1832 = vmatpush1.msra.mxu0 0.0
  %1833 = vmatprep.subr.mxu0 0.0
  %1834 = vmatpush1.msra.mxu0 0.0
  %1835 = vmatprep.subr.mxu0 0.0
  %1836 = vmatpush1.msra.mxu0 0.0
  %1837 = vmatprep.subr.mxu0 0.0
  %1838 = vmatpush1.msra.mxu0 0.0
  %1839 = vmatprep.subr.mxu0 0.0
  %1840 = vmatpush1.msra.mxu0 0.0
  %1841 = vmatprep.subr.mxu0 0.0
  %1842 = vmatpush1.msra.mxu0 0.0
  %1843 = vmatprep.subr.mxu0 %v109
  %1844 = vmatpush1.msra.mxu0 %v106
  %1845 = vmatprep.subr.mxu0 %v21
  %1846 = vmatpush1.msra.mxu0 %v20
  %1847 = vmatprep.subr.mxu0 0.0
  %1848 = vmatpush2.msra.mxu0 0.0
  %1849 = vmatprep.subr.mxu0 0.0
  %1850 = vmatpush2.msra.mxu0 0.0
  %1851 = vmatprep.subr.mxu0 0.0
  %1852 = vmatpush2.msra.mxu0 0.0
  %1853 = vmatprep.subr.mxu0 0.0
  %1854 = vmatpush2.msra.mxu0 0.0
  %1855 = vmatprep.subr.mxu0 0.0
  %1856 = vmatpush2.msra.mxu0 0.0
  %1857 = vmatprep.subr.mxu0 0.0
  %1858 = vmatpush2.msra.mxu0 0.0
  %1859 = vmatprep.subr.mxu0 0.0
  %1860 = vmatpush2.msra.mxu0 0.0
  %1861 = vmatprep.subr.mxu0 0.0
  %1862 = vmatpush2.msra.mxu0 0.0
  %1863 = vmatprep.subr.mxu0 0.0
  %1864 = vmatpush2.msra.mxu0 0.0
  %1865 = vmatprep.subr.mxu0 0.0
  %1866 = vmatpush2.msra.mxu0 0.0
  %1867 = vmatprep.subr.mxu0 0.0
  %1868 = vmatpush2.msra.mxu0 0.0
  %1869 = vmatprep.subr.mxu0 0.0
  %1870 = vmatpush2.msra.mxu0 0.0
  %1871 = vmatprep.subr.mxu0 0.0
  %1872 = vmatpush2.msra.mxu0 0.0
  %1873 = vmatprep.subr.mxu0 0.0
  %1874 = vmatpush2.msra.mxu0 0.0
  %1875 = vmatprep.subr.mxu0 0.0
  %1876 = vmatpush2.msra.mxu0 0.0
  %1877 = vmatprep.subr.mxu0 0.0
  %1878 = vmatpush2.msra.mxu0 0.0
  %1879 = vmatprep.mubr.f32.mxu0 0.0
  %1880 = vmatmul.mubr.f32.gmra.mxu0 %v1813
  %v1881 = vpop.f32.mrf.mxu0
  %v1882 = vadd.f32 %v81, %v1881
  %v1883 = vpop.f32.mrf.mxu0
  %v1884 = vadd.f32 %v85, %v1883
  %1885 = vdwg.mxu0
  %1886 = vmatprep.subr.mxu0 0.0
  %1887 = vmatpush1.msra.mxu0 0.0
  %1888 = vmatprep.subr.mxu0 0.0
  %1889 = vmatpush1.msra.mxu0 0.0
  %1890 = vmatprep.subr.mxu0 0.0
  %1891 = vmatpush1.msra.mxu0 0.0
  %1892 = vmatprep.subr.mxu0 0.0
  %1893 = vmatpush1.msra.mxu0 0.0
  %1894 = vmatprep.subr.mxu0 0.0
  %1895 = vmatpush1.msra.mxu0 0.0
  %1896 = vmatprep.subr.mxu0 0.0
  %1897 = vmatpush1.msra.mxu0 0.0
  %1898 = vmatprep.subr.mxu0 0.0
  %1899 = vmatpush1.msra.mxu0 0.0
  %1900 = vmatprep.subr.mxu0 0.0
  %1901 = vmatpush1.msra.mxu0 0.0
  %1902 = vmatprep.subr.mxu0 %v42
  %1903 = vmatpush1.msra.mxu0 %v41
  %1904 = vmatprep.subr.mxu0 %v40
  %1905 = vmatpush1.msra.mxu0 %v39
  %1906 = vmatprep.subr.mxu0 %v38
  %1907 = vmatpush1.msra.mxu0 %v37
  %1908 = vmatprep.subr.mxu0 %v36
  %1909 = vmatpush1.msra.mxu0 %v35
  %1910 = vmatprep.subr.mxu0 %v34
  %1911 = vmatpush1.msra.mxu0 %v33
  %1912 = vmatprep.subr.mxu0 %v32
  %1913 = vmatpush1.msra.mxu0 %v31
  %1914 = vmatprep.subr.mxu0 %v30
  %1915 = vmatpush1.msra.mxu0 %v29
  %1916 = vmatprep.subr.mxu0 %v28
  %1917 = vmatpush1.msra.mxu0 %v27
  %1918 = vmatprep.subr.mxu0 0.0
  %1919 = vmatpush2.msra.mxu0 0.0
  %1920 = vmatprep.subr.mxu0 0.0
  %1921 = vmatpush2.msra.mxu0 0.0
  %1922 = vmatprep.subr.mxu0 0.0
  %1923 = vmatpush2.msra.mxu0 0.0
  %1924 = vmatprep.subr.mxu0 0.0
  %1925 = vmatpush2.msra.mxu0 0.0
  %1926 = vmatprep.subr.mxu0 0.0
  %1927 = vmatpush2.msra.mxu0 0.0
  %1928 = vmatprep.subr.mxu0 0.0
  %1929 = vmatpush2.msra.mxu0 0.0
  %1930 = vmatprep.subr.mxu0 0.0
  %1931 = vmatpush2.msra.mxu0 0.0
  %1932 = vmatprep.subr.mxu0 0.0
  %1933 = vmatpush2.msra.mxu0 0.0
  %1934 = vmatprep.subr.mxu0 0.0
  %1935 = vmatpush2.msra.mxu0 0.0
  %1936 = vmatprep.subr.mxu0 0.0
  %1937 = vmatpush2.msra.mxu0 0.0
  %1938 = vmatprep.subr.mxu0 0.0
  %1939 = vmatpush2.msra.mxu0 0.0
  %1940 = vmatprep.subr.mxu0 0.0
  %1941 = vmatpush2.msra.mxu0 0.0
  %1942 = vmatprep.subr.mxu0 0.0
  %1943 = vmatpush2.msra.mxu0 0.0
  %1944 = vmatprep.subr.mxu0 0.0
  %1945 = vmatpush2.msra.mxu0 0.0
  %1946 = vmatprep.subr.mxu0 0.0
  %1947 = vmatpush2.msra.mxu0 0.0
  %1948 = vmatprep.subr.mxu0 0.0
  %1949 = vmatpush2.msra.mxu0 0.0
  %1950 = vmatprep.mubr.f32.mxu0 0.0
  %1951 = vmatmul.mubr.f32.gmra.mxu0 %v1714
  %v1952 = vpop.f32.mrf.mxu0
  %v1953 = vadd.f32 0.0, %v1952
  %v1954 = vpop.f32.mrf.mxu0
  %v1955 = vadd.f32 0.0, %v1954
  %1956 = vdwg.mxu0
  %v1957 = vadd.f32 %v1882, %v1953
  %v1958 = vxor.u32 %v1957, 2147483648
  %v1959 = vmul.f32 %v1958, 1.442695
  %v1960 = vpow.pop %v1959
  %v1961 = vadd.f32 %v1960, 1.0
  %v1962 = vrcp.pop %v1961
  %v1963 = vmul.f32 1.0, %v1962
  %v1964 = vadd.f32 %v1955, %v26
  %v1965 = vmul.f32 %v1963, %v1964
  %v1966 = vadd.f32 %v1884, %v1965
  %v1967 = vtanh.pop %v1966
  %v1968 = vsub.f32 1.0, %v1963
  %1970 = vrot.lane.b32.xlu0 %v1967, 64
  %v1971 = vpop.permute.xlu0 %1970
  %v1973 = vmul.f32 %v1968, %v1971
  %v1974 = vmul.f32 %v1963, %v1634
  %v1975 = vadd.f32 %v1973, %v1974
  %1977 = vrot.lane.b32.xlu0 %v1809, 64
  %v1978 = vpop.permute.xlu0 %1977
  %v1979 = vsel %vm182, %v1978, 0
  %1981 = vmatprep.subr.mxu0 0.0
  %1982 = vmatpush1.msra.mxu0 0.0
  %1983 = vmatprep.subr.mxu0 0.0
  %1984 = vmatpush1.msra.mxu0 0.0
  %1985 = vmatprep.subr.mxu0 0.0
  %1986 = vmatpush1.msra.mxu0 0.0
  %1987 = vmatprep.subr.mxu0 0.0
  %1988 = vmatpush1.msra.mxu0 0.0
  %1989 = vmatprep.subr.mxu0 0.0
  %1990 = vmatpush1.msra.mxu0 0.0
  %1991 = vmatprep.subr.mxu0 0.0
  %1992 = vmatpush1.msra.mxu0 0.0
  %1993 = vmatprep.subr.mxu0 0.0
  %1994 = vmatpush1.msra.mxu0 0.0
  %1995 = vmatprep.subr.mxu0 0.0
  %1996 = vmatpush1.msra.mxu0 0.0
  %1997 = vmatprep.subr.mxu0 %v74
  %1998 = vmatpush1.msra.mxu0 %v73
  %1999 = vmatprep.subr.mxu0 %v72
  %2000 = vmatpush1.msra.mxu0 %v71
  %2001 = vmatprep.subr.mxu0 %v70
  %2002 = vmatpush1.msra.mxu0 %v69
  %2003 = vmatprep.subr.mxu0 %v68
  %2004 = vmatpush1.msra.mxu0 %v67
  %2005 = vmatprep.subr.mxu0 %v66
  %2006 = vmatpush1.msra.mxu0 %v65
  %2007 = vmatprep.subr.mxu0 %v64
  %2008 = vmatpush1.msra.mxu0 %v63
  %2009 = vmatprep.subr.mxu0 %v62
  %2010 = vmatpush1.msra.mxu0 %v61
  %2011 = vmatprep.subr.mxu0 %v60
  %2012 = vmatpush1.msra.mxu0 %v59
  %2013 = vmatprep.subr.mxu0 0.0
  %2014 = vmatpush2.msra.mxu0 0.0
  %2015 = vmatprep.subr.mxu0 0.0
  %2016 = vmatpush2.msra.mxu0 0.0
  %2017 = vmatprep.subr.mxu0 0.0
  %2018 = vmatpush2.msra.mxu0 0.0
  %2019 = vmatprep.subr.mxu0 0.0
  %2020 = vmatpush2.msra.mxu0 0.0
  %2021 = vmatprep.subr.mxu0 0.0
  %2022 = vmatpush2.msra.mxu0 0.0
  %2023 = vmatprep.subr.mxu0 0.0
  %2024 = vmatpush2.msra.mxu0 0.0
  %2025 = vmatprep.subr.mxu0 0.0
  %2026 = vmatpush2.msra.mxu0 0.0
  %2027 = vmatprep.subr.mxu0 0.0
  %2028 = vmatpush2.msra.mxu0 0.0
  %2029 = vmatprep.subr.mxu0 0.0
  %2030 = vmatpush2.msra.mxu0 0.0
  %2031 = vmatprep.subr.mxu0 0.0
  %2032 = vmatpush2.msra.mxu0 0.0
  %2033 = vmatprep.subr.mxu0 0.0
  %2034 = vmatpush2.msra.mxu0 0.0
  %2035 = vmatprep.subr.mxu0 0.0
  %2036 = vmatpush2.msra.mxu0 0.0
  %2037 = vmatprep.subr.mxu0 0.0
  %2038 = vmatpush2.msra.mxu0 0.0
  %2039 = vmatprep.subr.mxu0 0.0
  %2040 = vmatpush2.msra.mxu0 0.0
  %2041 = vmatprep.subr.mxu0 0.0
  %2042 = vmatpush2.msra.mxu0 0.0
  %2043 = vmatprep.subr.mxu0 0.0
  %2044 = vmatpush2.msra.mxu0 0.0
  %2045 = vmatprep.mubr.f32.mxu0 0.0
  %2046 = vmatmul.mubr.f32.gmra.mxu0 %v1979
  %v2047 = vpop.f32.mrf.mxu0
  %v2048 = vadd.f32 0.0, %v2047
  %v2049 = vpop.f32.mrf.mxu0
  %v2050 = vadd.f32 0.0, %v2049
  %2051 = vdwg.mxu0
  %2053 = vrot.lane.b32.xlu0 %v1975, 64
  %v2054 = vpop.permute.xlu0 %2053
  %v2055 = vsel %vm182, %v2054, 0
  %2057 = vmatprep.subr.mxu0 0.0
  %2058 = vmatpush1.msra.mxu0 0.0
  %2059 = vmatprep.subr.mxu0 0.0
  %2060 = vmatpush1.msra.mxu0 0.0
  %2061 = vmatprep.subr.mxu0 0.0
  %2062 = vmatpush1.msra.mxu0 0.0
  %2063 = vmatprep.subr.mxu0 0.0
  %2064 = vmatpush1.msra.mxu0 0.0
  %2065 = vmatprep.subr.mxu0 0.0
  %2066 = vmatpush1.msra.mxu0 0.0
  %2067 = vmatprep.subr.mxu0 0.0
  %2068 = vmatpush1.msra.mxu0 0.0
  %2069 = vmatprep.subr.mxu0 0.0
  %2070 = vmatpush1.msra.mxu0 0.0
  %2071 = vmatprep.subr.mxu0 0.0
  %2072 = vmatpush1.msra.mxu0 0.0
  %2073 = vmatprep.subr.mxu0 %v58
  %2074 = vmatpush1.msra.mxu0 %v57
  %2075 = vmatprep.subr.mxu0 %v56
  %2076 = vmatpush1.msra.mxu0 %v55
  %2077 = vmatprep.subr.mxu0 %v54
  %2078 = vmatpush1.msra.mxu0 %v53
  %2079 = vmatprep.subr.mxu0 %v52
  %2080 = vmatpush1.msra.mxu0 %v51
  %2081 = vmatprep.subr.mxu0 %v50
  %2082 = vmatpush1.msra.mxu0 %v49
  %2083 = vmatprep.subr.mxu0 %v48
  %2084 = vmatpush1.msra.mxu0 %v47
  %2085 = vmatprep.subr.mxu0 %v46
  %2086 = vmatpush1.msra.mxu0 %v45
  %2087 = vmatprep.subr.mxu0 %v44
  %2088 = vmatpush1.msra.mxu0 %v43
  %2089 = vmatprep.subr.mxu0 0.0
  %2090 = vmatpush2.msra.mxu0 0.0
  %2091 = vmatprep.subr.mxu0 0.0
  %2092 = vmatpush2.msra.mxu0 0.0
  %2093 = vmatprep.subr.mxu0 0.0
  %2094 = vmatpush2.msra.mxu0 0.0
  %2095 = vmatprep.subr.mxu0 0.0
  %2096 = vmatpush2.msra.mxu0 0.0
  %2097 = vmatprep.subr.mxu0 0.0
  %2098 = vmatpush2.msra.mxu0 0.0
  %2099 = vmatprep.subr.mxu0 0.0
  %2100 = vmatpush2.msra.mxu0 0.0
  %2101 = vmatprep.subr.mxu0 0.0
  %2102 = vmatpush2.msra.mxu0 0.0
  %2103 = vmatprep.subr.mxu0 0.0
  %2104 = vmatpush2.msra.mxu0 0.0
  %2105 = vmatprep.subr.mxu0 0.0
  %2106 = vmatpush2.msra.mxu0 0.0
  %2107 = vmatprep.subr.mxu0 0.0
  %2108 = vmatpush2.msra.mxu0 0.0
  %2109 = vmatprep.subr.mxu0 0.0
  %2110 = vmatpush2.msra.mxu0 0.0
  %2111 = vmatprep.subr.mxu0 0.0
  %2112 = vmatpush2.msra.mxu0 0.0
  %2113 = vmatprep.subr.mxu0 0.0
  %2114 = vmatpush2.msra.mxu0 0.0
  %2115 = vmatprep.subr.mxu0 0.0
  %2116 = vmatpush2.msra.mxu0 0.0
  %2117 = vmatprep.subr.mxu0 0.0
  %2118 = vmatpush2.msra.mxu0 0.0
  %2119 = vmatprep.subr.mxu0 0.0
  %2120 = vmatpush2.msra.mxu0 0.0
  %2121 = vmatprep.mubr.f32.mxu0 0.0
  %2122 = vmatmul.mubr.f32.gmra.mxu0 %v2055
  %v2123 = vpop.f32.mrf.mxu0
  %v2124 = vadd.f32 %v2048, %v2123
  %v2125 = vpop.f32.mrf.mxu0
  %v2126 = vadd.f32 %v2050, %v2125
  %2127 = vdwg.mxu0
  %v2128 = vadd.f32 %v2124, %v92
  %v2129 = vadd.f32 %v2126, %v96
  %v2130 = vxor.u32 %v2128, 2147483648
  %v2131 = vmul.f32 %v2130, 1.442695
  %v2132 = vpow.pop %v2131
  %v2133 = vadd.f32 %v2132, 1.0
  %v2134 = vrcp.pop %v2133
  %v2135 = vmul.f32 1.0, %v2134
  %2137 = vrot.lane.b32.xlu0 %v2129, 64
  %v2138 = vpop.permute.xlu0 %2137
  %v2140 = vmul.f32 %v2135, %v2138
  %v2141 = vadd.f32 %v2129, %v2140
  %v2142 = vtanh.pop %v2141
  %v2143 = vsub.f32 1.0, %v2135
  %2145 = vrot.lane.b32.xlu0 %v2142, 64
  %v2146 = vpop.permute.xlu0 %2145
  %v2148 = vmul.f32 %v2143, %v2146
  %v2149 = vmul.f32 %v2135, %v1809
  %v2150 = vadd.f32 %v2148, %v2149
  %s2151 = scalar_lea.vmem %s0, 12
  %v2152 = vld [vmem:[%s2151] sm:$0x3]
  %v2154 = vsel %vm100, %v2152, 0
  %2156 = vmatprep.subr.mxu0 0.0
  %2157 = vmatpush1.msra.mxu0 0.0
  %2158 = vmatprep.subr.mxu0 0.0
  %2159 = vmatpush1.msra.mxu0 0.0
  %2160 = vmatprep.subr.mxu0 0.0
  %2161 = vmatpush1.msra.mxu0 0.0
  %2162 = vmatprep.subr.mxu0 0.0
  %2163 = vmatpush1.msra.mxu0 0.0
  %2164 = vmatprep.subr.mxu0 0.0
  %2165 = vmatpush1.msra.mxu0 0.0
  %2166 = vmatprep.subr.mxu0 0.0
  %2167 = vmatpush1.msra.mxu0 0.0
  %2168 = vmatprep.subr.mxu0 0.0
  %2169 = vmatpush1.msra.mxu0 0.0
  %2170 = vmatprep.subr.mxu0 0.0
  %2171 = vmatpush1.msra.mxu0 0.0
  %2172 = vmatprep.subr.mxu0 0.0
  %2173 = vmatpush1.msra.mxu0 0.0
  %2174 = vmatprep.subr.mxu0 0.0
  %2175 = vmatpush1.msra.mxu0 0.0
  %2176 = vmatprep.subr.mxu0 0.0
  %2177 = vmatpush1.msra.mxu0 0.0
  %2178 = vmatprep.subr.mxu0 0.0
  %2179 = vmatpush1.msra.mxu0 0.0
  %2180 = vmatprep.subr.mxu0 0.0
  %2181 = vmatpush1.msra.mxu0 0.0
  %2182 = vmatprep.subr.mxu0 0.0
  %2183 = vmatpush1.msra.mxu0 0.0
  %2184 = vmatprep.subr.mxu0 %v109
  %2185 = vmatpush1.msra.mxu0 %v106
  %2186 = vmatprep.subr.mxu0 %v21
  %2187 = vmatpush1.msra.mxu0 %v20
  %2188 = vmatprep.subr.mxu0 0.0
  %2189 = vmatpush2.msra.mxu0 0.0
  %2190 = vmatprep.subr.mxu0 0.0
  %2191 = vmatpush2.msra.mxu0 0.0
  %2192 = vmatprep.subr.mxu0 0.0
  %2193 = vmatpush2.msra.mxu0 0.0
  %2194 = vmatprep.subr.mxu0 0.0
  %2195 = vmatpush2.msra.mxu0 0.0
  %2196 = vmatprep.subr.mxu0 0.0
  %2197 = vmatpush2.msra.mxu0 0.0
  %2198 = vmatprep.subr.mxu0 0.0
  %2199 = vmatpush2.msra.mxu0 0.0
  %2200 = vmatprep.subr.mxu0 0.0
  %2201 = vmatpush2.msra.mxu0 0.0
  %2202 = vmatprep.subr.mxu0 0.0
  %2203 = vmatpush2.msra.mxu0 0.0
  %2204 = vmatprep.subr.mxu0 0.0
  %2205 = vmatpush2.msra.mxu0 0.0
  %2206 = vmatprep.subr.mxu0 0.0
  %2207 = vmatpush2.msra.mxu0 0.0
  %2208 = vmatprep.subr.mxu0 0.0
  %2209 = vmatpush2.msra.mxu0 0.0
  %2210 = vmatprep.subr.mxu0 0.0
  %2211 = vmatpush2.msra.mxu0 0.0
  %2212 = vmatprep.subr.mxu0 0.0
  %2213 = vmatpush2.msra.mxu0 0.0
  %2214 = vmatprep.subr.mxu0 0.0
  %2215 = vmatpush2.msra.mxu0 0.0
  %2216 = vmatprep.subr.mxu0 0.0
  %2217 = vmatpush2.msra.mxu0 0.0
  %2218 = vmatprep.subr.mxu0 0.0
  %2219 = vmatpush2.msra.mxu0 0.0
  %2220 = vmatprep.mubr.f32.mxu0 0.0
  %2221 = vmatmul.mubr.f32.gmra.mxu0 %v2154
  %v2222 = vpop.f32.mrf.mxu0
  %v2223 = vadd.f32 %v81, %v2222
  %v2224 = vpop.f32.mrf.mxu0
  %v2225 = vadd.f32 %v85, %v2224
  %2226 = vdwg.mxu0
  %2227 = vmatprep.subr.mxu0 0.0
  %2228 = vmatpush1.msra.mxu0 0.0
  %2229 = vmatprep.subr.mxu0 0.0
  %2230 = vmatpush1.msra.mxu0 0.0
  %2231 = vmatprep.subr.mxu0 0.0
  %2232 = vmatpush1.msra.mxu0 0.0
  %2233 = vmatprep.subr.mxu0 0.0
  %2234 = vmatpush1.msra.mxu0 0.0
  %2235 = vmatprep.subr.mxu0 0.0
  %2236 = vmatpush1.msra.mxu0 0.0
  %2237 = vmatprep.subr.mxu0 0.0
  %2238 = vmatpush1.msra.mxu0 0.0
  %2239 = vmatprep.subr.mxu0 0.0
  %2240 = vmatpush1.msra.mxu0 0.0
  %2241 = vmatprep.subr.mxu0 0.0
  %2242 = vmatpush1.msra.mxu0 0.0
  %2243 = vmatprep.subr.mxu0 %v42
  %2244 = vmatpush1.msra.mxu0 %v41
  %2245 = vmatprep.subr.mxu0 %v40
  %2246 = vmatpush1.msra.mxu0 %v39
  %2247 = vmatprep.subr.mxu0 %v38
  %2248 = vmatpush1.msra.mxu0 %v37
  %2249 = vmatprep.subr.mxu0 %v36
  %2250 = vmatpush1.msra.mxu0 %v35
  %2251 = vmatprep.subr.mxu0 %v34
  %2252 = vmatpush1.msra.mxu0 %v33
  %2253 = vmatprep.subr.mxu0 %v32
  %2254 = vmatpush1.msra.mxu0 %v31
  %2255 = vmatprep.subr.mxu0 %v30
  %2256 = vmatpush1.msra.mxu0 %v29
  %2257 = vmatprep.subr.mxu0 %v28
  %2258 = vmatpush1.msra.mxu0 %v27
  %2259 = vmatprep.subr.mxu0 0.0
  %2260 = vmatpush2.msra.mxu0 0.0
  %2261 = vmatprep.subr.mxu0 0.0
  %2262 = vmatpush2.msra.mxu0 0.0
  %2263 = vmatprep.subr.mxu0 0.0
  %2264 = vmatpush2.msra.mxu0 0.0
  %2265 = vmatprep.subr.mxu0 0.0
  %2266 = vmatpush2.msra.mxu0 0.0
  %2267 = vmatprep.subr.mxu0 0.0
  %2268 = vmatpush2.msra.mxu0 0.0
  %2269 = vmatprep.subr.mxu0 0.0
  %2270 = vmatpush2.msra.mxu0 0.0
  %2271 = vmatprep.subr.mxu0 0.0
  %2272 = vmatpush2.msra.mxu0 0.0
  %2273 = vmatprep.subr.mxu0 0.0
  %2274 = vmatpush2.msra.mxu0 0.0
  %2275 = vmatprep.subr.mxu0 0.0
  %2276 = vmatpush2.msra.mxu0 0.0
  %2277 = vmatprep.subr.mxu0 0.0
  %2278 = vmatpush2.msra.mxu0 0.0
  %2279 = vmatprep.subr.mxu0 0.0
  %2280 = vmatpush2.msra.mxu0 0.0
  %2281 = vmatprep.subr.mxu0 0.0
  %2282 = vmatpush2.msra.mxu0 0.0
  %2283 = vmatprep.subr.mxu0 0.0
  %2284 = vmatpush2.msra.mxu0 0.0
  %2285 = vmatprep.subr.mxu0 0.0
  %2286 = vmatpush2.msra.mxu0 0.0
  %2287 = vmatprep.subr.mxu0 0.0
  %2288 = vmatpush2.msra.mxu0 0.0
  %2289 = vmatprep.subr.mxu0 0.0
  %2290 = vmatpush2.msra.mxu0 0.0
  %2291 = vmatprep.mubr.f32.mxu0 0.0
  %2292 = vmatmul.mubr.f32.gmra.mxu0 %v2055
  %v2293 = vpop.f32.mrf.mxu0
  %v2294 = vadd.f32 0.0, %v2293
  %v2295 = vpop.f32.mrf.mxu0
  %v2296 = vadd.f32 0.0, %v2295
  %2297 = vdwg.mxu0
  %v2298 = vadd.f32 %v2223, %v2294
  %v2299 = vxor.u32 %v2298, 2147483648
  %v2300 = vmul.f32 %v2299, 1.442695
  %v2301 = vpow.pop %v2300
  %v2302 = vadd.f32 %v2301, 1.0
  %v2303 = vrcp.pop %v2302
  %v2304 = vmul.f32 1.0, %v2303
  %v2305 = vadd.f32 %v2296, %v26
  %v2306 = vmul.f32 %v2304, %v2305
  %v2307 = vadd.f32 %v2225, %v2306
  %v2308 = vtanh.pop %v2307
  %v2309 = vsub.f32 1.0, %v2304
  %2311 = vrot.lane.b32.xlu0 %v2308, 64
  %v2312 = vpop.permute.xlu0 %2311
  %v2314 = vmul.f32 %v2309, %v2312
  %v2315 = vmul.f32 %v2304, %v1975
  %v2316 = vadd.f32 %v2314, %v2315
  %2318 = vrot.lane.b32.xlu0 %v2150, 64
  %v2319 = vpop.permute.xlu0 %2318
  %v2320 = vsel %vm182, %v2319, 0
  %2322 = vmatprep.subr.mxu0 0.0
  %2323 = vmatpush1.msra.mxu0 0.0
  %2324 = vmatprep.subr.mxu0 0.0
  %2325 = vmatpush1.msra.mxu0 0.0
  %2326 = vmatprep.subr.mxu0 0.0
  %2327 = vmatpush1.msra.mxu0 0.0
  %2328 = vmatprep.subr.mxu0 0.0
  %2329 = vmatpush1.msra.mxu0 0.0
  %2330 = vmatprep.subr.mxu0 0.0
  %2331 = vmatpush1.msra.mxu0 0.0
  %2332 = vmatprep.subr.mxu0 0.0
  %2333 = vmatpush1.msra.mxu0 0.0
  %2334 = vmatprep.subr.mxu0 0.0
  %2335 = vmatpush1.msra.mxu0 0.0
  %2336 = vmatprep.subr.mxu0 0.0
  %2337 = vmatpush1.msra.mxu0 0.0
  %2338 = vmatprep.subr.mxu0 %v74
  %2339 = vmatpush1.msra.mxu0 %v73
  %2340 = vmatprep.subr.mxu0 %v72
  %2341 = vmatpush1.msra.mxu0 %v71
  %2342 = vmatprep.subr.mxu0 %v70
  %2343 = vmatpush1.msra.mxu0 %v69
  %2344 = vmatprep.subr.mxu0 %v68
  %2345 = vmatpush1.msra.mxu0 %v67
  %2346 = vmatprep.subr.mxu0 %v66
  %2347 = vmatpush1.msra.mxu0 %v65
  %2348 = vmatprep.subr.mxu0 %v64
  %2349 = vmatpush1.msra.mxu0 %v63
  %2350 = vmatprep.subr.mxu0 %v62
  %2351 = vmatpush1.msra.mxu0 %v61
  %2352 = vmatprep.subr.mxu0 %v60
  %2353 = vmatpush1.msra.mxu0 %v59
  %2354 = vmatprep.subr.mxu0 0.0
  %2355 = vmatpush2.msra.mxu0 0.0
  %2356 = vmatprep.subr.mxu0 0.0
  %2357 = vmatpush2.msra.mxu0 0.0
  %2358 = vmatprep.subr.mxu0 0.0
  %2359 = vmatpush2.msra.mxu0 0.0
  %2360 = vmatprep.subr.mxu0 0.0
  %2361 = vmatpush2.msra.mxu0 0.0
  %2362 = vmatprep.subr.mxu0 0.0
  %2363 = vmatpush2.msra.mxu0 0.0
  %2364 = vmatprep.subr.mxu0 0.0
  %2365 = vmatpush2.msra.mxu0 0.0
  %2366 = vmatprep.subr.mxu0 0.0
  %2367 = vmatpush2.msra.mxu0 0.0
  %2368 = vmatprep.subr.mxu0 0.0
  %2369 = vmatpush2.msra.mxu0 0.0
  %2370 = vmatprep.subr.mxu0 0.0
  %2371 = vmatpush2.msra.mxu0 0.0
  %2372 = vmatprep.subr.mxu0 0.0
  %2373 = vmatpush2.msra.mxu0 0.0
  %2374 = vmatprep.subr.mxu0 0.0
  %2375 = vmatpush2.msra.mxu0 0.0
  %2376 = vmatprep.subr.mxu0 0.0
  %2377 = vmatpush2.msra.mxu0 0.0
  %2378 = vmatprep.subr.mxu0 0.0
  %2379 = vmatpush2.msra.mxu0 0.0
  %2380 = vmatprep.subr.mxu0 0.0
  %2381 = vmatpush2.msra.mxu0 0.0
  %2382 = vmatprep.subr.mxu0 0.0
  %2383 = vmatpush2.msra.mxu0 0.0
  %2384 = vmatprep.subr.mxu0 0.0
  %2385 = vmatpush2.msra.mxu0 0.0
  %2386 = vmatprep.mubr.f32.mxu0 0.0
  %2387 = vmatmul.mubr.f32.gmra.mxu0 %v2320
  %v2388 = vpop.f32.mrf.mxu0
  %v2389 = vadd.f32 0.0, %v2388
  %v2390 = vpop.f32.mrf.mxu0
  %v2391 = vadd.f32 0.0, %v2390
  %2392 = vdwg.mxu0
  %2394 = vrot.lane.b32.xlu0 %v2316, 64
  %v2395 = vpop.permute.xlu0 %2394
  %v2396 = vsel %vm182, %v2395, 0
  %2398 = vmatprep.subr.mxu0 0.0
  %2399 = vmatpush1.msra.mxu0 0.0
  %2400 = vmatprep.subr.mxu0 0.0
  %2401 = vmatpush1.msra.mxu0 0.0
  %2402 = vmatprep.subr.mxu0 0.0
  %2403 = vmatpush1.msra.mxu0 0.0
  %2404 = vmatprep.subr.mxu0 0.0
  %2405 = vmatpush1.msra.mxu0 0.0
  %2406 = vmatprep.subr.mxu0 0.0
  %2407 = vmatpush1.msra.mxu0 0.0
  %2408 = vmatprep.subr.mxu0 0.0
  %2409 = vmatpush1.msra.mxu0 0.0
  %2410 = vmatprep.subr.mxu0 0.0
  %2411 = vmatpush1.msra.mxu0 0.0
  %2412 = vmatprep.subr.mxu0 0.0
  %2413 = vmatpush1.msra.mxu0 0.0
  %2414 = vmatprep.subr.mxu0 %v58
  %2415 = vmatpush1.msra.mxu0 %v57
  %2416 = vmatprep.subr.mxu0 %v56
  %2417 = vmatpush1.msra.mxu0 %v55
  %2418 = vmatprep.subr.mxu0 %v54
  %2419 = vmatpush1.msra.mxu0 %v53
  %2420 = vmatprep.subr.mxu0 %v52
  %2421 = vmatpush1.msra.mxu0 %v51
  %2422 = vmatprep.subr.mxu0 %v50
  %2423 = vmatpush1.msra.mxu0 %v49
  %2424 = vmatprep.subr.mxu0 %v48
  %2425 = vmatpush1.msra.mxu0 %v47
  %2426 = vmatprep.subr.mxu0 %v46
  %2427 = vmatpush1.msra.mxu0 %v45
  %2428 = vmatprep.subr.mxu0 %v44
  %2429 = vmatpush1.msra.mxu0 %v43
  %2430 = vmatprep.subr.mxu0 0.0
  %2431 = vmatpush2.msra.mxu0 0.0
  %2432 = vmatprep.subr.mxu0 0.0
  %2433 = vmatpush2.msra.mxu0 0.0
  %2434 = vmatprep.subr.mxu0 0.0
  %2435 = vmatpush2.msra.mxu0 0.0
  %2436 = vmatprep.subr.mxu0 0.0
  %2437 = vmatpush2.msra.mxu0 0.0
  %2438 = vmatprep.subr.mxu0 0.0
  %2439 = vmatpush2.msra.mxu0 0.0
  %2440 = vmatprep.subr.mxu0 0.0
  %2441 = vmatpush2.msra.mxu0 0.0
  %2442 = vmatprep.subr.mxu0 0.0
  %2443 = vmatpush2.msra.mxu0 0.0
  %2444 = vmatprep.subr.mxu0 0.0
  %2445 = vmatpush2.msra.mxu0 0.0
  %2446 = vmatprep.subr.mxu0 0.0
  %2447 = vmatpush2.msra.mxu0 0.0
  %2448 = vmatprep.subr.mxu0 0.0
  %2449 = vmatpush2.msra.mxu0 0.0
  %2450 = vmatprep.subr.mxu0 0.0
  %2451 = vmatpush2.msra.mxu0 0.0
  %2452 = vmatprep.subr.mxu0 0.0
  %2453 = vmatpush2.msra.mxu0 0.0
  %2454 = vmatprep.subr.mxu0 0.0
  %2455 = vmatpush2.msra.mxu0 0.0
  %2456 = vmatprep.subr.mxu0 0.0
  %2457 = vmatpush2.msra.mxu0 0.0
  %2458 = vmatprep.subr.mxu0 0.0
  %2459 = vmatpush2.msra.mxu0 0.0
  %2460 = vmatprep.subr.mxu0 0.0
  %2461 = vmatpush2.msra.mxu0 0.0
  %2462 = vmatprep.mubr.f32.mxu0 0.0
  %2463 = vmatmul.mubr.f32.gmra.mxu0 %v2396
  %v2464 = vpop.f32.mrf.mxu0
  %v2465 = vadd.f32 %v2389, %v2464
  %v2466 = vpop.f32.mrf.mxu0
  %v2467 = vadd.f32 %v2391, %v2466
  %2468 = vdwg.mxu0
  %v2469 = vadd.f32 %v2465, %v92
  %v2470 = vadd.f32 %v2467, %v96
  %v2471 = vxor.u32 %v2469, 2147483648
  %v2472 = vmul.f32 %v2471, 1.442695
  %v2473 = vpow.pop %v2472
  %v2474 = vadd.f32 %v2473, 1.0
  %v2475 = vrcp.pop %v2474
  %v2476 = vmul.f32 1.0, %v2475
  %2478 = vrot.lane.b32.xlu0 %v2470, 64
  %v2479 = vpop.permute.xlu0 %2478
  %v2481 = vmul.f32 %v2476, %v2479
  %v2482 = vadd.f32 %v2470, %v2481
  %v2483 = vtanh.pop %v2482
  %v2484 = vsub.f32 1.0, %v2476
  %2486 = vrot.lane.b32.xlu0 %v2483, 64
  %v2487 = vpop.permute.xlu0 %2486
  %v2489 = vmul.f32 %v2484, %v2487
  %v2490 = vmul.f32 %v2476, %v2150
  %v2491 = vadd.f32 %v2489, %v2490
  %s2492 = scalar_lea.vmem %s0, 14
  %v2493 = vld [vmem:[%s2492] sm:$0x3]
  %v2495 = vsel %vm100, %v2493, 0
  %2497 = vmatprep.subr.mxu0 0.0
  %2498 = vmatpush1.msra.mxu0 0.0
  %2499 = vmatprep.subr.mxu0 0.0
  %2500 = vmatpush1.msra.mxu0 0.0
  %2501 = vmatprep.subr.mxu0 0.0
  %2502 = vmatpush1.msra.mxu0 0.0
  %2503 = vmatprep.subr.mxu0 0.0
  %2504 = vmatpush1.msra.mxu0 0.0
  %2505 = vmatprep.subr.mxu0 0.0
  %2506 = vmatpush1.msra.mxu0 0.0
  %2507 = vmatprep.subr.mxu0 0.0
  %2508 = vmatpush1.msra.mxu0 0.0
  %2509 = vmatprep.subr.mxu0 0.0
  %2510 = vmatpush1.msra.mxu0 0.0
  %2511 = vmatprep.subr.mxu0 0.0
  %2512 = vmatpush1.msra.mxu0 0.0
  %2513 = vmatprep.subr.mxu0 0.0
  %2514 = vmatpush1.msra.mxu0 0.0
  %2515 = vmatprep.subr.mxu0 0.0
  %2516 = vmatpush1.msra.mxu0 0.0
  %2517 = vmatprep.subr.mxu0 0.0
  %2518 = vmatpush1.msra.mxu0 0.0
  %2519 = vmatprep.subr.mxu0 0.0
  %2520 = vmatpush1.msra.mxu0 0.0
  %2521 = vmatprep.subr.mxu0 0.0
  %2522 = vmatpush1.msra.mxu0 0.0
  %2523 = vmatprep.subr.mxu0 0.0
  %2524 = vmatpush1.msra.mxu0 0.0
  %2525 = vmatprep.subr.mxu0 %v109
  %2526 = vmatpush1.msra.mxu0 %v106
  %2527 = vmatprep.subr.mxu0 %v21
  %2528 = vmatpush1.msra.mxu0 %v20
  %2529 = vmatprep.subr.mxu0 0.0
  %2530 = vmatpush2.msra.mxu0 0.0
  %2531 = vmatprep.subr.mxu0 0.0
  %2532 = vmatpush2.msra.mxu0 0.0
  %2533 = vmatprep.subr.mxu0 0.0
  %2534 = vmatpush2.msra.mxu0 0.0
  %2535 = vmatprep.subr.mxu0 0.0
  %2536 = vmatpush2.msra.mxu0 0.0
  %2537 = vmatprep.subr.mxu0 0.0
  %2538 = vmatpush2.msra.mxu0 0.0
  %2539 = vmatprep.subr.mxu0 0.0
  %2540 = vmatpush2.msra.mxu0 0.0
  %2541 = vmatprep.subr.mxu0 0.0
  %2542 = vmatpush2.msra.mxu0 0.0
  %2543 = vmatprep.subr.mxu0 0.0
  %2544 = vmatpush2.msra.mxu0 0.0
  %2545 = vmatprep.subr.mxu0 0.0
  %2546 = vmatpush2.msra.mxu0 0.0
  %2547 = vmatprep.subr.mxu0 0.0
  %2548 = vmatpush2.msra.mxu0 0.0
  %2549 = vmatprep.subr.mxu0 0.0
  %2550 = vmatpush2.msra.mxu0 0.0
  %2551 = vmatprep.subr.mxu0 0.0
  %2552 = vmatpush2.msra.mxu0 0.0
  %2553 = vmatprep.subr.mxu0 0.0
  %2554 = vmatpush2.msra.mxu0 0.0
  %2555 = vmatprep.subr.mxu0 0.0
  %2556 = vmatpush2.msra.mxu0 0.0
  %2557 = vmatprep.subr.mxu0 0.0
  %2558 = vmatpush2.msra.mxu0 0.0
  %2559 = vmatprep.subr.mxu0 0.0
  %2560 = vmatpush2.msra.mxu0 0.0
  %2561 = vmatprep.mubr.f32.mxu0 0.0
  %2562 = vmatmul.mubr.f32.gmra.mxu0 %v2495
  %v2563 = vpop.f32.mrf.mxu0
  %v2564 = vadd.f32 %v81, %v2563
  %v2565 = vpop.f32.mrf.mxu0
  %v2566 = vadd.f32 %v85, %v2565
  %2567 = vdwg.mxu0
  %2568 = vmatprep.subr.mxu0 0.0
  %2569 = vmatpush1.msra.mxu0 0.0
  %2570 = vmatprep.subr.mxu0 0.0
  %2571 = vmatpush1.msra.mxu0 0.0
  %2572 = vmatprep.subr.mxu0 0.0
  %2573 = vmatpush1.msra.mxu0 0.0
  %2574 = vmatprep.subr.mxu0 0.0
  %2575 = vmatpush1.msra.mxu0 0.0
  %2576 = vmatprep.subr.mxu0 0.0
  %2577 = vmatpush1.msra.mxu0 0.0
  %2578 = vmatprep.subr.mxu0 0.0
  %2579 = vmatpush1.msra.mxu0 0.0
  %2580 = vmatprep.subr.mxu0 0.0
  %2581 = vmatpush1.msra.mxu0 0.0
  %2582 = vmatprep.subr.mxu0 0.0
  %2583 = vmatpush1.msra.mxu0 0.0
  %2584 = vmatprep.subr.mxu0 %v42
  %2585 = vmatpush1.msra.mxu0 %v41
  %2586 = vmatprep.subr.mxu0 %v40
  %2587 = vmatpush1.msra.mxu0 %v39
  %2588 = vmatprep.subr.mxu0 %v38
  %2589 = vmatpush1.msra.mxu0 %v37
  %2590 = vmatprep.subr.mxu0 %v36
  %2591 = vmatpush1.msra.mxu0 %v35
  %2592 = vmatprep.subr.mxu0 %v34
  %2593 = vmatpush1.msra.mxu0 %v33
  %2594 = vmatprep.subr.mxu0 %v32
  %2595 = vmatpush1.msra.mxu0 %v31
  %2596 = vmatprep.subr.mxu0 %v30
  %2597 = vmatpush1.msra.mxu0 %v29
  %2598 = vmatprep.subr.mxu0 %v28
  %2599 = vmatpush1.msra.mxu0 %v27
  %2600 = vmatprep.subr.mxu0 0.0
  %2601 = vmatpush2.msra.mxu0 0.0
  %2602 = vmatprep.subr.mxu0 0.0
  %2603 = vmatpush2.msra.mxu0 0.0
  %2604 = vmatprep.subr.mxu0 0.0
  %2605 = vmatpush2.msra.mxu0 0.0
  %2606 = vmatprep.subr.mxu0 0.0
  %2607 = vmatpush2.msra.mxu0 0.0
  %2608 = vmatprep.subr.mxu0 0.0
  %2609 = vmatpush2.msra.mxu0 0.0
  %2610 = vmatprep.subr.mxu0 0.0
  %2611 = vmatpush2.msra.mxu0 0.0
  %2612 = vmatprep.subr.mxu0 0.0
  %2613 = vmatpush2.msra.mxu0 0.0
  %2614 = vmatprep.subr.mxu0 0.0
  %2615 = vmatpush2.msra.mxu0 0.0
  %2616 = vmatprep.subr.mxu0 0.0
  %2617 = vmatpush2.msra.mxu0 0.0
  %2618 = vmatprep.subr.mxu0 0.0
  %2619 = vmatpush2.msra.mxu0 0.0
  %2620 = vmatprep.subr.mxu0 0.0
  %2621 = vmatpush2.msra.mxu0 0.0
  %2622 = vmatprep.subr.mxu0 0.0
  %2623 = vmatpush2.msra.mxu0 0.0
  %2624 = vmatprep.subr.mxu0 0.0
  %2625 = vmatpush2.msra.mxu0 0.0
  %2626 = vmatprep.subr.mxu0 0.0
  %2627 = vmatpush2.msra.mxu0 0.0
  %2628 = vmatprep.subr.mxu0 0.0
  %2629 = vmatpush2.msra.mxu0 0.0
  %2630 = vmatprep.subr.mxu0 0.0
  %2631 = vmatpush2.msra.mxu0 0.0
  %2632 = vmatprep.mubr.f32.mxu0 0.0
  %2633 = vmatmul.mubr.f32.gmra.mxu0 %v2396
  %v2634 = vpop.f32.mrf.mxu0
  %v2635 = vadd.f32 0.0, %v2634
  %v2636 = vpop.f32.mrf.mxu0
  %v2637 = vadd.f32 0.0, %v2636
  %2638 = vdwg.mxu0
  %v2639 = vadd.f32 %v2564, %v2635
  %v2640 = vxor.u32 %v2639, 2147483648
  %v2641 = vmul.f32 %v2640, 1.442695
  %v2642 = vpow.pop %v2641
  %v2643 = vadd.f32 %v2642, 1.0
  %v2644 = vrcp.pop %v2643
  %v2645 = vmul.f32 1.0, %v2644
  %v2646 = vadd.f32 %v2637, %v26
  %v2647 = vmul.f32 %v2645, %v2646
  %v2648 = vadd.f32 %v2566, %v2647
  %v2649 = vtanh.pop %v2648
  %v2650 = vsub.f32 1.0, %v2645
  %2652 = vrot.lane.b32.xlu0 %v2649, 64
  %v2653 = vpop.permute.xlu0 %2652
  %v2655 = vmul.f32 %v2650, %v2653
  %v2656 = vmul.f32 %v2645, %v2316
  %v2657 = vadd.f32 %v2655, %v2656
  %2659 = vrot.lane.b32.xlu0 %v2491, 64
  %v2660 = vpop.permute.xlu0 %2659
  %v2661 = vsel %vm182, %v2660, 0
  %2663 = vmatprep.subr.mxu0 0.0
  %2664 = vmatpush1.msra.mxu0 0.0
  %2665 = vmatprep.subr.mxu0 0.0
  %2666 = vmatpush1.msra.mxu0 0.0
  %2667 = vmatprep.subr.mxu0 0.0
  %2668 = vmatpush1.msra.mxu0 0.0
  %2669 = vmatprep.subr.mxu0 0.0
  %2670 = vmatpush1.msra.mxu0 0.0
  %2671 = vmatprep.subr.mxu0 0.0
  %2672 = vmatpush1.msra.mxu0 0.0
  %2673 = vmatprep.subr.mxu0 0.0
  %2674 = vmatpush1.msra.mxu0 0.0
  %2675 = vmatprep.subr.mxu0 0.0
  %2676 = vmatpush1.msra.mxu0 0.0
  %2677 = vmatprep.subr.mxu0 0.0
  %2678 = vmatpush1.msra.mxu0 0.0
  %2679 = vmatprep.subr.mxu0 %v74
  %2680 = vmatpush1.msra.mxu0 %v73
  %2681 = vmatprep.subr.mxu0 %v72
  %2682 = vmatpush1.msra.mxu0 %v71
  %2683 = vmatprep.subr.mxu0 %v70
  %2684 = vmatpush1.msra.mxu0 %v69
  %2685 = vmatprep.subr.mxu0 %v68
  %2686 = vmatpush1.msra.mxu0 %v67
  %2687 = vmatprep.subr.mxu0 %v66
  %2688 = vmatpush1.msra.mxu0 %v65
  %2689 = vmatprep.subr.mxu0 %v64
  %2690 = vmatpush1.msra.mxu0 %v63
  %2691 = vmatprep.subr.mxu0 %v62
  %2692 = vmatpush1.msra.mxu0 %v61
  %2693 = vmatprep.subr.mxu0 %v60
  %2694 = vmatpush1.msra.mxu0 %v59
  %2695 = vmatprep.subr.mxu0 0.0
  %2696 = vmatpush2.msra.mxu0 0.0
  %2697 = vmatprep.subr.mxu0 0.0
  %2698 = vmatpush2.msra.mxu0 0.0
  %2699 = vmatprep.subr.mxu0 0.0
  %2700 = vmatpush2.msra.mxu0 0.0
  %2701 = vmatprep.subr.mxu0 0.0
  %2702 = vmatpush2.msra.mxu0 0.0
  %2703 = vmatprep.subr.mxu0 0.0
  %2704 = vmatpush2.msra.mxu0 0.0
  %2705 = vmatprep.subr.mxu0 0.0
  %2706 = vmatpush2.msra.mxu0 0.0
  %2707 = vmatprep.subr.mxu0 0.0
  %2708 = vmatpush2.msra.mxu0 0.0
  %2709 = vmatprep.subr.mxu0 0.0
  %2710 = vmatpush2.msra.mxu0 0.0
  %2711 = vmatprep.subr.mxu0 0.0
  %2712 = vmatpush2.msra.mxu0 0.0
  %2713 = vmatprep.subr.mxu0 0.0
  %2714 = vmatpush2.msra.mxu0 0.0
  %2715 = vmatprep.subr.mxu0 0.0
  %2716 = vmatpush2.msra.mxu0 0.0
  %2717 = vmatprep.subr.mxu0 0.0
  %2718 = vmatpush2.msra.mxu0 0.0
  %2719 = vmatprep.subr.mxu0 0.0
  %2720 = vmatpush2.msra.mxu0 0.0
  %2721 = vmatprep.subr.mxu0 0.0
  %2722 = vmatpush2.msra.mxu0 0.0
  %2723 = vmatprep.subr.mxu0 0.0
  %2724 = vmatpush2.msra.mxu0 0.0
  %2725 = vmatprep.subr.mxu0 0.0
  %2726 = vmatpush2.msra.mxu0 0.0
  %2727 = vmatprep.mubr.f32.mxu0 0.0
  %2728 = vmatmul.mubr.f32.gmra.mxu0 %v2661
  %v2729 = vpop.f32.mrf.mxu0
  %v2730 = vadd.f32 0.0, %v2729
  %v2731 = vpop.f32.mrf.mxu0
  %v2732 = vadd.f32 0.0, %v2731
  %2733 = vdwg.mxu0
  %2735 = vrot.lane.b32.xlu0 %v2657, 64
  %v2736 = vpop.permute.xlu0 %2735
  %v2737 = vsel %vm182, %v2736, 0
  %2739 = vmatprep.subr.mxu0 0.0
  %2740 = vmatpush1.msra.mxu0 0.0
  %2741 = vmatprep.subr.mxu0 0.0
  %2742 = vmatpush1.msra.mxu0 0.0
  %2743 = vmatprep.subr.mxu0 0.0
  %2744 = vmatpush1.msra.mxu0 0.0
  %2745 = vmatprep.subr.mxu0 0.0
  %2746 = vmatpush1.msra.mxu0 0.0
  %2747 = vmatprep.subr.mxu0 0.0
  %2748 = vmatpush1.msra.mxu0 0.0
  %2749 = vmatprep.subr.mxu0 0.0
  %2750 = vmatpush1.msra.mxu0 0.0
  %2751 = vmatprep.subr.mxu0 0.0
  %2752 = vmatpush1.msra.mxu0 0.0
  %2753 = vmatprep.subr.mxu0 0.0
  %2754 = vmatpush1.msra.mxu0 0.0
  %2755 = vmatprep.subr.mxu0 %v58
  %2756 = vmatpush1.msra.mxu0 %v57
  %2757 = vmatprep.subr.mxu0 %v56
  %2758 = vmatpush1.msra.mxu0 %v55
  %2759 = vmatprep.subr.mxu0 %v54
  %2760 = vmatpush1.msra.mxu0 %v53
  %2761 = vmatprep.subr.mxu0 %v52
  %2762 = vmatpush1.msra.mxu0 %v51
  %2763 = vmatprep.subr.mxu0 %v50
  %2764 = vmatpush1.msra.mxu0 %v49
  %2765 = vmatprep.subr.mxu0 %v48
  %2766 = vmatpush1.msra.mxu0 %v47
  %2767 = vmatprep.subr.mxu0 %v46
  %2768 = vmatpush1.msra.mxu0 %v45
  %2769 = vmatprep.subr.mxu0 %v44
  %2770 = vmatpush1.msra.mxu0 %v43
  %2771 = vmatprep.subr.mxu0 0.0
  %2772 = vmatpush2.msra.mxu0 0.0
  %2773 = vmatprep.subr.mxu0 0.0
  %2774 = vmatpush2.msra.mxu0 0.0
  %2775 = vmatprep.subr.mxu0 0.0
  %2776 = vmatpush2.msra.mxu0 0.0
  %2777 = vmatprep.subr.mxu0 0.0
  %2778 = vmatpush2.msra.mxu0 0.0
  %2779 = vmatprep.subr.mxu0 0.0
  %2780 = vmatpush2.msra.mxu0 0.0
  %2781 = vmatprep.subr.mxu0 0.0
  %2782 = vmatpush2.msra.mxu0 0.0
  %2783 = vmatprep.subr.mxu0 0.0
  %2784 = vmatpush2.msra.mxu0 0.0
  %2785 = vmatprep.subr.mxu0 0.0
  %2786 = vmatpush2.msra.mxu0 0.0
  %2787 = vmatprep.subr.mxu0 0.0
  %2788 = vmatpush2.msra.mxu0 0.0
  %2789 = vmatprep.subr.mxu0 0.0
  %2790 = vmatpush2.msra.mxu0 0.0
  %2791 = vmatprep.subr.mxu0 0.0
  %2792 = vmatpush2.msra.mxu0 0.0
  %2793 = vmatprep.subr.mxu0 0.0
  %2794 = vmatpush2.msra.mxu0 0.0
  %2795 = vmatprep.subr.mxu0 0.0
  %2796 = vmatpush2.msra.mxu0 0.0
  %2797 = vmatprep.subr.mxu0 0.0
  %2798 = vmatpush2.msra.mxu0 0.0
  %2799 = vmatprep.subr.mxu0 0.0
  %2800 = vmatpush2.msra.mxu0 0.0
  %2801 = vmatprep.subr.mxu0 0.0
  %2802 = vmatpush2.msra.mxu0 0.0
  %2803 = vmatprep.mubr.f32.mxu0 0.0
  %2804 = vmatmul.mubr.f32.gmra.mxu0 %v2737
  %v2805 = vpop.f32.mrf.mxu0
  %v2806 = vadd.f32 %v2730, %v2805
  %v2807 = vpop.f32.mrf.mxu0
  %v2808 = vadd.f32 %v2732, %v2807
  %2809 = vdwg.mxu0
  %v2810 = vadd.f32 %v2806, %v92
  %v2811 = vadd.f32 %v2808, %v96
  %v2812 = vxor.u32 %v2810, 2147483648
  %v2813 = vmul.f32 %v2812, 1.442695
  %v2814 = vpow.pop %v2813
  %v2815 = vadd.f32 %v2814, 1.0
  %v2816 = vrcp.pop %v2815
  %v2817 = vmul.f32 1.0, %v2816
  %2819 = vrot.lane.b32.xlu0 %v2811, 64
  %v2820 = vpop.permute.xlu0 %2819
  %v2822 = vmul.f32 %v2817, %v2820
  %v2823 = vadd.f32 %v2811, %v2822
  %v2824 = vtanh.pop %v2823
  %v2825 = vsub.f32 1.0, %v2817
  %2827 = vrot.lane.b32.xlu0 %v2824, 64
  %v2828 = vpop.permute.xlu0 %2827
  %v2830 = vmul.f32 %v2825, %v2828
  %v2831 = vmul.f32 %v2817, %v2491
  %v2832 = vadd.f32 %v2830, %v2831
  %v2833 = vld [vmem:[%s4] sm:$0x1f]
  %v2834 = vld [vmem:[%s4 + $0x8] sm:$0x1]
  %v2835 = vld [vmem:[%s4 + $0x10] sm:$0xff]
  %v2836 = vld [vmem:[%s4 + $0x18] sm:$0xff]
  %v2837 = vld [vmem:[%s4 + $0x20] sm:$0xff]
  %v2838 = vld [vmem:[%s4 + $0x28] sm:$0xff]
  %v2839 = vld [vmem:[%s4 + $0x30] sm:$0xff]
  %v2840 = vld [vmem:[%s4 + $0x38] sm:$0xff]
  %v2841 = vld [vmem:[%s4 + $0x40] sm:$0xff]
  %v2842 = vld [vmem:[%s4 + $0x48] sm:$0xff]
  %v2843 = vld [vmem:[%s4 + $0x50] sm:$0xff]
  %v2844 = vld [vmem:[%s4 + $0x58] sm:$0xff]
  %v2845 = vld [vmem:[%s4 + $0x60] sm:$0xff]
  %v2846 = vld [vmem:[%s4 + $0x68] sm:$0xff]
  %v2847 = vld [vmem:[%s4 + $0x70] sm:$0xff]
  %v2848 = vld [vmem:[%s4 + $0x78] sm:$0xff]
  %v2849 = vld [vmem:[%s4 + $0x80] sm:$0xff]
  %v2850 = vld [vmem:[%s4 + $0x88] sm:$0xff]
  %v2851 = vld [vmem:[%s4 + $0x90] sm:$0xff]
  %v2852 = vld [vmem:[%s4 + $0x98] sm:$0xff]
  %v2853 = vld [vmem:[%s4 + $0xa0] sm:$0xff]
  %v2854 = vld [vmem:[%s4 + $0xa8] sm:$0xf]
  %v2855 = vld [vmem:[%s4 + $0xb0] sm:$0x1]
  %v2856 = vld [vmem:[%s4 + $0xb8] sm:$0xff]
  %v2857 = vld [vmem:[%s4 + $0xc0] sm:$0xff]
  %v2858 = vld [vmem:[%s4 + $0xc8] sm:$0xff]
  %v2859 = vld [vmem:[%s4 + $0xd0] sm:$0xff]
  %v2860 = vld [vmem:[%s4 + $0xd8] sm:$0x1]
  %v2861 = vld [vmem:[%s1] sm:$0x3]
  %v2862 = vlaneseq
  %v2863 = vshrl.u32 %v2862, 7
  %v2864 = vsub.s32 0, %v2863
  %v2865 = vrot.slane %v2834, %v2864
  %vm2866 = vcmask 39936
  %v2868 = vsel %vm2866, %v2861, 0
  %vm2870 = vcmask 1044480
  %v2872 = vsel %vm2870, %v2833, 0
  %2874 = vmatprep.subr.mxu0 0.0
  %2875 = vmatpush1.msra.mxu0 0.0
  %2876 = vmatprep.subr.mxu0 0.0
  %2877 = vmatpush1.msra.mxu0 0.0
  %2878 = vmatprep.subr.mxu0 0.0
  %2879 = vmatpush1.msra.mxu0 0.0
  %2880 = vmatprep.subr.mxu0 0.0
  %2881 = vmatpush1.msra.mxu0 0.0
  %2882 = vmatprep.subr.mxu0 0.0
  %2883 = vmatpush1.msra.mxu0 0.0
  %2884 = vmatprep.subr.mxu0 0.0
  %2885 = vmatpush1.msra.mxu0 0.0
  %2886 = vmatprep.subr.mxu0 0.0
  %2887 = vmatpush1.msra.mxu0 0.0
  %2888 = vmatprep.subr.mxu0 0.0
  %2889 = vmatpush1.msra.mxu0 0.0
  %2890 = vmatprep.subr.mxu0 0.0
  %2891 = vmatpush1.msra.mxu0 0.0
  %2892 = vmatprep.subr.mxu0 0.0
  %2893 = vmatpush1.msra.mxu0 0.0
  %2894 = vmatprep.subr.mxu0 0.0
  %2895 = vmatpush1.msra.mxu0 0.0
  %2896 = vmatprep.subr.mxu0 0.0
  %2897 = vmatpush1.msra.mxu0 0.0
  %2898 = vmatprep.subr.mxu0 0.0
  %2899 = vmatpush1.msra.mxu0 0.0
  %2900 = vmatprep.subr.mxu0 0.0
  %2901 = vmatpush1.msra.mxu0 0.0
  %2902 = vmatprep.subr.mxu0 0.0
  %2903 = vmatpush1.msra.mxu0 0.0
  %2904 = vmatprep.subr.mxu0 0.0
  %2905 = vmatpush1.msra.mxu0 %v2872
  %2906 = vmatprep.subr.mxu0 0.0
  %2907 = vmatpush2.msra.mxu0 0.0
  %2908 = vmatprep.subr.mxu0 0.0
  %2909 = vmatpush2.msra.mxu0 0.0
  %2910 = vmatprep.subr.mxu0 0.0
  %2911 = vmatpush2.msra.mxu0 0.0
  %2912 = vmatprep.subr.mxu0 0.0
  %2913 = vmatpush2.msra.mxu0 0.0
  %2914 = vmatprep.subr.mxu0 0.0
  %2915 = vmatpush2.msra.mxu0 0.0
  %2916 = vmatprep.subr.mxu0 0.0
  %2917 = vmatpush2.msra.mxu0 0.0
  %2918 = vmatprep.subr.mxu0 0.0
  %2919 = vmatpush2.msra.mxu0 0.0
  %2920 = vmatprep.subr.mxu0 0.0
  %2921 = vmatpush2.msra.mxu0 0.0
  %2922 = vmatprep.subr.mxu0 0.0
  %2923 = vmatpush2.msra.mxu0 0.0
  %2924 = vmatprep.subr.mxu0 0.0
  %2925 = vmatpush2.msra.mxu0 0.0
  %2926 = vmatprep.subr.mxu0 0.0
  %2927 = vmatpush2.msra.mxu0 0.0
  %2928 = vmatprep.subr.mxu0 0.0
  %2929 = vmatpush2.msra.mxu0 0.0
  %2930 = vmatprep.subr.mxu0 0.0
  %2931 = vmatpush2.msra.mxu0 0.0
  %2932 = vmatprep.subr.mxu0 0.0
  %2933 = vmatpush2.msra.mxu0 0.0
  %2934 = vmatprep.subr.mxu0 0.0
  %2935 = vmatpush2.msra.mxu0 0.0
  %2936 = vmatprep.subr.mxu0 0.0
  %2937 = vmatpush2.msra.mxu0 0.0
  %2938 = vmatprep.mubr.f32.mxu0 0.0
  %2939 = vmatmul.mubr.f32.gmra.mxu0 %v2868
  %v2940 = vpop.f32.mrf.mxu0
  %v2941 = vadd.f32 %v2865, %v2940
  %v2942 = vpop.f32.mrf.mxu0
  %2943 = vdwg.mxu0
  %v2944 = vmax.f32 %v2941, 0.0
  %2946 = vrot.lane.b32.xlu0 %v2832, 64
  %v2947 = vpop.permute.xlu0 %2946
  %v2948 = vsel %vm182, %v2947, 0
  %2950 = vmatprep.subr.mxu0 0.0
  %2951 = vmatpush1.msra.mxu0 0.0
  %2952 = vmatprep.subr.mxu0 0.0
  %2953 = vmatpush1.msra.mxu0 0.0
  %2954 = vmatprep.subr.mxu0 0.0
  %2955 = vmatpush1.msra.mxu0 0.0
  %2956 = vmatprep.subr.mxu0 0.0
  %2957 = vmatpush1.msra.mxu0 0.0
  %2958 = vmatprep.subr.mxu0 0.0
  %2959 = vmatpush1.msra.mxu0 0.0
  %2960 = vmatprep.subr.mxu0 0.0
  %2961 = vmatpush1.msra.mxu0 0.0
  %2962 = vmatprep.subr.mxu0 0.0
  %2963 = vmatpush1.msra.mxu0 0.0
  %2964 = vmatprep.subr.mxu0 0.0
  %2965 = vmatpush1.msra.mxu0 0.0
  %2966 = vmatprep.subr.mxu0 0.0
  %2967 = vmatpush1.msra.mxu0 %v2846
  %2968 = vmatprep.subr.mxu0 0.0
  %2969 = vmatpush1.msra.mxu0 %v2845
  %2970 = vmatprep.subr.mxu0 0.0
  %2971 = vmatpush1.msra.mxu0 %v2844
  %2972 = vmatprep.subr.mxu0 0.0
  %2973 = vmatpush1.msra.mxu0 %v2843
  %2974 = vmatprep.subr.mxu0 0.0
  %2975 = vmatpush1.msra.mxu0 %v2842
  %2976 = vmatprep.subr.mxu0 0.0
  %2977 = vmatpush1.msra.mxu0 %v2841
  %2978 = vmatprep.subr.mxu0 0.0
  %2979 = vmatpush1.msra.mxu0 %v2840
  %2980 = vmatprep.subr.mxu0 0.0
  %2981 = vmatpush1.msra.mxu0 %v2839
  %2982 = vmatprep.subr.mxu0 0.0
  %2983 = vmatpush2.msra.mxu0 0.0
  %2984 = vmatprep.subr.mxu0 0.0
  %2985 = vmatpush2.msra.mxu0 0.0
  %2986 = vmatprep.subr.mxu0 0.0
  %2987 = vmatpush2.msra.mxu0 0.0
  %2988 = vmatprep.subr.mxu0 0.0
  %2989 = vmatpush2.msra.mxu0 0.0
  %2990 = vmatprep.subr.mxu0 0.0
  %2991 = vmatpush2.msra.mxu0 0.0
  %2992 = vmatprep.subr.mxu0 0.0
  %2993 = vmatpush2.msra.mxu0 0.0
  %2994 = vmatprep.subr.mxu0 0.0
  %2995 = vmatpush2.msra.mxu0 0.0
  %2996 = vmatprep.subr.mxu0 0.0
  %2997 = vmatpush2.msra.mxu0 0.0
  %2998 = vmatprep.subr.mxu0 0.0
  %2999 = vmatpush2.msra.mxu0 0.0
  %3000 = vmatprep.subr.mxu0 0.0
  %3001 = vmatpush2.msra.mxu0 0.0
  %3002 = vmatprep.subr.mxu0 0.0
  %3003 = vmatpush2.msra.mxu0 0.0
  %3004 = vmatprep.subr.mxu0 0.0
  %3005 = vmatpush2.msra.mxu0 0.0
  %3006 = vmatprep.subr.mxu0 0.0
  %3007 = vmatpush2.msra.mxu0 0.0
  %3008 = vmatprep.subr.mxu0 0.0
  %3009 = vmatpush2.msra.mxu0 0.0
  %3010 = vmatprep.subr.mxu0 0.0
  %3011 = vmatpush2.msra.mxu0 0.0
  %3012 = vmatprep.subr.mxu0 0.0
  %3013 = vmatpush2.msra.mxu0 0.0
  %3014 = vmatprep.mubr.f32.mxu0 0.0
  %3015 = vmatmul.mubr.f32.gmra.mxu0 %v2948
  %v3016 = vpop.f32.mrf.mxu0
  %v3017 = vadd.f32 0.0, %v3016
  %v3018 = vpop.f32.mrf.mxu0
  %3019 = vdwg.mxu0
  %vm3020 = vcmask 261120
  %v3022 = vsel %vm3020, %v2944, 0
  %3024 = vmatprep.subr.mxu0 0.0
  %3025 = vmatpush1.msra.mxu0 0.0
  %3026 = vmatprep.subr.mxu0 0.0
  %3027 = vmatpush1.msra.mxu0 0.0
  %3028 = vmatprep.subr.mxu0 0.0
  %3029 = vmatpush1.msra.mxu0 0.0
  %3030 = vmatprep.subr.mxu0 0.0
  %3031 = vmatpush1.msra.mxu0 0.0
  %3032 = vmatprep.subr.mxu0 0.0
  %3033 = vmatpush1.msra.mxu0 0.0
  %3034 = vmatprep.subr.mxu0 0.0
  %3035 = vmatpush1.msra.mxu0 0.0
  %3036 = vmatprep.subr.mxu0 0.0
  %3037 = vmatpush1.msra.mxu0 0.0
  %3038 = vmatprep.subr.mxu0 0.0
  %3039 = vmatpush1.msra.mxu0 0.0
  %3040 = vmatprep.subr.mxu0 0.0
  %3041 = vmatpush1.msra.mxu0 0.0
  %3042 = vmatprep.subr.mxu0 0.0
  %3043 = vmatpush1.msra.mxu0 0.0
  %3044 = vmatprep.subr.mxu0 0.0
  %3045 = vmatpush1.msra.mxu0 0.0
  %3046 = vmatprep.subr.mxu0 0.0
  %3047 = vmatpush1.msra.mxu0 0.0
  %3048 = vmatprep.subr.mxu0 0.0
  %3049 = vmatpush1.msra.mxu0 %v2838
  %3050 = vmatprep.subr.mxu0 0.0
  %3051 = vmatpush1.msra.mxu0 %v2837
  %3052 = vmatprep.subr.mxu0 0.0
  %3053 = vmatpush1.msra.mxu0 %v2836
  %3054 = vmatprep.subr.mxu0 0.0
  %3055 = vmatpush1.msra.mxu0 %v2835
  %3056 = vmatprep.subr.mxu0 0.0
  %3057 = vmatpush2.msra.mxu0 0.0
  %3058 = vmatprep.subr.mxu0 0.0
  %3059 = vmatpush2.msra.mxu0 0.0
  %3060 = vmatprep.subr.mxu0 0.0
  %3061 = vmatpush2.msra.mxu0 0.0
  %3062 = vmatprep.subr.mxu0 0.0
  %3063 = vmatpush2.msra.mxu0 0.0
  %3064 = vmatprep.subr.mxu0 0.0
  %3065 = vmatpush2.msra.mxu0 0.0
  %3066 = vmatprep.subr.mxu0 0.0
  %3067 = vmatpush2.msra.mxu0 0.0
  %3068 = vmatprep.subr.mxu0 0.0
  %3069 = vmatpush2.msra.mxu0 0.0
  %3070 = vmatprep.subr.mxu0 0.0
  %3071 = vmatpush2.msra.mxu0 0.0
  %3072 = vmatprep.subr.mxu0 0.0
  %3073 = vmatpush2.msra.mxu0 0.0
  %3074 = vmatprep.subr.mxu0 0.0
  %3075 = vmatpush2.msra.mxu0 0.0
  %3076 = vmatprep.subr.mxu0 0.0
  %3077 = vmatpush2.msra.mxu0 0.0
  %3078 = vmatprep.subr.mxu0 0.0
  %3079 = vmatpush2.msra.mxu0 0.0
  %3080 = vmatprep.subr.mxu0 0.0
  %3081 = vmatpush2.msra.mxu0 0.0
  %3082 = vmatprep.subr.mxu0 0.0
  %3083 = vmatpush2.msra.mxu0 0.0
  %3084 = vmatprep.subr.mxu0 0.0
  %3085 = vmatpush2.msra.mxu0 0.0
  %3086 = vmatprep.subr.mxu0 0.0
  %3087 = vmatpush2.msra.mxu0 0.0
  %3088 = vmatprep.mubr.f32.mxu0 0.0
  %3089 = vmatmul.mubr.f32.gmra.mxu0 %v3022
  %v3090 = vpop.f32.mrf.mxu0
  %v3091 = vadd.f32 %v3017, %v3090
  %v3092 = vpop.f32.mrf.mxu0
  %3093 = vdwg.mxu0
  %v3094 = vld [vmem:[%s2] sm:$0x3]
  %vm3095 = vcmask 490496
  %v3097 = vsel %vm3095, %v3094, 0
  %vm3099 = vcmask 1043456
  %v3101 = vsel %vm3099, %v2854, 0
  %3103 = vmatprep.subr.mxu0 0.0
  %3104 = vmatpush1.msra.mxu0 0.0
  %3105 = vmatprep.subr.mxu0 0.0
  %3106 = vmatpush1.msra.mxu0 0.0
  %3107 = vmatprep.subr.mxu0 0.0
  %3108 = vmatpush1.msra.mxu0 0.0
  %3109 = vmatprep.subr.mxu0 0.0
  %3110 = vmatpush1.msra.mxu0 0.0
  %3111 = vmatprep.subr.mxu0 0.0
  %3112 = vmatpush1.msra.mxu0 0.0
  %3113 = vmatprep.subr.mxu0 0.0
  %3114 = vmatpush1.msra.mxu0 0.0
  %3115 = vmatprep.subr.mxu0 0.0
  %3116 = vmatpush1.msra.mxu0 0.0
  %3117 = vmatprep.subr.mxu0 0.0
  %3118 = vmatpush1.msra.mxu0 0.0
  %3119 = vmatprep.subr.mxu0 0.0
  %3120 = vmatpush1.msra.mxu0 %v3101
  %3121 = vmatprep.subr.mxu0 0.0
  %3122 = vmatpush1.msra.mxu0 %v2853
  %3123 = vmatprep.subr.mxu0 0.0
  %3124 = vmatpush1.msra.mxu0 %v2852
  %3125 = vmatprep.subr.mxu0 0.0
  %3126 = vmatpush1.msra.mxu0 %v2851
  %3127 = vmatprep.subr.mxu0 0.0
  %3128 = vmatpush1.msra.mxu0 %v2850
  %3129 = vmatprep.subr.mxu0 0.0
  %3130 = vmatpush1.msra.mxu0 %v2849
  %3131 = vmatprep.subr.mxu0 0.0
  %3132 = vmatpush1.msra.mxu0 %v2848
  %3133 = vmatprep.subr.mxu0 0.0
  %3134 = vmatpush1.msra.mxu0 %v2847
  %3135 = vmatprep.subr.mxu0 0.0
  %3136 = vmatpush2.msra.mxu0 0.0
  %3137 = vmatprep.subr.mxu0 0.0
  %3138 = vmatpush2.msra.mxu0 0.0
  %3139 = vmatprep.subr.mxu0 0.0
  %3140 = vmatpush2.msra.mxu0 0.0
  %3141 = vmatprep.subr.mxu0 0.0
  %3142 = vmatpush2.msra.mxu0 0.0
  %3143 = vmatprep.subr.mxu0 0.0
  %3144 = vmatpush2.msra.mxu0 0.0
  %3145 = vmatprep.subr.mxu0 0.0
  %3146 = vmatpush2.msra.mxu0 0.0
  %3147 = vmatprep.subr.mxu0 0.0
  %3148 = vmatpush2.msra.mxu0 0.0
  %3149 = vmatprep.subr.mxu0 0.0
  %3150 = vmatpush2.msra.mxu0 0.0
  %3151 = vmatprep.subr.mxu0 0.0
  %3152 = vmatpush2.msra.mxu0 0.0
  %3153 = vmatprep.subr.mxu0 0.0
  %3154 = vmatpush2.msra.mxu0 0.0
  %3155 = vmatprep.subr.mxu0 0.0
  %3156 = vmatpush2.msra.mxu0 0.0
  %3157 = vmatprep.subr.mxu0 0.0
  %3158 = vmatpush2.msra.mxu0 0.0
  %3159 = vmatprep.subr.mxu0 0.0
  %3160 = vmatpush2.msra.mxu0 0.0
  %3161 = vmatprep.subr.mxu0 0.0
  %3162 = vmatpush2.msra.mxu0 0.0
  %3163 = vmatprep.subr.mxu0 0.0
  %3164 = vmatpush2.msra.mxu0 0.0
  %3165 = vmatprep.subr.mxu0 0.0
  %3166 = vmatpush2.msra.mxu0 0.0
  %3167 = vmatprep.mubr.f32.mxu0 0.0
  %3168 = vmatmul.mubr.f32.gmra.mxu0 %v3097
  %v3169 = vpop.f32.mrf.mxu0
  %v3170 = vadd.f32 0.0, %v3169
  %v3171 = vpop.f32.mrf.mxu0
  %3172 = vdwg.mxu0
  %v3173 = vadd.f32 %v3091, %v3170
  %v3174 = vlaneseq
  %v3175 = vshrl.u32 %v3174, 7
  %v3176 = vsub.s32 0, %v3175
  %v3177 = vrot.slane %v2855, %v3176
  %v3178 = vadd.f32 %v3173, %v3177
  %v3179 = vmax.f32 %v3178, 0.0
  %v3180 = vlaneseq
  %v3181 = vshrl.u32 %v3180, 7
  %v3182 = vsub.s32 0, %v3181
  %v3183 = vrot.slane %v2860, %v3182
  %v3185 = vsel %vm3020, %v3179, 0
  %3187 = vmatprep.subr.mxu0 0.0
  %3188 = vmatpush1.msra.mxu0 0.0
  %3189 = vmatprep.subr.mxu0 0.0
  %3190 = vmatpush1.msra.mxu0 0.0
  %3191 = vmatprep.subr.mxu0 0.0
  %3192 = vmatpush1.msra.mxu0 0.0
  %3193 = vmatprep.subr.mxu0 0.0
  %3194 = vmatpush1.msra.mxu0 0.0
  %3195 = vmatprep.subr.mxu0 0.0
  %3196 = vmatpush1.msra.mxu0 0.0
  %3197 = vmatprep.subr.mxu0 0.0
  %3198 = vmatpush1.msra.mxu0 0.0
  %3199 = vmatprep.subr.mxu0 0.0
  %3200 = vmatpush1.msra.mxu0 0.0
  %3201 = vmatprep.subr.mxu0 0.0
  %3202 = vmatpush1.msra.mxu0 0.0
  %3203 = vmatprep.subr.mxu0 0.0
  %3204 = vmatpush1.msra.mxu0 0.0
  %3205 = vmatprep.subr.mxu0 0.0
  %3206 = vmatpush1.msra.mxu0 0.0
  %3207 = vmatprep.subr.mxu0 0.0
  %3208 = vmatpush1.msra.mxu0 0.0
  %3209 = vmatprep.subr.mxu0 0.0
  %3210 = vmatpush1.msra.mxu0 0.0
  %3211 = vmatprep.subr.mxu0 0.0
  %3212 = vmatpush1.msra.mxu0 %v2859
  %3213 = vmatprep.subr.mxu0 0.0
  %3214 = vmatpush1.msra.mxu0 %v2858
  %3215 = vmatprep.subr.mxu0 0.0
  %3216 = vmatpush1.msra.mxu0 %v2857
  %3217 = vmatprep.subr.mxu0 0.0
  %3218 = vmatpush1.msra.mxu0 %v2856
  %3219 = vmatprep.subr.mxu0 0.0
  %3220 = vmatpush2.msra.mxu0 0.0
  %3221 = vmatprep.subr.mxu0 0.0
  %3222 = vmatpush2.msra.mxu0 0.0
  %3223 = vmatprep.subr.mxu0 0.0
  %3224 = vmatpush2.msra.mxu0 0.0
  %3225 = vmatprep.subr.mxu0 0.0
  %3226 = vmatpush2.msra.mxu0 0.0
  %3227 = vmatprep.subr.mxu0 0.0
  %3228 = vmatpush2.msra.mxu0 0.0
  %3229 = vmatprep.subr.mxu0 0.0
  %3230 = vmatpush2.msra.mxu0 0.0
  %3231 = vmatprep.subr.mxu0 0.0
  %3232 = vmatpush2.msra.mxu0 0.0
  %3233 = vmatprep.subr.mxu0 0.0
  %3234 = vmatpush2.msra.mxu0 0.0
  %3235 = vmatprep.subr.mxu0 0.0
  %3236 = vmatpush2.msra.mxu0 0.0
  %3237 = vmatprep.subr.mxu0 0.0
  %3238 = vmatpush2.msra.mxu0 0.0
  %3239 = vmatprep.subr.mxu0 0.0
  %3240 = vmatpush2.msra.mxu0 0.0
  %3241 = vmatprep.subr.mxu0 0.0
  %3242 = vmatpush2.msra.mxu0 0.0
  %3243 = vmatprep.subr.mxu0 0.0
  %3244 = vmatpush2.msra.mxu0 0.0
  %3245 = vmatprep.subr.mxu0 0.0
  %3246 = vmatpush2.msra.mxu0 0.0
  %3247 = vmatprep.subr.mxu0 0.0
  %3248 = vmatpush2.msra.mxu0 0.0
  %3249 = vmatprep.subr.mxu0 0.0
  %3250 = vmatpush2.msra.mxu0 0.0
  %3251 = vmatprep.mubr.f32.mxu0 0.0
  %3252 = vmatmul.mubr.f32.gmra.mxu0 %v3185
  %v3253 = vpop.f32.mrf.mxu0
  %v3254 = vadd.f32 %v3183, %v3253
  %v3255 = vpop.f32.mrf.mxu0
  %3256 = vdwg.mxu0
  %vm3257 = vcmask 1024
  %3258 = vst.msk [vmem:[%s5] sm:$0x3] %vm3257, %v3254
  // Predicated region
  $region22: #{yield_model_forward.1} parent=0 // pred_check
    _
  $region23: #{yield_model_forward.1} parent=0 // pred_check_branch
    %3260 = sbr.rel (0) target = $region25
  $region24: #{yield_model_forward.1} parent=0 // pred_region
    _
  $region25: #{yield_model_forward.1} parent=0 // pred_fallthru
    _
  // Predicated region
  $region26: #{yield_model_forward.1} parent=0 // pred_check
    _
  $region27: #{yield_model_forward.1} parent=0 // pred_check_branch
    %3262 = sbr.rel (0) target = $region29
  $region28: #{yield_model_forward.1} parent=0 // pred_region
    _
  $region29: #{yield_model_forward.1} parent=0 // pred_fallthru
    _

</llo_original>
